<compile_context>
chip_gen: v7x
topology: tpu7x:2x2x1
jax: 0.10.0
libtpu: 0.0.40
codegen_flags: <defaults>
</compile_context>

<pallas_src>
import jax
import jax.numpy as jnp
import numpy as np
from jax import lax
from jax.experimental import pallas as pl
from jax.experimental.pallas import tpu as pltpu

STAGE_CHANNELS = (8, 16, 24, 32, 48)   # stand-in for b4's (24, 32, 56, 160, 448)
NUM_CLASSES = 10
BN_EPS = 1e-5
VMEM_LIMIT = 32 * 1024 * 1024          # explicit scoped-VMEM budget (v5e default is 16 MiB)


# --------------------------------------------------------------------------
# Pallas kernels
# --------------------------------------------------------------------------
def _conv_relu_kernel(w_ref, p_ref, o_ref):
    """(Cout, K) @ (K, M) conv-as-matmul + fused ReLU for one batch element.

    bf16 operands on the MXU, f32 accumulation, lane-dense bf16 store (full M on lanes).
    """
    acc = jnp.dot(w_ref[...], p_ref[0], preferred_element_type=jnp.float32)   # (Cout, M)
    o_ref[0] = jnp.maximum(acc, 0.0).astype(o_ref.dtype)


def _fused_tail_kernel(p3_ref, w3_ref, w4s_ref, g4_ref, sew1_ref, sew2_ref,
                       pool4_ref, exp4_ref, w5s_ref, g5_ref, pool5_ref,
                       scale_ref, shift_ref, wc_ref, bc_ref,
                       f3_ref, se4_ref, f5_ref, logit_ref):
    """Stages 3-5 + SEModule + avgpool + BN(eval) + Dropout(eval) + classifier, one launch.

    Batch lives on the lane axis everywhere (columns ordered b*M + m), so the big
    stores are lane-dense and the SE/head matmuls are batched over all B at once.
    Stage-4/5 stride-2 convs use the tap-gather identity  conv = sum_t (w_t @ x) @ G_t
    with constant 0/1 gather matrices -> no im2col patches are materialized.
    """
    c4 = se4_ref.shape[0]
    c5 = f5_ref.shape[0]

    # ---- Stage 3: conv-as-matmul on pre-built patches (K3, B*M3). ----
    f3 = jnp.maximum(
        jnp.dot(w3_ref[...], p3_ref[...], preferred_element_type=jnp.float32), 0.0)
    f3_ref[...] = f3.astype(f3_ref.dtype)                                    # (C3, B*M3)

    # ---- Stage 4: 3x3 / stride-2 conv via 9 tap-gather matmuls (in-kernel im2col). ----
    y4 = jnp.dot(w4s_ref[...], f3, preferred_element_type=jnp.float32)       # (9*C4, B*M3)
    raw4 = sum(jnp.dot(y4[t * c4:(t + 1) * c4, :], g4_ref[t],
                       preferred_element_type=jnp.float32) for t in range(9))
    raw4 = jnp.maximum(raw4, 0.0)                                            # (C4, B*M4)

    # ---- SEModule: avgpool -> Linear -> ReLU -> Linear -> Sigmoid -> scale.
    # All B batch elements are handled as columns of one matmul (no 1-column MXU ops).
    pooled4 = jnp.dot(raw4, pool4_ref[...], preferred_element_type=jnp.float32)   # (C4, B)
    h = jnp.maximum(jnp.dot(sew1_ref[...], pooled4,
                            preferred_element_type=jnp.float32), 0.0)             # (C4//r, B)
    s = jax.nn.sigmoid(jnp.dot(sew2_ref[...], h,
                               preferred_element_type=jnp.float32))               # (C4, B)
    s_exp = jnp.dot(s, exp4_ref[...], preferred_element_type=jnp.float32)         # (C4, B*M4)
    se4_ref[...] = (raw4 * s_exp).astype(se4_ref.dtype)

    # ---- Stage 5 (consumes raw4: in the PyTorch forward the SE output only
    #      replaces features[3]; the backbone chain itself is un-scaled). ----
    y5 = jnp.dot(w5s_ref[...], raw4, preferred_element_type=jnp.float32)     # (9*C5, B*M4)
    f5 = sum(jnp.dot(y5[t * c5:(t + 1) * c5, :], g5_ref[t],
                     preferred_element_type=jnp.float32) for t in range(9))
    f5 = jnp.maximum(f5, 0.0)                                                # (C5, B*M5)
    f5_ref[...] = f5.astype(f5_ref.dtype)

    # ---- Head: avgpool -> BatchNorm2d(eval, folded to scale/shift on host; the
    # PyTorch order is avgpool THEN bn, and eval BN is a per-channel affine, so
    # applying it to the pooled vector is exact) -> Dropout(eval identity) -> Linear.
    pooled5 = jnp.dot(f5, pool5_ref[...], preferred_element_type=jnp.float32)     # (C5, B)
    xn = pooled5 * scale_ref[...] + shift_ref[...]
    logit_ref[...] = (jnp.dot(wc_ref[...], xn, preferred_element_type=jnp.float32)
                      + bc_ref[...])                                              # (ncls, B)


# --------------------------------------------------------------------------
# Host-side helpers
# --------------------------------------------------------------------------
def _compiler_params(semantics):
    return pltpu.CompilerParams(dimension_semantics=semantics,
                                vmem_limit_bytes=VMEM_LIMIT)
    # TODO(synk): on v7x, pltpu.CORE_PARALLEL / pl.core_map could shard the batch
    # grid over the 2 TensorCores; kept to plain "parallel" for portability.


def _im2col(x, w):
    """Stride-2 XLA-SAME 3x3 patches in NCHW-flat (B, Cin*9, Ho*Wo) layout (no transpose)."""
    b = x.shape[0]
    cout = w.shape[0]
    patches = lax.conv_general_dilated_patches(
        x, filter_shape=(3, 3), window_strides=(2, 2), padding="SAME",
        dimension_numbers=("NCHW", "OIHW", "NCHW"))            # (B, Cin*9, Ho, Wo)
    _, k, ho, wo = patches.shape
    patches = patches.reshape(b, k, ho * wo).astype(jnp.bfloat16)
    w2d = w.reshape(cout, k).astype(jnp.bfloat16)              # channel-major, matches patches
    return patches, w2d, ho, wo


def conv3x3_s2_relu(x, w):
    """Backbone stand-in stage: stride-2 SAME 3x3 conv + ReLU, full-M lane-dense blocks."""
    b = x.shape[0]
    cout = w.shape[0]
    patches, w2d, ho, wo = _im2col(x, w)
    k = patches.shape[1]
    m = ho * wo
    out = pl.pallas_call(
        _conv_relu_kernel,
        out_shape=jax.ShapeDtypeStruct((b, cout, m), jnp.bfloat16),
        grid=(b,),
        in_specs=[pl.BlockSpec((cout, k), lambda i: (0, 0)),        # weight-stationary
                  pl.BlockSpec((1, k, m), lambda i: (i, 0, 0))],    # full-M tile, pipelined over batch
        out_specs=pl.BlockSpec((1, cout, m), lambda i: (i, 0, 0)),  # lane-dense stores
        compiler_params=_compiler_params(("parallel",)),
    )(w2d, patches)
    return out.reshape(b, cout, ho, wo)


def _tap_gather(batch, hi, wi):
    """G[t, b*Mi+p, b*Mo+m] = 1 iff input pixel p is tap t of output pixel m for a
    3x3 / stride-2 / XLA-SAME conv (pad_low=0, pad_high=1 on even dims).  Built with
    numpy at trace time -> compile-time constant."""
    ho, wo = hi // 2, wi // 2
    mi, mo = hi * wi, ho * wo
    g = np.zeros((9, batch * mi, batch * mo), np.float32)
    for t in range(9):
        dh, dw = divmod(t, 3)
        for oh in range(ho):
            ih = 2 * oh + dh
            if ih >= hi:
                continue
            for ow in range(wo):
                iw = 2 * ow + dw
                if iw >= wi:
                    continue
                for b in range(batch):
                    g[t, b * mi + ih * wi + iw, b * mo + oh * wo + ow] = 1.0
    return jnp.asarray(g)


def _pool_mat(batch, m):
    """(B*M, B) block matrix averaging the M spatial columns of each batch element."""
    pm = np.zeros((batch * m, batch), np.float32)
    for b in range(batch):
        pm[b * m:(b + 1) * m, b] = 1.0 / m
    return jnp.asarray(pm)


def _expand_mat(batch, m):
    """(B, B*M) block matrix broadcasting one per-batch scalar over its M spatial columns."""
    em = np.zeros((batch, batch * m), np.float32)
    for b in range(batch):
        em[b, b * m:(b + 1) * m] = 1.0
    return jnp.asarray(em)


def _stack_taps(w):
    """(Cout, Cin, 3, 3) -> (9*Cout, Cin) with rows ordered (tap, cout)."""
    cout, cin = w.shape[0], w.shape[1]
    return jnp.transpose(w.reshape(cout, cin, 9), (2, 0, 1)).reshape(9 * cout, cin)


def fused_stage3_to_head(f2, w3, w4, w5, se_w1, se_w2,
                         gamma, beta, rmean, rvar, wc, bc):
    """Stages 3-5 of the stand-in backbone + SEModule + avgpool/BN/Dropout/classifier
    in a single pallas_call.  Batch is folded into the lane axis (columns b*M + m)."""
    b, _, h2, w2sp = f2.shape
    c3, c4, c5 = w3.shape[0], w4.shape[0], w5.shape[0]
    ncls = wc.shape[0]
    h3, w3sp = h2 // 2, w2sp // 2
    h4, w4sp = h3 // 2, w3sp // 2
    h5, w5sp = h4 // 2, w4sp // 2
    m3, m4, m5 = h3 * w3sp, h4 * w4sp, h5 * w5sp

    # Stage-3 patches (tiny host im2col of f2), transposed so batch lives on lanes.
    patches3 = lax.conv_general_dilated_patches(
        f2, filter_shape=(3, 3), window_strides=(2, 2), padding="SAME",
        dimension_numbers=("NCHW", "OIHW", "NCHW"))                  # (B, C2*9, H3, W3)
    k3 = patches3.shape[1]
    patches3 = patches3.reshape(b, k3, m3).transpose(1, 0, 2).reshape(k3, b * m3)
    patches3 = patches3.astype(jnp.bfloat16)
    w3_2d = w3.reshape(c3, k3).astype(jnp.bfloat16)

    # Stage-4/5 weights in per-tap stacked form; gather / pool / broadcast matrices
    # are weight-independent 0/1 constants (compile-time).
    w4s = _stack_taps(w4)                       # (9*C4, C3)
    w5s = _stack_taps(w5)                       # (9*C5, C4)
    g4 = _tap_gather(b, h3, w3sp)               # (9, B*M3, B*M4)
    g5 = _tap_gather(b, h4, w4sp)               # (9, B*M4, B*M5)
    pool4 = _pool_mat(b, m4)                    # (B*M4, B)
    exp4 = _expand_mat(b, m4)                   # (B, B*M4)
    pool5 = _pool_mat(b, m5)                    # (B*M5, B)

    # BatchNorm2d(eval) folded to per-channel scale/shift on host.
    inv = lax.rsqrt(rvar + BN_EPS)
    scale = (gamma * inv).reshape(c5, 1)
    shift = (beta - rmean * gamma * inv).reshape(c5, 1)

    full2d = lambda shp: pl.BlockSpec(shp, lambda i: (0, 0))
    full3d = lambda shp: pl.BlockSpec(shp, lambda i: (0, 0, 0))

    f3c, se4c, f5c, logits_c = pl.pallas_call(
        _fused_tail_kernel,
        out_shape=(jax.ShapeDtypeStruct((c3, b * m3), jnp.bfloat16),
                   jax.ShapeDtypeStruct((c4, b * m4), jnp.bfloat16),
                   jax.ShapeDtypeStruct((c5, b * m5), jnp.bfloat16),
                   jax.ShapeDtypeStruct((ncls, b), jnp.float32)),
        grid=(1,),
        in_specs=[full2d((k3, b * m3)),
                  full2d((c3, k3)),
                  full2d((9 * c4, c3)),
                  full3d((9, b * m3, b * m4)),
                  full2d((se_w1.shape[0], c4)),
                  full2d((c4, se_w1.shape[0])),
                  full2d((b * m4, b)),
                  full2d((b, b * m4)),
                  full2d((9 * c5, c4)),
                  full3d((9, b * m4, b * m5)),
                  full2d((b * m5, b)),
                  full2d((c5, 1)),
                  full2d((c5, 1)),
                  full2d((ncls, c5)),
                  full2d((ncls, 1))],
        out_specs=(full2d((c3, b * m3)),
                   full2d((c4, b * m4)),
                   full2d((c5, b * m5)),
                   full2d((ncls, b))),
        compiler_params=_compiler_params(("arbitrary",)),
    )(patches3, w3_2d, w4s, g4, se_w1, se_w2, pool4, exp4, w5s, g5, pool5,
      scale, shift, wc, bc.reshape(ncls, 1))

    # Un-fold batch from the lane axis back to NCHW (tiny host reshapes/transposes).
    f3 = f3c.reshape(c3, b, h3, w3sp).transpose(1, 0, 2, 3)
    se4 = se4c.reshape(c4, b, h4, w4sp).transpose(1, 0, 2, 3)
    f5 = f5c.reshape(c5, b, h5, w5sp).transpose(1, 0, 2, 3)
    logits = logits_c.T                                          # (B, ncls)
    return f3, se4, f5, logits


# --------------------------------------------------------------------------
# Deterministic parameter init (shapes implied by the module __init__)
# --------------------------------------------------------------------------
def init_params(key, in_ch=3, num_classes=NUM_CLASSES, reduction=16):
    ks = jax.random.split(key, 12)
    params = {}
    convs = []
    c_prev = in_ch
    for i, c in enumerate(STAGE_CHANNELS):
        convs.append(0.1 * jax.random.normal(ks[i], (c, c_prev, 3, 3), jnp.float32))
        c_prev = c
    params["backbone"] = convs

    c3 = STAGE_CHANNELS[3]                  # feature_info.channels()[3]
    cl = STAGE_CHANNELS[-1]                 # feature_info.channels()[-1]
    cr = max(c3 // reduction, 1)
    params["se_w1"] = 0.2 * jax.random.normal(ks[5], (cr, c3), jnp.float32)   # Linear(C, C//r, bias=False)
    params["se_w2"] = 0.2 * jax.random.normal(ks[6], (c3, cr), jnp.float32)   # Linear(C//r, C, bias=False)
    params["bn_gamma"] = 1.0 + 0.1 * jax.random.normal(ks[7], (cl,), jnp.float32)
    params["bn_beta"] = 0.1 * jax.random.normal(ks[8], (cl,), jnp.float32)
    params["bn_mean"] = 0.1 * jax.random.normal(ks[9], (cl,), jnp.float32)
    params["bn_var"] = 0.5 + jnp.abs(jax.random.normal(ks[10], (cl,), jnp.float32))
    params["cls_w"] = 0.1 * jax.random.normal(ks[11], (num_classes, cl), jnp.float32)
    params["cls_b"] = jnp.zeros((num_classes,), jnp.float32)
    return params


# --------------------------------------------------------------------------
# Full forward (mirrors EfficientNetB4_Attention.forward; also returns features)
# --------------------------------------------------------------------------
def efficientnet_b4_attention_forward(params, x):
    # Backbone activations run in bf16 (MXU-native, halves DMA); accumulation stays f32.
    # NOTE: features are bf16 (vs f32 in a PyTorch reference) -> ~1e-2 relative diffs.
    h = x.astype(jnp.bfloat16)
    features = []
    for w in params["backbone"][:2]:
        h = conv3x3_s2_relu(h, w)
        features.append(h)
    # Stages 3-5, SEModule, avgpool, BN(eval), Dropout(eval) and classifier: one kernel.
    f3, se4, f5, logits = fused_stage3_to_head(
        h, params["backbone"][2], params["backbone"][3], params["backbone"][4],
        params["se_w1"], params["se_w2"],
        params["bn_gamma"], params["bn_beta"], params["bn_mean"], params["bn_var"],
        params["cls_w"], params["cls_b"])
    features.extend([f3, se4, f5])
    return logits, features


if __name__ == "__main__":
    key = jax.random.PRNGKey(0)
    pkey, xkey = jax.random.split(key)
    params = init_params(pkey)
    x = jax.random.normal(xkey, (2, 3, 64, 64), jnp.float32)   # NCHW, like PyTorch
    fwd = jax.jit(efficientnet_b4_attention_forward)
    logits, feats = fwd(params, x)
    jax.block_until_ready(logits)
    jax.block_until_ready(feats)
    assert logits.shape == (2, NUM_CLASSES)
    assert logits.dtype == jnp.float32
    assert feats[2].shape == (2, STAGE_CHANNELS[2], 8, 8)
    assert feats[3].shape == (2, STAGE_CHANNELS[3], 4, 4)
    assert feats[4].shape == (2, STAGE_CHANNELS[4], 2, 2)
    print("KERNEL_OK")
</pallas_src>

<mosaic_0001>
module attributes {stable_mosaic.version = 11 : i64} {
  func.func @_conv_relu_kernel(%arg0: i32, %arg1: memref<8x27xbf16, #tpu.memory_space<vmem>>, %arg2: memref<1x27x1024xbf16, #tpu.memory_space<vmem>>, %arg3: memref<1x8x1024xbf16, #tpu.memory_space<vmem>>) attributes {dimension_semantics = [#tpu.dimension_semantics<parallel>], iteration_bounds = array<i64: 2>, scalar_prefetch = 0 : i64, scratch_operands = 0 : i64, tpu.core_type = #tpu.core_type<tc>, window_params = [{pipeline_mode = #tpu.pipeline_mode<synchronous>, transform_indices = @transform_0, window_bounds = array<i64: 8, 27>}, {transform_indices = @transform_1, window_bounds = array<i64: 1, 27, 1024>}, {transform_indices = @transform_2, window_bounds = array<i64: 1, 8, 1024>}]} {
    %c0 = arith.constant 0 : index
    %c0_0 = arith.constant 0 : index
    %0 = vector.load %arg1[%c0, %c0_0] : memref<8x27xbf16, #tpu.memory_space<vmem>>, vector<8x27xbf16>
    %c0_1 = arith.constant 0 : index
    %c0_2 = arith.constant 0 : index
    %c0_3 = arith.constant 0 : index
    %1 = vector.load %arg2[%c0_1, %c0_2, %c0_3] : memref<1x27x1024xbf16, #tpu.memory_space<vmem>>, vector<1x27x1024xbf16>
    %2 = vector.shape_cast %1 : vector<1x27x1024xbf16> to vector<27x1024xbf16>
    %cst = arith.constant dense<0.000000e+00> : vector<8x1024xf32>
    %3 = tpu.matmul %0, %2, %cst {dimension_numbers = #tpu.dot_dimension_numbers<[1], [0], [0], [1], [0, 0, 1, 1], [], []>} : vector<8x27xbf16>, vector<27x1024xbf16>, vector<8x1024xf32> -> vector<8x1024xf32>
    %cst_4 = arith.constant 0.000000e+00 : f32
    %4 = vector.broadcast %cst_4 : f32 to vector<8x1024xf32>
    %5 = arith.maximumf %3, %4 : vector<8x1024xf32>
    %6 = arith.truncf %5 : vector<8x1024xf32> to vector<8x1024xbf16>
    %c0_5 = arith.constant 0 : index
    %c0_6 = arith.constant 0 : index
    %c0_7 = arith.constant 0 : index
    %7 = vector.load %arg3[%c0_5, %c0_6, %c0_7] : memref<1x8x1024xbf16, #tpu.memory_space<vmem>>, vector<1x8x1024xbf16>
    %8 = vector.shape_cast %7 : vector<1x8x1024xbf16> to vector<8x1024xbf16>
    %9 = vector.shape_cast %6 : vector<8x1024xbf16> to vector<1x8x1024xbf16>
    tpu.vector_store %arg3[%c0_5, %c0_6, %c0_7], %9 {strides = array<i32>} : memref<1x8x1024xbf16, #tpu.memory_space<vmem>>, vector<1x8x1024xbf16>,
    return
  }
  func.func @transform_0(%arg0: i32) -> (i32, i32) {
    %c0_i32 = arith.constant 0 : i32
    %c0_i32_0 = arith.constant 0 : i32
    %c0_i32_1 = arith.constant 0 : i32
    return %c0_i32, %c0_i32_0 : i32, i32
  }
  func.func @transform_1(%arg0: i32) -> (i32, i32, i32) {
    %c0_i32 = arith.constant 0 : i32
    %c0_i32_0 = arith.constant 0 : i32
    %c0_i32_1 = arith.constant 0 : i32
    return %arg0, %c0_i32, %c0_i32_0 : i32, i32, i32
  }
  func.func @transform_2(%arg0: i32) -> (i32, i32, i32) {
    %c0_i32 = arith.constant 0 : i32
    %c0_i32_0 = arith.constant 0 : i32
    %c0_i32_1 = arith.constant 0 : i32
    return %arg0, %c0_i32, %c0_i32_0 : i32, i32, i32
  }
}

module attributes {stable_mosaic.version = 11 : i64} {
  func.func @_conv_relu_kernel(%arg0: i32, %arg1: memref<16x72xbf16, #tpu.memory_space<vmem>>, %arg2: memref<1x72x256xbf16, #tpu.memory_space<vmem>>, %arg3: memref<1x16x256xbf16, #tpu.memory_space<vmem>>) attributes {dimension_semantics = [#tpu.dimension_semantics<parallel>], iteration_bounds = array<i64: 2>, scalar_prefetch = 0 : i64, scratch_operands = 0 : i64, tpu.core_type = #tpu.core_type<tc>, window_params = [{pipeline_mode = #tpu.pipeline_mode<synchronous>, transform_indices = @transform_0, window_bounds = array<i64: 16, 72>}, {transform_indices = @transform_1, window_bounds = array<i64: 1, 72, 256>}, {transform_indices = @transform_2, window_bounds = array<i64: 1, 16, 256>}]} {
    %c0 = arith.constant 0 : index
    %c0_0 = arith.constant 0 : index
    %0 = vector.load %arg1[%c0, %c0_0] : memref<16x72xbf16, #tpu.memory_space<vmem>>, vector<16x72xbf16>
    %c0_1 = arith.constant 0 : index
    %c0_2 = arith.constant 0 : index
    %c0_3 = arith.constant 0 : index
    %1 = vector.load %arg2[%c0_1, %c0_2, %c0_3] : memref<1x72x256xbf16, #tpu.memory_space<vmem>>, vector<1x72x256xbf16>
    %2 = vector.shape_cast %1 : vector<1x72x256xbf16> to vector<72x256xbf16>
    %cst = arith.constant dense<0.000000e+00> : vector<16x256xf32>
    %3 = tpu.matmul %0, %2, %cst {dimension_numbers = #tpu.dot_dimension_numbers<[1], [0], [0], [1], [0, 0, 1, 1], [], []>} : vector<16x72xbf16>, vector<72x256xbf16>, vector<16x256xf32> -> vector<16x256xf32>
    %cst_4 = arith.constant 0.000000e+00 : f32
    %4 = vector.broadcast %cst_4 : f32 to vector<16x256xf32>
    %5 = arith.maximumf %3, %4 : vector<16x256xf32>
    %6 = arith.truncf %5 : vector<16x256xf32> to vector<16x256xbf16>
    %c0_5 = arith.constant 0 : index
    %c0_6 = arith.constant 0 : index
    %c0_7 = arith.constant 0 : index
    %7 = vector.load %arg3[%c0_5, %c0_6, %c0_7] : memref<1x16x256xbf16, #tpu.memory_space<vmem>>, vector<1x16x256xbf16>
    %8 = vector.shape_cast %7 : vector<1x16x256xbf16> to vector<16x256xbf16>
    %9 = vector.shape_cast %6 : vector<16x256xbf16> to vector<1x16x256xbf16>
    tpu.vector_store %arg3[%c0_5, %c0_6, %c0_7], %9 {strides = array<i32>} : memref<1x16x256xbf16, #tpu.memory_space<vmem>>, vector<1x16x256xbf16>,
    return
  }
  func.func @transform_0(%arg0: i32) -> (i32, i32) {
    %c0_i32 = arith.constant 0 : i32
    %c0_i32_0 = arith.constant 0 : i32
    %c0_i32_1 = arith.constant 0 : i32
    return %c0_i32, %c0_i32_0 : i32, i32
  }
  func.func @transform_1(%arg0: i32) -> (i32, i32, i32) {
    %c0_i32 = arith.constant 0 : i32
    %c0_i32_0 = arith.constant 0 : i32
    %c0_i32_1 = arith.constant 0 : i32
    return %arg0, %c0_i32, %c0_i32_0 : i32, i32, i32
  }
  func.func @transform_2(%arg0: i32) -> (i32, i32, i32) {
    %c0_i32 = arith.constant 0 : i32
    %c0_i32_0 = arith.constant 0 : i32
    %c0_i32_1 = arith.constant 0 : i32
    return %arg0, %c0_i32, %c0_i32_0 : i32, i32, i32
  }
}

module attributes {stable_mosaic.version = 11 : i64} {
  func.func @_fused_tail_kernel(%arg0: i32, %arg1: memref<144x128xbf16, #tpu.memory_space<vmem>>, %arg2: memref<24x144xbf16, #tpu.memory_space<vmem>>, %arg3: memref<288x24xf32, #tpu.memory_space<vmem>>, %arg4: memref<9x128x32xf32, #tpu.memory_space<vmem>>, %arg5: memref<2x32xf32, #tpu.memory_space<vmem>>, %arg6: memref<32x2xf32, #tpu.memory_space<vmem>>, %arg7: memref<32x2xf32, #tpu.memory_space<vmem>>, %arg8: memref<2x32xf32, #tpu.memory_space<vmem>>, %arg9: memref<432x32xf32, #tpu.memory_space<vmem>>, %arg10: memref<9x32x8xf32, #tpu.memory_space<vmem>>, %arg11: memref<8x2xf32, #tpu.memory_space<vmem>>, %arg12: memref<48x1xf32, #tpu.memory_space<vmem>>, %arg13: memref<48x1xf32, #tpu.memory_space<vmem>>, %arg14: memref<10x48xf32, #tpu.memory_space<vmem>>, %arg15: memref<10x1xf32, #tpu.memory_space<vmem>>, %arg16: memref<24x128xbf16, #tpu.memory_space<vmem>>, %arg17: memref<32x32xbf16, #tpu.memory_space<vmem>>, %arg18: memref<48x8xbf16, #tpu.memory_space<vmem>>, %arg19: memref<10x2xf32, #tpu.memory_space<vmem>>) attributes {dimension_semantics = [#tpu.dimension_semantics<arbitrary>], iteration_bounds = array<i64: 1>, scalar_prefetch = 0 : i64, scratch_operands = 0 : i64, tpu.core_type = #tpu.core_type<tc>, window_params = [{pipeline_mode = #tpu.pipeline_mode<synchronous>, transform_indices = @transform_0, window_bounds = array<i64: 144, 128>}, {pipeline_mode = #tpu.pipeline_mode<synchronous>, transform_indices = @transform_1, window_bounds = array<i64: 24, 144>}, {pipeline_mode = #tpu.pipeline_mode<synchronous>, transform_indices = @transform_2, window_bounds = array<i64: 288, 24>}, {pipeline_mode = #tpu.pipeline_mode<synchronous>, transform_indices = @transform_3, window_bounds = array<i64: 9, 128, 32>}, {pipeline_mode = #tpu.pipeline_mode<synchronous>, transform_indices = @transform_4, window_bounds = array<i64: 2, 32>}, {pipeline_mode = #tpu.pipeline_mode<synchronous>, transform_indices = @transform_5, window_bounds = array<i64: 32, 2>}, {pipeline_mode = #tpu.pipeline_mode<synchronous>, transform_indices = @transform_6, window_bounds = array<i64: 32, 2>}, {pipeline_mode = #tpu.pipeline_mode<synchronous>, transform_indices = @transform_7, window_bounds = array<i64: 2, 32>}, {pipeline_mode = #tpu.pipeline_mode<synchronous>, transform_indices = @transform_8, window_bounds = array<i64: 432, 32>}, {pipeline_mode = #tpu.pipeline_mode<synchronous>, transform_indices = @transform_9, window_bounds = array<i64: 9, 32, 8>}, {pipeline_mode = #tpu.pipeline_mode<synchronous>, transform_indices = @transform_10, window_bounds = array<i64: 8, 2>}, {pipeline_mode = #tpu.pipeline_mode<synchronous>, transform_indices = @transform_11, window_bounds = array<i64: 48, 1>}, {pipeline_mode = #tpu.pipeline_mode<synchronous>, transform_indices = @transform_12, window_bounds = array<i64: 48, 1>}, {pipeline_mode = #tpu.pipeline_mode<synchronous>, transform_indices = @transform_13, window_bounds = array<i64: 10, 48>}, {pipeline_mode = #tpu.pipeline_mode<synchronous>, transform_indices = @transform_14, window_bounds = array<i64: 10, 1>}, {pipeline_mode = #tpu.pipeline_mode<synchronous>, transform_indices = @transform_15, window_bounds = array<i64: 24, 128>}, {pipeline_mode = #tpu.pipeline_mode<synchronous>, transform_indices = @transform_16, window_bounds = array<i64: 32, 32>}, {pipeline_mode = #tpu.pipeline_mode<synchronous>, transform_indices = @transform_17, window_bounds = array<i64: 48, 8>}, {pipeline_mode = #tpu.pipeline_mode<synchronous>, transform_indices = @transform_18, window_bounds = array<i64: 10, 2>}]} {
    %c0 = arith.constant 0 : index
    %c0_0 = arith.constant 0 : index
    %0 = vector.load %arg2[%c0, %c0_0] : memref<24x144xbf16, #tpu.memory_space<vmem>>, vector<24x144xbf16>
    %c0_1 = arith.constant 0 : index
    %c0_2 = arith.constant 0 : index
    %1 = vector.load %arg1[%c0_1, %c0_2] : memref<144x128xbf16, #tpu.memory_space<vmem>>, vector<144x128xbf16>
    %cst = arith.constant dense<0.000000e+00> : vector<24x128xf32>
    %2 = tpu.matmul %0, %1, %cst {dimension_numbers = #tpu.dot_dimension_numbers<[1], [0], [0], [1], [0, 0, 1, 1], [], []>} : vector<24x144xbf16>, vector<144x128xbf16>, vector<24x128xf32> -> vector<24x128xf32>
    %cst_3 = arith.constant 0.000000e+00 : f32
    %3 = vector.broadcast %cst_3 : f32 to vector<24x128xf32>
    %4 = arith.maximumf %2, %3 : vector<24x128xf32>
    %5 = arith.truncf %4 : vector<24x128xf32> to vector<24x128xbf16>
    %c0_4 = arith.constant 0 : index
    %c0_5 = arith.constant 0 : index
    %6 = vector.load %arg16[%c0_4, %c0_5] : memref<24x128xbf16, #tpu.memory_space<vmem>>, vector<24x128xbf16>
    tpu.vector_store %arg16[%c0_4, %c0_5], %5 {strides = array<i32>} : memref<24x128xbf16, #tpu.memory_space<vmem>>, vector<24x128xbf16>,
    %c0_6 = arith.constant 0 : index
    %c0_7 = arith.constant 0 : index
    %7 = vector.load %arg3[%c0_6, %c0_7] : memref<288x24xf32, #tpu.memory_space<vmem>>, vector<288x24xf32>
    %cst_8 = arith.constant dense<0.000000e+00> : vector<288x128xf32>
    %8 = tpu.matmul %7, %4, %cst_8 {dimension_numbers = #tpu.dot_dimension_numbers<[1], [0], [0], [1], [0, 0, 1, 1], [], []>} : vector<288x24xf32>, vector<24x128xf32>, vector<288x128xf32> -> vector<288x128xf32>
    %9 = vector.extract_strided_slice %8 {offsets = [0, 0], sizes = [32, 128], strides = [1, 1]} : vector<288x128xf32> to vector<32x128xf32>
    %c0_9 = arith.constant 0 : index
    %c0_10 = arith.constant 0 : index
    %c0_11 = arith.constant 0 : index
    %10 = vector.load %arg4[%c0_9, %c0_10, %c0_11] : memref<9x128x32xf32, #tpu.memory_space<vmem>>, vector<1x128x32xf32>
    %11 = vector.shape_cast %10 : vector<1x128x32xf32> to vector<128x32xf32>
    %cst_12 = arith.constant dense<0.000000e+00> : vector<32x32xf32>
    %12 = tpu.matmul %9, %11, %cst_12 {dimension_numbers = #tpu.dot_dimension_numbers<[1], [0], [0], [1], [0, 0, 1, 1], [], []>} : vector<32x128xf32>, vector<128x32xf32>, vector<32x32xf32> -> vector<32x32xf32>
    %cst_13 = arith.constant 0.000000e+00 : f32
    %13 = vector.broadcast %cst_13 : f32 to vector<32x32xf32>
    %14 = arith.addf %13, %12 : vector<32x32xf32>
    %15 = vector.extract_strided_slice %8 {offsets = [32, 0], sizes = [32, 128], strides = [1, 1]} : vector<288x128xf32> to vector<32x128xf32>
    %c1 = arith.constant 1 : index
    %c0_14 = arith.constant 0 : index
    %c0_15 = arith.constant 0 : index
    %16 = vector.load %arg4[%c1, %c0_14, %c0_15] : memref<9x128x32xf32, #tpu.memory_space<vmem>>, vector<1x128x32xf32>
    %17 = vector.shape_cast %16 : vector<1x128x32xf32> to vector<128x32xf32>
    %cst_16 = arith.constant dense<0.000000e+00> : vector<32x32xf32>
    %18 = tpu.matmul %15, %17, %cst_16 {dimension_numbers = #tpu.dot_dimension_numbers<[1], [0], [0], [1], [0, 0, 1, 1], [], []>} : vector<32x128xf32>, vector<128x32xf32>, vector<32x32xf32> -> vector<32x32xf32>
    %19 = arith.addf %14, %18 : vector<32x32xf32>
    %20 = vector.extract_strided_slice %8 {offsets = [64, 0], sizes = [32, 128], strides = [1, 1]} : vector<288x128xf32> to vector<32x128xf32>
    %c2 = arith.constant 2 : index
    %c0_17 = arith.constant 0 : index
    %c0_18 = arith.constant 0 : index
    %21 = vector.load %arg4[%c2, %c0_17, %c0_18] : memref<9x128x32xf32, #tpu.memory_space<vmem>>, vector<1x128x32xf32>
    %22 = vector.shape_cast %21 : vector<1x128x32xf32> to vector<128x32xf32>
    %cst_19 = arith.constant dense<0.000000e+00> : vector<32x32xf32>
    %23 = tpu.matmul %20, %22, %cst_19 {dimension_numbers = #tpu.dot_dimension_numbers<[1], [0], [0], [1], [0, 0, 1, 1], [], []>} : vector<32x128xf32>, vector<128x32xf32>, vector<32x32xf32> -> vector<32x32xf32>
    %24 = arith.addf %19, %23 : vector<32x32xf32>
    %25 = vector.extract_strided_slice %8 {offsets = [96, 0], sizes = [32, 128], strides = [1, 1]} : vector<288x128xf32> to vector<32x128xf32>
    %c3 = arith.constant 3 : index
    %c0_20 = arith.constant 0 : index
    %c0_21 = arith.constant 0 : index
    %26 = vector.load %arg4[%c3, %c0_20, %c0_21] : memref<9x128x32xf32, #tpu.memory_space<vmem>>, vector<1x128x32xf32>
    %27 = vector.shape_cast %26 : vector<1x128x32xf32> to vector<128x32xf32>
    %cst_22 = arith.constant dense<0.000000e+00> : vector<32x32xf32>
    %28 = tpu.matmul %25, %27, %cst_22 {dimension_numbers = #tpu.dot_dimension_numbers<[1], [0], [0], [1], [0, 0, 1, 1], [], []>} : vector<32x128xf32>, vector<128x32xf32>, vector<32x32xf32> -> vector<32x32xf32>
    %29 = arith.addf %24, %28 : vector<32x32xf32>
    %30 = vector.extract_strided_slice %8 {offsets = [128, 0], sizes = [32, 128], strides = [1, 1]} : vector<288x128xf32> to vector<32x128xf32>
    %c4 = arith.constant 4 : index
    %c0_23 = arith.constant 0 : index
    %c0_24 = arith.constant 0 : index
    %31 = vector.load %arg4[%c4, %c0_23, %c0_24] : memref<9x128x32xf32, #tpu.memory_space<vmem>>, vector<1x128x32xf32>
    %32 = vector.shape_cast %31 : vector<1x128x32xf32> to vector<128x32xf32>
    %cst_25 = arith.constant dense<0.000000e+00> : vector<32x32xf32>
    %33 = tpu.matmul %30, %32, %cst_25 {dimension_numbers = #tpu.dot_dimension_numbers<[1], [0], [0], [1], [0, 0, 1, 1], [], []>} : vector<32x128xf32>, vector<128x32xf32>, vector<32x32xf32> -> vector<32x32xf32>
    %34 = arith.addf %29, %33 : vector<32x32xf32>
    %35 = vector.extract_strided_slice %8 {offsets = [160, 0], sizes = [32, 128], strides = [1, 1]} : vector<288x128xf32> to vector<32x128xf32>
    %c5 = arith.constant 5 : index
    %c0_26 = arith.constant 0 : index
    %c0_27 = arith.constant 0 : index
    %36 = vector.load %arg4[%c5, %c0_26, %c0_27] : memref<9x128x32xf32, #tpu.memory_space<vmem>>, vector<1x128x32xf32>
    %37 = vector.shape_cast %36 : vector<1x128x32xf32> to vector<128x32xf32>
    %cst_28 = arith.constant dense<0.000000e+00> : vector<32x32xf32>
    %38 = tpu.matmul %35, %37, %cst_28 {dimension_numbers = #tpu.dot_dimension_numbers<[1], [0], [0], [1], [0, 0, 1, 1], [], []>} : vector<32x128xf32>, vector<128x32xf32>, vector<32x32xf32> -> vector<32x32xf32>
    %39 = arith.addf %34, %38 : vector<32x32xf32>
    %40 = vector.extract_strided_slice %8 {offsets = [192, 0], sizes = [32, 128], strides = [1, 1]} : vector<288x128xf32> to vector<32x128xf32>
    %c6 = arith.constant 6 : index
    %c0_29 = arith.constant 0 : index
    %c0_30 = arith.constant 0 : index
    %41 = vector.load %arg4[%c6, %c0_29, %c0_30] : memref<9x128x32xf32, #tpu.memory_space<vmem>>, vector<1x128x32xf32>
    %42 = vector.shape_cast %41 : vector<1x128x32xf32> to vector<128x32xf32>
    %cst_31 = arith.constant dense<0.000000e+00> : vector<32x32xf32>
    %43 = tpu.matmul %40, %42, %cst_31 {dimension_numbers = #tpu.dot_dimension_numbers<[1], [0], [0], [1], [0, 0, 1, 1], [], []>} : vector<32x128xf32>, vector<128x32xf32>, vector<32x32xf32> -> vector<32x32xf32>
    %44 = arith.addf %39, %43 : vector<32x32xf32>
    %45 = vector.extract_strided_slice %8 {offsets = [224, 0], sizes = [32, 128], strides = [1, 1]} : vector<288x128xf32> to vector<32x128xf32>
    %c7 = arith.constant 7 : index
    %c0_32 = arith.constant 0 : index
    %c0_33 = arith.constant 0 : index
    %46 = vector.load %arg4[%c7, %c0_32, %c0_33] : memref<9x128x32xf32, #tpu.memory_space<vmem>>, vector<1x128x32xf32>
    %47 = vector.shape_cast %46 : vector<1x128x32xf32> to vector<128x32xf32>
    %cst_34 = arith.constant dense<0.000000e+00> : vector<32x32xf32>
    %48 = tpu.matmul %45, %47, %cst_34 {dimension_numbers = #tpu.dot_dimension_numbers<[1], [0], [0], [1], [0, 0, 1, 1], [], []>} : vector<32x128xf32>, vector<128x32xf32>, vector<32x32xf32> -> vector<32x32xf32>
    %49 = arith.addf %44, %48 : vector<32x32xf32>
    %50 = vector.extract_strided_slice %8 {offsets = [256, 0], sizes = [32, 128], strides = [1, 1]} : vector<288x128xf32> to vector<32x128xf32>
    %c8 = arith.constant 8 : index
    %c0_35 = arith.constant 0 : index
    %c0_36 = arith.constant 0 : index
    %51 = vector.load %arg4[%c8, %c0_35, %c0_36] : memref<9x128x32xf32, #tpu.memory_space<vmem>>, vector<1x128x32xf32>
    %52 = vector.shape_cast %51 : vector<1x128x32xf32> to vector<128x32xf32>
    %cst_37 = arith.constant dense<0.000000e+00> : vector<32x32xf32>
    %53 = tpu.matmul %50, %52, %cst_37 {dimension_numbers = #tpu.dot_dimension_numbers<[1], [0], [0], [1], [0, 0, 1, 1], [], []>} : vector<32x128xf32>, vector<128x32xf32>, vector<32x32xf32> -> vector<32x32xf32>
    %54 = arith.addf %49, %53 : vector<32x32xf32>
    %cst_38 = arith.constant 0.000000e+00 : f32
    %55 = vector.broadcast %cst_38 : f32 to vector<32x32xf32>
    %56 = arith.maximumf %54, %55 : vector<32x32xf32>
    %c0_39 = arith.constant 0 : index
    %c0_40 = arith.constant 0 : index
    %57 = vector.load %arg7[%c0_39, %c0_40] : memref<32x2xf32, #tpu.memory_space<vmem>>, vector<32x2xf32>
    %cst_41 = arith.constant dense<0.000000e+00> : vector<32x2xf32>
    %58 = tpu.matmul %56, %57, %cst_41 {dimension_numbers = #tpu.dot_dimension_numbers<[1], [0], [0], [1], [0, 0, 1, 1], [], []>} : vector<32x32xf32>, vector<32x2xf32>, vector<32x2xf32> -> vector<32x2xf32>
    %c0_42 = arith.constant 0 : index
    %c0_43 = arith.constant 0 : index
    %59 = vector.load %arg5[%c0_42, %c0_43] : memref<2x32xf32, #tpu.memory_space<vmem>>, vector<2x32xf32>
    %cst_44 = arith.constant dense<0.000000e+00> : vector<2x2xf32>
    %60 = tpu.matmul %59, %58, %cst_44 {dimension_numbers = #tpu.dot_dimension_numbers<[1], [0], [0], [1], [0, 0, 1, 1], [], []>} : vector<2x32xf32>, vector<32x2xf32>, vector<2x2xf32> -> vector<2x2xf32>
    %cst_45 = arith.constant 0.000000e+00 : f32
    %61 = vector.broadcast %cst_45 : f32 to vector<2x2xf32>
    %62 = arith.maximumf %60, %61 : vector<2x2xf32>
    %c0_46 = arith.constant 0 : index
    %c0_47 = arith.constant 0 : index
    %63 = vector.load %arg6[%c0_46, %c0_47] : memref<32x2xf32, #tpu.memory_space<vmem>>, vector<32x2xf32>
    %cst_48 = arith.constant dense<0.000000e+00> : vector<32x2xf32>
    %64 = tpu.matmul %63, %62, %cst_48 {dimension_numbers = #tpu.dot_dimension_numbers<[1], [0], [0], [1], [0, 0, 1, 1], [], []>} : vector<32x2xf32>, vector<2x2xf32>, vector<32x2xf32> -> vector<32x2xf32>
    %65 = arith.negf %64 : vector<32x2xf32>
    %66 = math.exp %65 : vector<32x2xf32>
    %cst_49 = arith.constant 1.000000e+00 : f32
    %67 = vector.broadcast %cst_49 : f32 to vector<32x2xf32>
    %68 = arith.addf %67, %66 : vector<32x2xf32>
    %69 = arith.divf %67, %68 : vector<32x2xf32>
    %c0_50 = arith.constant 0 : index
    %c0_51 = arith.constant 0 : index
    %70 = vector.load %arg8[%c0_50, %c0_51] : memref<2x32xf32, #tpu.memory_space<vmem>>, vector<2x32xf32>
    %cst_52 = arith.constant dense<0.000000e+00> : vector<32x32xf32>
    %71 = tpu.matmul %69, %70, %cst_52 {dimension_numbers = #tpu.dot_dimension_numbers<[1], [0], [0], [1], [0, 0, 1, 1], [], []>} : vector<32x2xf32>, vector<2x32xf32>, vector<32x32xf32> -> vector<32x32xf32>
    %72 = arith.mulf %56, %71 : vector<32x32xf32>
    %73 = arith.truncf %72 : vector<32x32xf32> to vector<32x32xbf16>
    %c0_53 = arith.constant 0 : index
    %c0_54 = arith.constant 0 : index
    %74 = vector.load %arg17[%c0_53, %c0_54] : memref<32x32xbf16, #tpu.memory_space<vmem>>, vector<32x32xbf16>
    tpu.vector_store %arg17[%c0_53, %c0_54], %73 {strides = array<i32>} : memref<32x32xbf16, #tpu.memory_space<vmem>>, vector<32x32xbf16>,
    %c0_55 = arith.constant 0 : index
    %c0_56 = arith.constant 0 : index
    %75 = vector.load %arg9[%c0_55, %c0_56] : memref<432x32xf32, #tpu.memory_space<vmem>>, vector<432x32xf32>
    %cst_57 = arith.constant dense<0.000000e+00> : vector<432x32xf32>
    %76 = tpu.matmul %75, %56, %cst_57 {dimension_numbers = #tpu.dot_dimension_numbers<[1], [0], [0], [1], [0, 0, 1, 1], [], []>} : vector<432x32xf32>, vector<32x32xf32>, vector<432x32xf32> -> vector<432x32xf32>
    %77 = vector.extract_strided_slice %76 {offsets = [0, 0], sizes = [48, 32], strides = [1, 1]} : vector<432x32xf32> to vector<48x32xf32>
    %c0_58 = arith.constant 0 : index
    %c0_59 = arith.constant 0 : index
    %c0_60 = arith.constant 0 : index
    %78 = vector.load %arg10[%c0_58, %c0_59, %c0_60] : memref<9x32x8xf32, #tpu.memory_space<vmem>>, vector<1x32x8xf32>
    %79 = vector.shape_cast %78 : vector<1x32x8xf32> to vector<32x8xf32>
    %cst_61 = arith.constant dense<0.000000e+00> : vector<48x8xf32>
    %80 = tpu.matmul %77, %79, %cst_61 {dimension_numbers = #tpu.dot_dimension_numbers<[1], [0], [0], [1], [0, 0, 1, 1], [], []>} : vector<48x32xf32>, vector<32x8xf32>, vector<48x8xf32> -> vector<48x8xf32>
    %cst_62 = arith.constant 0.000000e+00 : f32
    %81 = vector.broadcast %cst_62 : f32 to vector<48x8xf32>
    %82 = arith.addf %81, %80 : vector<48x8xf32>
    %83 = vector.extract_strided_slice %76 {offsets = [48, 0], sizes = [48, 32], strides = [1, 1]} : vector<432x32xf32> to vector<48x32xf32>
    %c1_63 = arith.constant 1 : index
    %c0_64 = arith.constant 0 : index
    %c0_65 = arith.constant 0 : index
    %84 = vector.load %arg10[%c1_63, %c0_64, %c0_65] : memref<9x32x8xf32, #tpu.memory_space<vmem>>, vector<1x32x8xf32>
    %85 = vector.shape_cast %84 : vector<1x32x8xf32> to vector<32x8xf32>
    %cst_66 = arith.constant dense<0.000000e+00> : vector<48x8xf32>
    %86 = tpu.matmul %83, %85, %cst_66 {dimension_numbers = #tpu.dot_dimension_numbers<[1], [0], [0], [1], [0, 0, 1, 1], [], []>} : vector<48x32xf32>, vector<32x8xf32>, vector<48x8xf32> -> vector<48x8xf32>
    %87 = arith.addf %82, %86 : vector<48x8xf32>
    %88 = vector.extract_strided_slice %76 {offsets = [96, 0], sizes = [48, 32], strides = [1, 1]} : vector<432x32xf32> to vector<48x32xf32>
    %c2_67 = arith.constant 2 : index
    %c0_68 = arith.constant 0 : index
    %c0_69 = arith.constant 0 : index
    %89 = vector.load %arg10[%c2_67, %c0_68, %c0_69] : memref<9x32x8xf32, #tpu.memory_space<vmem>>, vector<1x32x8xf32>
    %90 = vector.shape_cast %89 : vector<1x32x8xf32> to vector<32x8xf32>
    %cst_70 = arith.constant dense<0.000000e+00> : vector<48x8xf32>
    %91 = tpu.matmul %88, %90, %cst_70 {dimension_numbers = #tpu.dot_dimension_numbers<[1], [0], [0], [1], [0, 0, 1, 1], [], []>} : vector<48x32xf32>, vector<32x8xf32>, vector<48x8xf32> -> vector<48x8xf32>
    %92 = arith.addf %87, %91 : vector<48x8xf32>
    %93 = vector.extract_strided_slice %76 {offsets = [144, 0], sizes = [48, 32], strides = [1, 1]} : vector<432x32xf32> to vector<48x32xf32>
    %c3_71 = arith.constant 3 : index
    %c0_72 = arith.constant 0 : index
    %c0_73 = arith.constant 0 : index
    %94 = vector.load %arg10[%c3_71, %c0_72, %c0_73] : memref<9x32x8xf32, #tpu.memory_space<vmem>>, vector<1x32x8xf32>
    %95 = vector.shape_cast %94 : vector<1x32x8xf32> to vector<32x8xf32>
    %cst_74 = arith.constant dense<0.000000e+00> : vector<48x8xf32>
    %96 = tpu.matmul %93, %95, %cst_74 {dimension_numbers = #tpu.dot_dimension_numbers<[1], [0], [0], [1], [0, 0, 1, 1], [], []>} : vector<48x32xf32>, vector<32x8xf32>, vector<48x8xf32> -> vector<48x8xf32>
    %97 = arith.addf %92, %96 : vector<48x8xf32>
    %98 = vector.extract_strided_slice %76 {offsets = [192, 0], sizes = [48, 32], strides = [1, 1]} : vector<432x32xf32> to vector<48x32xf32>
    %c4_75 = arith.constant 4 : index
    %c0_76 = arith.constant 0 : index
    %c0_77 = arith.constant 0 : index
    %99 = vector.load %arg10[%c4_75, %c0_76, %c0_77] : memref<9x32x8xf32, #tpu.memory_space<vmem>>, vector<1x32x8xf32>
    %100 = vector.shape_cast %99 : vector<1x32x8xf32> to vector<32x8xf32>
    %cst_78 = arith.constant dense<0.000000e+00> : vector<48x8xf32>
    %101 = tpu.matmul %98, %100, %cst_78 {dimension_numbers = #tpu.dot_dimension_numbers<[1], [0], [0], [1], [0, 0, 1, 1], [], []>} : vector<48x32xf32>, vector<32x8xf32>, vector<48x8xf32> -> vector<48x8xf32>
    %102 = arith.addf %97, %101 : vector<48x8xf32>
    %103 = vector.extract_strided_slice %76 {offsets = [240, 0], sizes = [48, 32], strides = [1, 1]} : vector<432x32xf32> to vector<48x32xf32>
    %c5_79 = arith.constant 5 : index
    %c0_80 = arith.constant 0 : index
    %c0_81 = arith.constant 0 : index
    %104 = vector.load %arg10[%c5_79, %c0_80, %c0_81] : memref<9x32x8xf32, #tpu.memory_space<vmem>>, vector<1x32x8xf32>
    %105 = vector.shape_cast %104 : vector<1x32x8xf32> to vector<32x8xf32>
    %cst_82 = arith.constant dense<0.000000e+00> : vector<48x8xf32>
    %106 = tpu.matmul %103, %105, %cst_82 {dimension_numbers = #tpu.dot_dimension_numbers<[1], [0], [0], [1], [0, 0, 1, 1], [], []>} : vector<48x32xf32>, vector<32x8xf32>, vector<48x8xf32> -> vector<48x8xf32>
    %107 = arith.addf %102, %106 : vector<48x8xf32>
    %108 = vector.extract_strided_slice %76 {offsets = [288, 0], sizes = [48, 32], strides = [1, 1]} : vector<432x32xf32> to vector<48x32xf32>
    %c6_83 = arith.constant 6 : index
    %c0_84 = arith.constant 0 : index
    %c0_85 = arith.constant 0 : index
    %109 = vector.load %arg10[%c6_83, %c0_84, %c0_85] : memref<9x32x8xf32, #tpu.memory_space<vmem>>, vector<1x32x8xf32>
    %110 = vector.shape_cast %109 : vector<1x32x8xf32> to vector<32x8xf32>
    %cst_86 = arith.constant dense<0.000000e+00> : vector<48x8xf32>
    %111 = tpu.matmul %108, %110, %cst_86 {dimension_numbers = #tpu.dot_dimension_numbers<[1], [0], [0], [1], [0, 0, 1, 1], [], []>} : vector<48x32xf32>, vector<32x8xf32>, vector<48x8xf32> -> vector<48x8xf32>
    %112 = arith.addf %107, %111 : vector<48x8xf32>
    %113 = vector.extract_strided_slice %76 {offsets = [336, 0], sizes = [48, 32], strides = [1, 1]} : vector<432x32xf32> to vector<48x32xf32>
    %c7_87 = arith.constant 7 : index
    %c0_88 = arith.constant 0 : index
    %c0_89 = arith.constant 0 : index
    %114 = vector.load %arg10[%c7_87, %c0_88, %c0_89] : memref<9x32x8xf32, #tpu.memory_space<vmem>>, vector<1x32x8xf32>
    %115 = vector.shape_cast %114 : vector<1x32x8xf32> to vector<32x8xf32>
    %cst_90 = arith.constant dense<0.000000e+00> : vector<48x8xf32>
    %116 = tpu.matmul %113, %115, %cst_90 {dimension_numbers = #tpu.dot_dimension_numbers<[1], [0], [0], [1], [0, 0, 1, 1], [], []>} : vector<48x32xf32>, vector<32x8xf32>, vector<48x8xf32> -> vector<48x8xf32>
    %117 = arith.addf %112, %116 : vector<48x8xf32>
    %118 = vector.extract_strided_slice %76 {offsets = [384, 0], sizes = [48, 32], strides = [1, 1]} : vector<432x32xf32> to vector<48x32xf32>
    %c8_91 = arith.constant 8 : index
    %c0_92 = arith.constant 0 : index
    %c0_93 = arith.constant 0 : index
    %119 = vector.load %arg10[%c8_91, %c0_92, %c0_93] : memref<9x32x8xf32, #tpu.memory_space<vmem>>, vector<1x32x8xf32>
    %120 = vector.shape_cast %119 : vector<1x32x8xf32> to vector<32x8xf32>
    %cst_94 = arith.constant dense<0.000000e+00> : vector<48x8xf32>
    %121 = tpu.matmul %118, %120, %cst_94 {dimension_numbers = #tpu.dot_dimension_numbers<[1], [0], [0], [1], [0, 0, 1, 1], [], []>} : vector<48x32xf32>, vector<32x8xf32>, vector<48x8xf32> -> vector<48x8xf32>
    %122 = arith.addf %117, %121 : vector<48x8xf32>
    %cst_95 = arith.constant 0.000000e+00 : f32
    %123 = vector.broadcast %cst_95 : f32 to vector<48x8xf32>
    %124 = arith.maximumf %122, %123 : vector<48x8xf32>
    %125 = arith.truncf %124 : vector<48x8xf32> to vector<48x8xbf16>
    %c0_96 = arith.constant 0 : index
    %c0_97 = arith.constant 0 : index
    %126 = vector.load %arg18[%c0_96, %c0_97] : memref<48x8xbf16, #tpu.memory_space<vmem>>, vector<48x8xbf16>
    tpu.vector_store %arg18[%c0_96, %c0_97], %125 {strides = array<i32>} : memref<48x8xbf16, #tpu.memory_space<vmem>>, vector<48x8xbf16>,
    %c0_98 = arith.constant 0 : index
    %c0_99 = arith.constant 0 : index
    %127 = vector.load %arg11[%c0_98, %c0_99] : memref<8x2xf32, #tpu.memory_space<vmem>>, vector<8x2xf32>
    %cst_100 = arith.constant dense<0.000000e+00> : vector<48x2xf32>
    %128 = tpu.matmul %124, %127, %cst_100 {dimension_numbers = #tpu.dot_dimension_numbers<[1], [0], [0], [1], [0, 0, 1, 1], [], []>} : vector<48x8xf32>, vector<8x2xf32>, vector<48x2xf32> -> vector<48x2xf32>
    %c0_101 = arith.constant 0 : index
    %c0_102 = arith.constant 0 : index
    %129 = vector.load %arg12[%c0_101, %c0_102] : memref<48x1xf32, #tpu.memory_space<vmem>>, vector<48x1xf32>
    %130 = vector.broadcast %129 : vector<48x1xf32> to vector<48x2xf32>
    %131 = arith.mulf %128, %130 : vector<48x2xf32>
    %c0_103 = arith.constant 0 : index
    %c0_104 = arith.constant 0 : index
    %132 = vector.load %arg13[%c0_103, %c0_104] : memref<48x1xf32, #tpu.memory_space<vmem>>, vector<48x1xf32>
    %133 = vector.broadcast %132 : vector<48x1xf32> to vector<48x2xf32>
    %134 = arith.addf %131, %133 : vector<48x2xf32>
    %c0_105 = arith.constant 0 : index
    %c0_106 = arith.constant 0 : index
    %135 = vector.load %arg14[%c0_105, %c0_106] : memref<10x48xf32, #tpu.memory_space<vmem>>, vector<10x48xf32>
    %cst_107 = arith.constant dense<0.000000e+00> : vector<10x2xf32>
    %136 = tpu.matmul %135, %134, %cst_107 {dimension_numbers = #tpu.dot_dimension_numbers<[1], [0], [0], [1], [0, 0, 1, 1], [], []>} : vector<10x48xf32>, vector<48x2xf32>, vector<10x2xf32> -> vector<10x2xf32>
    %c0_108 = arith.constant 0 : index
    %c0_109 = arith.constant 0 : index
    %137 = vector.load %arg15[%c0_108, %c0_109] : memref<10x1xf32, #tpu.memory_space<vmem>>, vector<10x1xf32>
    %138 = vector.broadcast %137 : vector<10x1xf32> to vector<10x2xf32>
    %139 = arith.addf %136, %138 : vector<10x2xf32>
    %c0_110 = arith.constant 0 : index
    %c0_111 = arith.constant 0 : index
    %140 = vector.load %arg19[%c0_110, %c0_111] : memref<10x2xf32, #tpu.memory_space<vmem>>, vector<10x2xf32>
    tpu.vector_store %arg19[%c0_110, %c0_111], %139 {strides = array<i32>} : memref<10x2xf32, #tpu.memory_space<vmem>>, vector<10x2xf32>,
    return
  }
  func.func @transform_0(%arg0: i32) -> (i32, i32) {
    %c0_i32 = arith.constant 0 : i32
    %c0_i32_0 = arith.constant 0 : i32
    %c0_i32_1 = arith.constant 0 : i32
    return %c0_i32, %c0_i32_0 : i32, i32
  }
  func.func @transform_1(%arg0: i32) -> (i32, i32) {
    %c0_i32 = arith.constant 0 : i32
    %c0_i32_0 = arith.constant 0 : i32
    %c0_i32_1 = arith.constant 0 : i32
    return %c0_i32, %c0_i32_0 : i32, i32
  }
  func.func @transform_2(%arg0: i32) -> (i32, i32) {
    %c0_i32 = arith.constant 0 : i32
    %c0_i32_0 = arith.constant 0 : i32
    %c0_i32_1 = arith.constant 0 : i32
    return %c0_i32, %c0_i32_0 : i32, i32
  }
  func.func @transform_3(%arg0: i32) -> (i32, i32, i32) {
    %c0_i32 = arith.constant 0 : i32
    %c0_i32_0 = arith.constant 0 : i32
    %c0_i32_1 = arith.constant 0 : i32
    %c0_i32_2 = arith.constant 0 : i32
    return %c0_i32, %c0_i32_0, %c0_i32_1 : i32, i32, i32
  }
  func.func @transform_4(%arg0: i32) -> (i32, i32) {
    %c0_i32 = arith.constant 0 : i32
    %c0_i32_0 = arith.constant 0 : i32
    %c0_i32_1 = arith.constant 0 : i32
    return %c0_i32, %c0_i32_0 : i32, i32
  }
  func.func @transform_5(%arg0: i32) -> (i32, i32) {
    %c0_i32 = arith.constant 0 : i32
    %c0_i32_0 = arith.constant 0 : i32
    %c0_i32_1 = arith.constant 0 : i32
    return %c0_i32, %c0_i32_0 : i32, i32
  }
  func.func @transform_6(%arg0: i32) -> (i32, i32) {
    %c0_i32 = arith.constant 0 : i32
    %c0_i32_0 = arith.constant 0 : i32
    %c0_i32_1 = arith.constant 0 : i32
    return %c0_i32, %c0_i32_0 : i32, i32
  }
  func.func @transform_7(%arg0: i32) -> (i32, i32) {
    %c0_i32 = arith.constant 0 : i32
    %c0_i32_0 = arith.constant 0 : i32
    %c0_i32_1 = arith.constant 0 : i32
    return %c0_i32, %c0_i32_0 : i32, i32
  }
  func.func @transform_8(%arg0: i32) -> (i32, i32) {
    %c0_i32 = arith.constant 0 : i32
    %c0_i32_0 = arith.constant 0 : i32
    %c0_i32_1 = arith.constant 0 : i32
    return %c0_i32, %c0_i32_0 : i32, i32
  }
  func.func @transform_9(%arg0: i32) -> (i32, i32, i32) {
    %c0_i32 = arith.constant 0 : i32
    %c0_i32_0 = arith.constant 0 : i32
    %c0_i32_1 = arith.constant 0 : i32
    %c0_i32_2 = arith.constant 0 : i32
    return %c0_i32, %c0_i32_0, %c0_i32_1 : i32, i32, i32
  }
  func.func @transform_10(%arg0: i32) -> (i32, i32) {
    %c0_i32 = arith.constant 0 : i32
    %c0_i32_0 = arith.constant 0 : i32
    %c0_i32_1 = arith.constant 0 : i32
    return %c0_i32, %c0_i32_0 : i32, i32
  }
  func.func @transform_11(%arg0: i32) -> (i32, i32) {
    %c0_i32 = arith.constant 0 : i32
    %c0_i32_0 = arith.constant 0 : i32
    %c0_i32_1 = arith.constant 0 : i32
    return %c0_i32, %c0_i32_0 : i32, i32
  }
  func.func @transform_12(%arg0: i32) -> (i32, i32) {
    %c0_i32 = arith.constant 0 : i32
    %c0_i32_0 = arith.constant 0 : i32
    %c0_i32_1 = arith.constant 0 : i32
    return %c0_i32, %c0_i32_0 : i32, i32
  }
  func.func @transform_13(%arg0: i32) -> (i32, i32) {
    %c0_i32 = arith.constant 0 : i32
    %c0_i32_0 = arith.constant 0 : i32
    %c0_i32_1 = arith.constant 0 : i32
    return %c0_i32, %c0_i32_0 : i32, i32
  }
  func.func @transform_14(%arg0: i32) -> (i32, i32) {
    %c0_i32 = arith.constant 0 : i32
    %c0_i32_0 = arith.constant 0 : i32
    %c0_i32_1 = arith.constant 0 : i32
    return %c0_i32, %c0_i32_0 : i32, i32
  }
  func.func @transform_15(%arg0: i32) -> (i32, i32) {
    %c0_i32 = arith.constant 0 : i32
    %c0_i32_0 = arith.constant 0 : i32
    %c0_i32_1 = arith.constant 0 : i32
    return %c0_i32, %c0_i32_0 : i32, i32
  }
  func.func @transform_16(%arg0: i32) -> (i32, i32) {
    %c0_i32 = arith.constant 0 : i32
    %c0_i32_0 = arith.constant 0 : i32
    %c0_i32_1 = arith.constant 0 : i32
    return %c0_i32, %c0_i32_0 : i32, i32
  }
  func.func @transform_17(%arg0: i32) -> (i32, i32) {
    %c0_i32 = arith.constant 0 : i32
    %c0_i32_0 = arith.constant 0 : i32
    %c0_i32_1 = arith.constant 0 : i32
    return %c0_i32, %c0_i32_0 : i32, i32
  }
  func.func @transform_18(%arg0: i32) -> (i32, i32) {
    %c0_i32 = arith.constant 0 : i32
    %c0_i32_0 = arith.constant 0 : i32
    %c0_i32_1 = arith.constant 0 : i32
    return %c0_i32, %c0_i32_0 : i32, i32
  }
}

</mosaic_0001>

<llo_original>
// kernel: efficientnet_b4_attention_forward.3
$region0: #{efficientnet_b4_attention_forward.3}
  #allocation0 [shape = 'u32[]', space=smem, size = 0x4, offset = 0x4, fixed_abs, tag = 'smem constant byte address 0x4 - core index']
  #allocation1 [shape = 'u32[144,128]{1,0:T(1,128)}', space=vmem, size = 0x12000, scoped, tag = 'internal scratch']
  %s0 = inlined_call_operand.vmem [shape: bf16[8,27], index: 0, kind: input, shape index: {}]
  %s1 = inlined_call_operand.vmem [shape: bf16[2,27,1024], index: 1, kind: input, shape index: {}]
  %s2 = inlined_call_operand.vmem [shape: bf16[2,8,1024], index: 2, kind: output, shape index: {}]
  %s3 = sld [smem:[#allocation0]]
  $region41: #{efficientnet_b4_attention_forward.3} parent=0
    _
  %s5 = ssub.s32 1, %s3
  %s6 = scalar_select 0, %s5, %s3
  loop: start=0, step=1, limit=4
  $region2: #{efficientnet_b4_attention_forward.3} parent=0 // loop_pre_header
    _
  $region3: #{efficientnet_b4_attention_forward.3} parent=0 // loop_header
    %s8 = sphi 0, %s12
    %p9 = scmp.ge.s32.totalorder %s8, 4
    %s16 = sphi 0, %s16
    %s18 = sphi 0, %s16
    %s19 = sphi 0, %s18
    %s33 = sphi 0, %s19
    %s39 = sphi 0, %s41
    %s42 = sphi 0, %s39
    %s43 = sphi 0, %s42
    %s59 = sphi 0, %s43
    %s65 = sphi 0, %s67
    %s68 = sphi 0, %s65
    %s69 = sphi 0, %s68
    %s85 = sphi 0, %s69
  $region4: #{efficientnet_b4_attention_forward.3} parent=0 // loop_header_branch
    %11 = sbr.rel (%p9) target = $region8
  $region5: #{efficientnet_b4_attention_forward.3} parent=0 // loop_body
    %s13 = ssub.s32 %s8, 1
    %s14 = ssub.s32 %s8, 2
    %s15 = sadd.s32 %s8, 1
    %s17 = sadd.s32 %s16, 1
    %p20 = scmp.eq.s32.totalorder %s8, 1
    %p21 = scmp.ne.s32.totalorder %s16, %s18
    %p22 = scmp.eq.s32.totalorder %s8, 0
    %p23 = por %p21, %p22
    %p24 = scmp.ne.s32.totalorder %s16, %s18
    %p25 = scmp.eq.s32.totalorder %s13, 1
    %p26 = por %p24, %p25
    %p27 = scmp.ne.s32.totalorder %s18, %s19
    %p28 = scmp.eq.s32.totalorder %s13, 0
    %p29 = por %p27, %p28
    %p30 = scmp.ne.s32.totalorder %s18, %s19
    %p31 = scmp.eq.s32.totalorder %s14, 1
    %p32 = por %p30, %p31
    %p34 = scmp.ne.s32.totalorder %s19, %s33
    %p35 = scmp.eq.s32.totalorder %s14, 0
    %p36 = por %p34, %p35
    %s37 = ssub.s32 %s8, %s15
    %p38 = scmp.eq.s32.totalorder %s37, 0
    %s40 = sadd.s32 %s39, 1
    %s41 = scalar_select %p38, %s39, %s40
    %p44 = pneg %p38
    %p45 = scmp.eq.s32.totalorder %s8, 1
    %p46 = por %p44, %p45
    %p47 = scmp.ne.s32.totalorder %s39, %s42
    %p48 = scmp.eq.s32.totalorder %s8, 0
    %p49 = por %p47, %p48
    %p50 = scmp.ne.s32.totalorder %s39, %s42
    %p51 = scmp.eq.s32.totalorder %s13, 1
    %p52 = por %p50, %p51
    %p53 = scmp.ne.s32.totalorder %s42, %s43
    %p54 = scmp.eq.s32.totalorder %s13, 0
    %p55 = por %p53, %p54
    %p56 = scmp.ne.s32.totalorder %s42, %s43
    %p57 = scmp.eq.s32.totalorder %s14, 1
    %p58 = por %p56, %p57
    %p60 = scmp.ne.s32.totalorder %s43, %s59
    %p61 = scmp.eq.s32.totalorder %s14, 0
    %p62 = por %p60, %p61
    %s63 = ssub.s32 %s8, %s15
    %p64 = scmp.eq.s32.totalorder %s63, 0
    %s66 = sadd.s32 %s65, 1
    %s67 = scalar_select %p64, %s65, %s66
    %p70 = pneg %p64
    %p71 = scmp.eq.s32.totalorder %s8, 1
    %p72 = por %p70, %p71
    %p73 = scmp.ne.s32.totalorder %s65, %s68
    %p74 = scmp.eq.s32.totalorder %s8, 0
    %p75 = por %p73, %p74
    %p76 = scmp.ne.s32.totalorder %s65, %s68
    %p77 = scmp.eq.s32.totalorder %s13, 1
    %p78 = por %p76, %p77
    %p79 = scmp.ne.s32.totalorder %s68, %s69
    %p80 = scmp.eq.s32.totalorder %s13, 0
    %p81 = por %p79, %p80
    %p82 = scmp.ne.s32.totalorder %s68, %s69
    %p83 = scmp.eq.s32.totalorder %s14, 1
    %p84 = por %p82, %p83
    %p86 = scmp.ne.s32.totalorder %s69, %s85
    %p87 = scmp.eq.s32.totalorder %s14, 0
    %p88 = por %p86, %p87
    %p89 = scmp.le.s32.totalorder 1, %s8
    %p90 = scmp.lt.s32.totalorder %s8, 3
    %p91 = pnand %p89, %p90
    %p92 = pneg %p91
    // Predicated region
    $region9: #{efficientnet_b4_attention_forward.3} parent=5 // pred_check
      _
    $region10: #{efficientnet_b4_attention_forward.3} parent=5 // pred_check_branch
      %94 = sbr.rel (%p91) target = $region12
    $region11: #{efficientnet_b4_attention_forward.3} parent=5 // pred_region
      %s95 = ssub.s32 %s8, 1
      // Predicated region
      $region13: #{efficientnet_b4_attention_forward.3} parent=11 // pred_check
        %p96 = pneg %p29
      $region14: #{efficientnet_b4_attention_forward.3} parent=11 // pred_check_branch
        %98 = sbr.rel (%p96) target = $region16
      $region15: #{efficientnet_b4_attention_forward.3} parent=11 // pred_region
        _
      $region16: #{efficientnet_b4_attention_forward.3} parent=11 // pred_fallthru
        _
    $region12: #{efficientnet_b4_attention_forward.3} parent=5 // pred_fallthru
      _
    %p99 = scmp.lt.s32.totalorder %s8, 2
    // Predicated region
    $region17: #{efficientnet_b4_attention_forward.3} parent=5 // pred_check
      %p100 = pneg %p99
    $region18: #{efficientnet_b4_attention_forward.3} parent=5 // pred_check_branch
      %102 = sbr.rel (%p100) target = $region20
    $region19: #{efficientnet_b4_attention_forward.3} parent=5 // pred_region
      // Predicated region
      $region21: #{efficientnet_b4_attention_forward.3} parent=19 // pred_check
        %p103 = pneg %p49
      $region22: #{efficientnet_b4_attention_forward.3} parent=19 // pred_check_branch
        %105 = sbr.rel (%p103) target = $region24
      $region23: #{efficientnet_b4_attention_forward.3} parent=19 // pred_region
        %p106 = scmp.lt.s32.totalorder %s8, 1
        %s107 = scalar_select %p106, %s8, 1
        %s108 = smul.addr %s107, 32
        %s109 = smul.addr %s108, 4
        %s110 = scalar_lea.vmem %s1, %s109
      $region24: #{efficientnet_b4_attention_forward.3} parent=19 // pred_fallthru
        _
    $region20: #{efficientnet_b4_attention_forward.3} parent=5 // pred_fallthru
      _
    %p111 = scmp.le.s32.totalorder 1, %s8
    %p112 = scmp.lt.s32.totalorder %s8, 3
    %p113 = pnand %p111, %p112
    %p114 = pneg %p113
    // Predicated region
    $region25: #{efficientnet_b4_attention_forward.3} parent=5 // pred_check
      _
    $region26: #{efficientnet_b4_attention_forward.3} parent=5 // pred_check_branch
      %116 = sbr.rel (%p113) target = $region28
    $region27: #{efficientnet_b4_attention_forward.3} parent=5 // pred_region
      %s117 = ssub.s32 %s8, 1
      %p118 = pneg %p29
      %p119 = pneg %p26
      %p120 = scmp.lt.s32.totalorder %s13, 1
      %s121 = scalar_select %p120, %s13, 1
      %s122 = smul.addr %s121, 32
      %s123 = smul.addr %s122, 4
      %s124 = scalar_lea.vmem %s1, %s123
      %p125 = pneg %p55
      %p126 = pneg %p52
      %p127 = pneg %p81
      %p128 = pneg %p78
      %p129 = scmp.lt.s32.totalorder %s13, 1
      %s130 = scalar_select %p129, %s13, 1
      %s131 = smul.addr %s130, 8
      %s132 = smul.addr %s131, 4
      %s133 = scalar_lea.vmem %s2, %s132
      %p134 = scmp.lt.s32.totalorder %s13, 1
      %s135 = scalar_select %p134, %s13, 1
      %s136 = smul.addr %s135, 32
      %s137 = smul.addr %s136, 4
      %s138 = scalar_lea.vmem %s1, %s137
      %p139 = scmp.lt.s32.totalorder %s13, 1
      %s140 = scalar_select %p139, %s13, 1
      %s141 = smul.addr %s140, 8
      %s142 = smul.addr %s141, 4
      %s143 = scalar_lea.vmem %s2, %s142
      %v145 = vld [vmem:[%s0] sm:$0xf]
      %v146 = vld [vmem:[%s138] sm:$0xff]
      %v147 = vld [vmem:[%s138 + $0x8] sm:$0xff]
      %v148 = vld [vmem:[%s138 + $0x10] sm:$0xff]
      %v149 = vld [vmem:[%s138 + $0x18] sm:$0xff]
      %v150 = vld [vmem:[%s138 + $0x20] sm:$0xff]
      %v151 = vld [vmem:[%s138 + $0x28] sm:$0xff]
      %v152 = vld [vmem:[%s138 + $0x30] sm:$0xff]
      %v153 = vld [vmem:[%s138 + $0x38] sm:$0xff]
      %v154 = vld [vmem:[%s138 + $0x40] sm:$0xff]
      %v155 = vld [vmem:[%s138 + $0x48] sm:$0xff]
      %v156 = vld [vmem:[%s138 + $0x50] sm:$0xff]
      %v157 = vld [vmem:[%s138 + $0x58] sm:$0xff]
      %v158 = vld [vmem:[%s138 + $0x60] sm:$0x33]
      %v159 = vld [vmem:[%s138 + $0x68] sm:$0x33]
      %v160 = vld [vmem:[%s138 + $0x70] sm:$0x33]
      %v161 = vld [vmem:[%s138 + $0x78] sm:$0x33]
      %v178 = vunpack.c.l.b16 %v146
      %v179 = vunpack.c.h.b16 %v146
      %v180 = vunpack.c.l.b16 %v147
      %v181 = vunpack.c.h.b16 %v147
      %v182 = vunpack.c.l.b16 %v148
      %v183 = vunpack.c.h.b16 %v148
      %v184 = vunpack.c.l.b16 %v149
      %v185 = vunpack.c.h.b16 %v149
      %v186 = vunpack.c.l.b16 %v150
      %v187 = vunpack.c.h.b16 %v150
      %v188 = vunpack.c.l.b16 %v151
      %v189 = vunpack.c.h.b16 %v151
      %v190 = vunpack.c.l.b16 %v152
      %v191 = vunpack.c.h.b16 %v152
      %v192 = vunpack.c.l.b16 %v153
      %v193 = vunpack.c.h.b16 %v153
      %v194 = vunpack.c.l.b16 %v154
      %v195 = vunpack.c.h.b16 %v154
      %v196 = vunpack.c.l.b16 %v155
      %v197 = vunpack.c.h.b16 %v155
      %v198 = vunpack.c.l.b16 %v156
      %v199 = vunpack.c.h.b16 %v156
      %v200 = vunpack.c.l.b16 %v157
      %v201 = vunpack.c.h.b16 %v157
      %v202 = vunpack.c.l.b16 %v158
      %v203 = vunpack.c.h.b16 %v158
      %v204 = vunpack.c.l.b16 %v159
      %v205 = vunpack.c.h.b16 %v159
      %v206 = vunpack.c.l.b16 %v160
      %v207 = vunpack.c.h.b16 %v160
      %v208 = vunpack.c.l.b16 %v161
      %v209 = vunpack.c.h.b16 %v161
      %v210 = vpack.c.b16 %v186, %v178
      %v211 = vpack.c.b16 %v187, %v179
      %v212 = vpack.c.b16 %v188, %v180
      %v213 = vpack.c.b16 %v189, %v181
      %v214 = vpack.c.b16 %v190, %v182
      %v215 = vpack.c.b16 %v191, %v183
      %v216 = vpack.c.b16 %v192, %v184
      %v217 = vpack.c.b16 %v193, %v185
      %v218 = vpack.c.b16 %v202, %v194
      %v219 = vpack.c.b16 %v203, %v195
      %v220 = vpack.c.b16 %v204, %v196
      %v221 = vpack.c.b16 %v205, %v197
      %v222 = vpack.c.b16 %v206, %v198
      %v223 = vpack.c.b16 %v207, %v199
      %v224 = vpack.c.b16 %v208, %v200
      %v225 = vpack.c.b16 %v209, %v201
      %vm234 = vcmask 220160
      %v236 = vsel %vm234, %v145, 0
      %vm238 = vcmask 1044480
      %vm239 = vcmask 1045504
      %v240 = vsel %vm238, 4294967295, 65535
      %v241 = vsel %vm239, %v240, 0
      %v243 = vand.u32 %v218, %v241
      %v246 = vand.u32 %v219, %v241
      %v249 = vand.u32 %v220, %v241
      %v252 = vand.u32 %v221, %v241
      %v255 = vand.u32 %v222, %v241
      %v258 = vand.u32 %v223, %v241
      %v261 = vand.u32 %v224, %v241
      %v264 = vand.u32 %v225, %v241
      %266 = vmatprep.subr.bf16.mxu0 %v211
      %267 = vmatpush1.bf16.msra.mxu0 %v210
      %268 = vmatprep.subr.bf16.mxu0 %v246
      %269 = vmatpush1.bf16.msra.mxu0 %v243
      %270 = vmatprep.subr.bf16.mxu0 0
      %271 = vmatpush1.bf16.msra.mxu0 0
      %272 = vmatprep.subr.bf16.mxu0 0
      %273 = vmatpush1.bf16.msra.mxu0 0
      %274 = vmatprep.subr.bf16.mxu0 0
      %275 = vmatpush1.bf16.msra.mxu0 0
      %276 = vmatprep.subr.bf16.mxu0 0
      %277 = vmatpush1.bf16.msra.mxu0 0
      %278 = vmatprep.subr.bf16.mxu0 0
      %279 = vmatpush1.bf16.msra.mxu0 0
      %280 = vmatprep.subr.bf16.mxu0 0
      %281 = vmatpush1.bf16.msra.mxu0 0
      %282 = vmatprep.subr.bf16.mxu0 0
      %283 = vmatpush1.bf16.msra.mxu0 0
      %284 = vmatprep.subr.bf16.mxu0 0
      %285 = vmatpush1.bf16.msra.mxu0 0
      %286 = vmatprep.subr.bf16.mxu0 0
      %287 = vmatpush1.bf16.msra.mxu0 0
      %288 = vmatprep.subr.bf16.mxu0 0
      %289 = vmatpush1.bf16.msra.mxu0 0
      %290 = vmatprep.subr.bf16.mxu0 0
      %291 = vmatpush1.bf16.msra.mxu0 0
      %292 = vmatprep.subr.bf16.mxu0 0
      %293 = vmatpush1.bf16.msra.mxu0 0
      %294 = vmatprep.subr.bf16.mxu0 0
      %295 = vmatpush1.bf16.msra.mxu0 0
      %296 = vmatprep.subr.bf16.mxu0 0
      %297 = vmatpush1.bf16.msra.mxu0 0
      %298 = vmatprep.mubr.bf16.mxu0 0
      %299 = vmatmul.mubr.bf16.gmra.mrb[0].mxu0 %v236
      %v300 = vpop.f32.mrb[0].mxu0
      %v301 = vadd.f32 0.0, %v300
      %v302 = vpop.f32.mrb[0].mxu0
      %v303 = vadd.f32 0.0, %v302
      %v304 = vpop.f32.mrb[0].mxu0
      %v305 = vpop.f32.mrb[0].mxu0
      %306 = vdwg.mxu0
      %307 = vmatprep.subr.bf16.mxu0 %v213
      %308 = vmatpush1.bf16.msra.mxu0 %v212
      %309 = vmatprep.subr.bf16.mxu0 %v252
      %310 = vmatpush1.bf16.msra.mxu0 %v249
      %311 = vmatprep.subr.bf16.mxu0 0
      %312 = vmatpush1.bf16.msra.mxu0 0
      %313 = vmatprep.subr.bf16.mxu0 0
      %314 = vmatpush1.bf16.msra.mxu0 0
      %315 = vmatprep.subr.bf16.mxu0 0
      %316 = vmatpush1.bf16.msra.mxu0 0
      %317 = vmatprep.subr.bf16.mxu0 0
      %318 = vmatpush1.bf16.msra.mxu0 0
      %319 = vmatprep.subr.bf16.mxu0 0
      %320 = vmatpush1.bf16.msra.mxu0 0
      %321 = vmatprep.subr.bf16.mxu0 0
      %322 = vmatpush1.bf16.msra.mxu0 0
      %323 = vmatprep.subr.bf16.mxu0 0
      %324 = vmatpush1.bf16.msra.mxu0 0
      %325 = vmatprep.subr.bf16.mxu0 0
      %326 = vmatpush1.bf16.msra.mxu0 0
      %327 = vmatprep.subr.bf16.mxu0 0
      %328 = vmatpush1.bf16.msra.mxu0 0
      %329 = vmatprep.subr.bf16.mxu0 0
      %330 = vmatpush1.bf16.msra.mxu0 0
      %331 = vmatprep.subr.bf16.mxu0 0
      %332 = vmatpush1.bf16.msra.mxu0 0
      %333 = vmatprep.subr.bf16.mxu0 0
      %334 = vmatpush1.bf16.msra.mxu0 0
      %335 = vmatprep.subr.bf16.mxu0 0
      %336 = vmatpush1.bf16.msra.mxu0 0
      %337 = vmatprep.subr.bf16.mxu0 0
      %338 = vmatpush1.bf16.msra.mxu0 0
      %339 = vmatprep.mubr.bf16.mxu0 0
      %340 = vmatmul.mubr.bf16.gmra.mrb[0].mxu0 %v236
      %v341 = vpop.f32.mrb[0].mxu0
      %v342 = vadd.f32 0.0, %v341
      %v343 = vpop.f32.mrb[0].mxu0
      %v344 = vadd.f32 0.0, %v343
      %v345 = vpop.f32.mrb[0].mxu0
      %v346 = vpop.f32.mrb[0].mxu0
      %347 = vdwg.mxu0
      %348 = vmatprep.subr.bf16.mxu0 %v215
      %349 = vmatpush1.bf16.msra.mxu0 %v214
      %350 = vmatprep.subr.bf16.mxu0 %v258
      %351 = vmatpush1.bf16.msra.mxu0 %v255
      %352 = vmatprep.subr.bf16.mxu0 0
      %353 = vmatpush1.bf16.msra.mxu0 0
      %354 = vmatprep.subr.bf16.mxu0 0
      %355 = vmatpush1.bf16.msra.mxu0 0
      %356 = vmatprep.subr.bf16.mxu0 0
      %357 = vmatpush1.bf16.msra.mxu0 0
      %358 = vmatprep.subr.bf16.mxu0 0
      %359 = vmatpush1.bf16.msra.mxu0 0
      %360 = vmatprep.subr.bf16.mxu0 0
      %361 = vmatpush1.bf16.msra.mxu0 0
      %362 = vmatprep.subr.bf16.mxu0 0
      %363 = vmatpush1.bf16.msra.mxu0 0
      %364 = vmatprep.subr.bf16.mxu0 0
      %365 = vmatpush1.bf16.msra.mxu0 0
      %366 = vmatprep.subr.bf16.mxu0 0
      %367 = vmatpush1.bf16.msra.mxu0 0
      %368 = vmatprep.subr.bf16.mxu0 0
      %369 = vmatpush1.bf16.msra.mxu0 0
      %370 = vmatprep.subr.bf16.mxu0 0
      %371 = vmatpush1.bf16.msra.mxu0 0
      %372 = vmatprep.subr.bf16.mxu0 0
      %373 = vmatpush1.bf16.msra.mxu0 0
      %374 = vmatprep.subr.bf16.mxu0 0
      %375 = vmatpush1.bf16.msra.mxu0 0
      %376 = vmatprep.subr.bf16.mxu0 0
      %377 = vmatpush1.bf16.msra.mxu0 0
      %378 = vmatprep.subr.bf16.mxu0 0
      %379 = vmatpush1.bf16.msra.mxu0 0
      %380 = vmatprep.mubr.bf16.mxu0 0
      %381 = vmatmul.mubr.bf16.gmra.mrb[0].mxu0 %v236
      %v382 = vpop.f32.mrb[0].mxu0
      %v383 = vadd.f32 0.0, %v382
      %v384 = vpop.f32.mrb[0].mxu0
      %v385 = vadd.f32 0.0, %v384
      %v386 = vpop.f32.mrb[0].mxu0
      %v387 = vpop.f32.mrb[0].mxu0
      %388 = vdwg.mxu0
      %389 = vmatprep.subr.bf16.mxu0 %v217
      %390 = vmatpush1.bf16.msra.mxu0 %v216
      %391 = vmatprep.subr.bf16.mxu0 %v264
      %392 = vmatpush1.bf16.msra.mxu0 %v261
      %393 = vmatprep.subr.bf16.mxu0 0
      %394 = vmatpush1.bf16.msra.mxu0 0
      %395 = vmatprep.subr.bf16.mxu0 0
      %396 = vmatpush1.bf16.msra.mxu0 0
      %397 = vmatprep.subr.bf16.mxu0 0
      %398 = vmatpush1.bf16.msra.mxu0 0
      %399 = vmatprep.subr.bf16.mxu0 0
      %400 = vmatpush1.bf16.msra.mxu0 0
      %401 = vmatprep.subr.bf16.mxu0 0
      %402 = vmatpush1.bf16.msra.mxu0 0
      %403 = vmatprep.subr.bf16.mxu0 0
      %404 = vmatpush1.bf16.msra.mxu0 0
      %405 = vmatprep.subr.bf16.mxu0 0
      %406 = vmatpush1.bf16.msra.mxu0 0
      %407 = vmatprep.subr.bf16.mxu0 0
      %408 = vmatpush1.bf16.msra.mxu0 0
      %409 = vmatprep.subr.bf16.mxu0 0
      %410 = vmatpush1.bf16.msra.mxu0 0
      %411 = vmatprep.subr.bf16.mxu0 0
      %412 = vmatpush1.bf16.msra.mxu0 0
      %413 = vmatprep.subr.bf16.mxu0 0
      %414 = vmatpush1.bf16.msra.mxu0 0
      %415 = vmatprep.subr.bf16.mxu0 0
      %416 = vmatpush1.bf16.msra.mxu0 0
      %417 = vmatprep.subr.bf16.mxu0 0
      %418 = vmatpush1.bf16.msra.mxu0 0
      %419 = vmatprep.subr.bf16.mxu0 0
      %420 = vmatpush1.bf16.msra.mxu0 0
      %421 = vmatprep.mubr.bf16.mxu0 0
      %422 = vmatmul.mubr.bf16.gmra.mrb[0].mxu0 %v236
      %v423 = vpop.f32.mrb[0].mxu0
      %v424 = vadd.f32 0.0, %v423
      %v425 = vpop.f32.mrb[0].mxu0
      %v426 = vadd.f32 0.0, %v425
      %v427 = vpop.f32.mrb[0].mxu0
      %v428 = vpop.f32.mrb[0].mxu0
      %429 = vdwg.mxu0
      %v430 = vmax.f32 %v301, 0.0
      %v431 = vmax.f32 %v303, 0.0
      %v432 = vmax.f32 %v342, 0.0
      %v433 = vmax.f32 %v344, 0.0
      %v434 = vmax.f32 %v383, 0.0
      %v435 = vmax.f32 %v385, 0.0
      %v436 = vmax.f32 %v424, 0.0
      %v437 = vmax.f32 %v426, 0.0
      %v438 = vpack.c.bf16 %v430, %v430
      %v439 = vpack.c.bf16 %v431, %v431
      %v440 = vpack.c.bf16 %v432, %v432
      %v441 = vpack.c.bf16 %v433, %v433
      %v442 = vpack.c.bf16 %v434, %v434
      %v443 = vpack.c.bf16 %v435, %v435
      %v444 = vpack.c.bf16 %v436, %v436
      %v445 = vpack.c.bf16 %v437, %v437
      %v454 = vunpack.c.l.b16 %v438
      %v455 = vunpack.c.l.b16 %v439
      %v456 = vunpack.c.l.b16 %v440
      %v457 = vunpack.c.l.b16 %v441
      %v458 = vunpack.c.l.b16 %v442
      %v459 = vunpack.c.l.b16 %v443
      %v460 = vunpack.c.l.b16 %v444
      %v461 = vunpack.c.l.b16 %v445
      %v462 = vpack.c.b16 %v455, %v454
      %v463 = vpack.c.b16 %v457, %v456
      %v464 = vpack.c.b16 %v459, %v458
      %v465 = vpack.c.b16 %v461, %v460
      %470 = vst [vmem:[%s143] sm:$0xff] %v462
      %471 = vst [vmem:[%s143 + $0x8] sm:$0xff] %v463
      %472 = vst [vmem:[%s143 + $0x10] sm:$0xff] %v464
      %473 = vst [vmem:[%s143 + $0x18] sm:$0xff] %v465
      %p474 = scmp.lt.s32.totalorder %s13, 1
      %s475 = scalar_select %p474, %s13, 1
      %s476 = smul.addr %s475, 8
      %s477 = smul.addr %s476, 4
      %s478 = scalar_lea.vmem %s2, %s477
      // Predicated region
      $region29: #{efficientnet_b4_attention_forward.3} parent=27 // pred_check
        %p479 = pneg %p78
      $region30: #{efficientnet_b4_attention_forward.3} parent=27 // pred_check_branch
        %481 = sbr.rel (%p479) target = $region32
      $region31: #{efficientnet_b4_attention_forward.3} parent=27 // pred_region
        _
      $region32: #{efficientnet_b4_attention_forward.3} parent=27 // pred_fallthru
        _
    $region28: #{efficientnet_b4_attention_forward.3} parent=5 // pred_fallthru
      _
    %p482 = scmp.le.s32.totalorder 2, %s8
    // Predicated region
    $region33: #{efficientnet_b4_attention_forward.3} parent=5 // pred_check
      %p483 = pneg %p482
    $region34: #{efficientnet_b4_attention_forward.3} parent=5 // pred_check_branch
      %485 = sbr.rel (%p483) target = $region36
    $region35: #{efficientnet_b4_attention_forward.3} parent=5 // pred_region
      %s486 = ssub.s32 %s8, 2
      // Predicated region
      $region37: #{efficientnet_b4_attention_forward.3} parent=35 // pred_check
        %p487 = pneg %p84
      $region38: #{efficientnet_b4_attention_forward.3} parent=35 // pred_check_branch
        %489 = sbr.rel (%p487) target = $region40
      $region39: #{efficientnet_b4_attention_forward.3} parent=35 // pred_region
        %p490 = scmp.lt.s32.totalorder %s14, 1
        %s491 = scalar_select %p490, %s14, 1
        %s492 = smul.addr %s491, 8
        %s493 = smul.addr %s492, 4
        %s494 = scalar_lea.vmem %s2, %s493
      $region40: #{efficientnet_b4_attention_forward.3} parent=35 // pred_fallthru
        _
    $region36: #{efficientnet_b4_attention_forward.3} parent=5 // pred_fallthru
      _
  $region6: #{efficientnet_b4_attention_forward.3} parent=0 // loop_footer
    %s12 = sadd.s32 1, %s8
  $region7: #{efficientnet_b4_attention_forward.3} parent=0 // loop_footer_branch
    %7 = sbr.rel target = $region3
  $region8: #{efficientnet_b4_attention_forward.3} parent=0 // loop_exit
    _

// kernel: efficientnet_b4_attention_forward.4
$region0: #{efficientnet_b4_attention_forward.4}
  #allocation0 [shape = 'u32[]', space=smem, size = 0x4, offset = 0x4, fixed_abs, tag = 'smem constant byte address 0x4 - core index']
  #allocation1 [shape = 'u32[144,128]{1,0:T(1,128)}', space=vmem, size = 0x12000, scoped, tag = 'internal scratch']
  %s0 = inlined_call_operand.vmem [shape: bf16[16,72], index: 0, kind: input, shape index: {}]
  %s1 = inlined_call_operand.vmem [shape: bf16[2,72,256], index: 1, kind: input, shape index: {}]
  %s2 = inlined_call_operand.vmem [shape: bf16[2,16,256], index: 2, kind: output, shape index: {}]
  %s3 = sld [smem:[#allocation0]]
  $region41: #{efficientnet_b4_attention_forward.4} parent=0
    _
  %s5 = ssub.s32 1, %s3
  %s6 = scalar_select 0, %s5, %s3
  loop: start=0, step=1, limit=4
  $region2: #{efficientnet_b4_attention_forward.4} parent=0 // loop_pre_header
    _
  $region3: #{efficientnet_b4_attention_forward.4} parent=0 // loop_header
    %s8 = sphi 0, %s12
    %p9 = scmp.ge.s32.totalorder %s8, 4
    %s16 = sphi 0, %s16
    %s18 = sphi 0, %s16
    %s19 = sphi 0, %s18
    %s33 = sphi 0, %s19
    %s39 = sphi 0, %s41
    %s42 = sphi 0, %s39
    %s43 = sphi 0, %s42
    %s59 = sphi 0, %s43
    %s65 = sphi 0, %s67
    %s68 = sphi 0, %s65
    %s69 = sphi 0, %s68
    %s85 = sphi 0, %s69
  $region4: #{efficientnet_b4_attention_forward.4} parent=0 // loop_header_branch
    %11 = sbr.rel (%p9) target = $region8
  $region5: #{efficientnet_b4_attention_forward.4} parent=0 // loop_body
    %s13 = ssub.s32 %s8, 1
    %s14 = ssub.s32 %s8, 2
    %s15 = sadd.s32 %s8, 1
    %s17 = sadd.s32 %s16, 1
    %p20 = scmp.eq.s32.totalorder %s8, 1
    %p21 = scmp.ne.s32.totalorder %s16, %s18
    %p22 = scmp.eq.s32.totalorder %s8, 0
    %p23 = por %p21, %p22
    %p24 = scmp.ne.s32.totalorder %s16, %s18
    %p25 = scmp.eq.s32.totalorder %s13, 1
    %p26 = por %p24, %p25
    %p27 = scmp.ne.s32.totalorder %s18, %s19
    %p28 = scmp.eq.s32.totalorder %s13, 0
    %p29 = por %p27, %p28
    %p30 = scmp.ne.s32.totalorder %s18, %s19
    %p31 = scmp.eq.s32.totalorder %s14, 1
    %p32 = por %p30, %p31
    %p34 = scmp.ne.s32.totalorder %s19, %s33
    %p35 = scmp.eq.s32.totalorder %s14, 0
    %p36 = por %p34, %p35
    %s37 = ssub.s32 %s8, %s15
    %p38 = scmp.eq.s32.totalorder %s37, 0
    %s40 = sadd.s32 %s39, 1
    %s41 = scalar_select %p38, %s39, %s40
    %p44 = pneg %p38
    %p45 = scmp.eq.s32.totalorder %s8, 1
    %p46 = por %p44, %p45
    %p47 = scmp.ne.s32.totalorder %s39, %s42
    %p48 = scmp.eq.s32.totalorder %s8, 0
    %p49 = por %p47, %p48
    %p50 = scmp.ne.s32.totalorder %s39, %s42
    %p51 = scmp.eq.s32.totalorder %s13, 1
    %p52 = por %p50, %p51
    %p53 = scmp.ne.s32.totalorder %s42, %s43
    %p54 = scmp.eq.s32.totalorder %s13, 0
    %p55 = por %p53, %p54
    %p56 = scmp.ne.s32.totalorder %s42, %s43
    %p57 = scmp.eq.s32.totalorder %s14, 1
    %p58 = por %p56, %p57
    %p60 = scmp.ne.s32.totalorder %s43, %s59
    %p61 = scmp.eq.s32.totalorder %s14, 0
    %p62 = por %p60, %p61
    %s63 = ssub.s32 %s8, %s15
    %p64 = scmp.eq.s32.totalorder %s63, 0
    %s66 = sadd.s32 %s65, 1
    %s67 = scalar_select %p64, %s65, %s66
    %p70 = pneg %p64
    %p71 = scmp.eq.s32.totalorder %s8, 1
    %p72 = por %p70, %p71
    %p73 = scmp.ne.s32.totalorder %s65, %s68
    %p74 = scmp.eq.s32.totalorder %s8, 0
    %p75 = por %p73, %p74
    %p76 = scmp.ne.s32.totalorder %s65, %s68
    %p77 = scmp.eq.s32.totalorder %s13, 1
    %p78 = por %p76, %p77
    %p79 = scmp.ne.s32.totalorder %s68, %s69
    %p80 = scmp.eq.s32.totalorder %s13, 0
    %p81 = por %p79, %p80
    %p82 = scmp.ne.s32.totalorder %s68, %s69
    %p83 = scmp.eq.s32.totalorder %s14, 1
    %p84 = por %p82, %p83
    %p86 = scmp.ne.s32.totalorder %s69, %s85
    %p87 = scmp.eq.s32.totalorder %s14, 0
    %p88 = por %p86, %p87
    %p89 = scmp.le.s32.totalorder 1, %s8
    %p90 = scmp.lt.s32.totalorder %s8, 3
    %p91 = pnand %p89, %p90
    %p92 = pneg %p91
    // Predicated region
    $region9: #{efficientnet_b4_attention_forward.4} parent=5 // pred_check
      _
    $region10: #{efficientnet_b4_attention_forward.4} parent=5 // pred_check_branch
      %94 = sbr.rel (%p91) target = $region12
    $region11: #{efficientnet_b4_attention_forward.4} parent=5 // pred_region
      %s95 = ssub.s32 %s8, 1
      // Predicated region
      $region13: #{efficientnet_b4_attention_forward.4} parent=11 // pred_check
        %p96 = pneg %p29
      $region14: #{efficientnet_b4_attention_forward.4} parent=11 // pred_check_branch
        %98 = sbr.rel (%p96) target = $region16
      $region15: #{efficientnet_b4_attention_forward.4} parent=11 // pred_region
        _
      $region16: #{efficientnet_b4_attention_forward.4} parent=11 // pred_fallthru
        _
    $region12: #{efficientnet_b4_attention_forward.4} parent=5 // pred_fallthru
      _
    %p99 = scmp.lt.s32.totalorder %s8, 2
    // Predicated region
    $region17: #{efficientnet_b4_attention_forward.4} parent=5 // pred_check
      %p100 = pneg %p99
    $region18: #{efficientnet_b4_attention_forward.4} parent=5 // pred_check_branch
      %102 = sbr.rel (%p100) target = $region20
    $region19: #{efficientnet_b4_attention_forward.4} parent=5 // pred_region
      // Predicated region
      $region21: #{efficientnet_b4_attention_forward.4} parent=19 // pred_check
        %p103 = pneg %p49
      $region22: #{efficientnet_b4_attention_forward.4} parent=19 // pred_check_branch
        %105 = sbr.rel (%p103) target = $region24
      $region23: #{efficientnet_b4_attention_forward.4} parent=19 // pred_region
        %p106 = scmp.lt.s32.totalorder %s8, 1
        %s107 = scalar_select %p106, %s8, 1
        %s108 = smul.addr %s107, 18
        %s109 = smul.addr %s108, 4
        %s110 = scalar_lea.vmem %s1, %s109
      $region24: #{efficientnet_b4_attention_forward.4} parent=19 // pred_fallthru
        _
    $region20: #{efficientnet_b4_attention_forward.4} parent=5 // pred_fallthru
      _
    %p111 = scmp.le.s32.totalorder 1, %s8
    %p112 = scmp.lt.s32.totalorder %s8, 3
    %p113 = pnand %p111, %p112
    %p114 = pneg %p113
    // Predicated region
    $region25: #{efficientnet_b4_attention_forward.4} parent=5 // pred_check
      _
    $region26: #{efficientnet_b4_attention_forward.4} parent=5 // pred_check_branch
      %116 = sbr.rel (%p113) target = $region28
    $region27: #{efficientnet_b4_attention_forward.4} parent=5 // pred_region
      %s117 = ssub.s32 %s8, 1
      %p118 = pneg %p29
      %p119 = pneg %p26
      %p120 = scmp.lt.s32.totalorder %s13, 1
      %s121 = scalar_select %p120, %s13, 1
      %s122 = smul.addr %s121, 18
      %s123 = smul.addr %s122, 4
      %s124 = scalar_lea.vmem %s1, %s123
      %p125 = pneg %p55
      %p126 = pneg %p52
      %p127 = pneg %p81
      %p128 = pneg %p78
      %p129 = scmp.lt.s32.totalorder %s13, 1
      %s130 = scalar_select %p129, %s13, 1
      %s131 = smul.addr %s130, 4
      %s132 = smul.addr %s131, 4
      %s133 = scalar_lea.vmem %s2, %s132
      %p134 = scmp.lt.s32.totalorder %s13, 1
      %s135 = scalar_select %p134, %s13, 1
      %s136 = smul.addr %s135, 18
      %s137 = smul.addr %s136, 4
      %s138 = scalar_lea.vmem %s1, %s137
      %p139 = scmp.lt.s32.totalorder %s13, 1
      %s140 = scalar_select %p139, %s13, 1
      %s141 = smul.addr %s140, 4
      %s142 = smul.addr %s141, 4
      %s143 = scalar_lea.vmem %s2, %s142
      %v145 = vld [vmem:[%s0] sm:$0xf]
      %v146 = vld [vmem:[%s0 + $0x4] sm:$0xf]
      %v147 = vld [vmem:[%s138] sm:$0xff]
      %v148 = vld [vmem:[%s138 + $0x8] sm:$0xff]
      %v149 = vld [vmem:[%s138 + $0x10] sm:$0xff]
      %v150 = vld [vmem:[%s138 + $0x18] sm:$0xff]
      %v151 = vld [vmem:[%s138 + $0x20] sm:$0xff]
      %v152 = vld [vmem:[%s138 + $0x28] sm:$0xff]
      %v153 = vld [vmem:[%s138 + $0x30] sm:$0xff]
      %v154 = vld [vmem:[%s138 + $0x38] sm:$0xff]
      %v155 = vld [vmem:[%s138 + $0x40] sm:$0xff]
      %v158 = vunpack.c.l.b16 %v145
      %v159 = vunpack.c.l.b16 %v146
      %v160 = vpack.c.b16 %v159, %v158
      %v170 = vunpack.c.l.b16 %v147
      %v171 = vunpack.c.h.b16 %v147
      %v172 = vunpack.c.l.b16 %v148
      %v173 = vunpack.c.h.b16 %v148
      %v174 = vunpack.c.l.b16 %v149
      %v175 = vunpack.c.h.b16 %v149
      %v176 = vunpack.c.l.b16 %v150
      %v177 = vunpack.c.h.b16 %v150
      %v178 = vunpack.c.l.b16 %v151
      %v179 = vunpack.c.h.b16 %v151
      %v180 = vunpack.c.l.b16 %v152
      %v181 = vunpack.c.h.b16 %v152
      %v182 = vunpack.c.l.b16 %v153
      %v183 = vunpack.c.h.b16 %v153
      %v184 = vunpack.c.l.b16 %v154
      %v185 = vunpack.c.h.b16 %v154
      %v186 = vunpack.c.l.b16 %v155
      %v187 = vunpack.c.h.b16 %v155
      %v188 = vpack.c.b16 %v172, %v170
      %v189 = vpack.c.b16 %v173, %v171
      %v190 = vpack.c.b16 %v176, %v174
      %v191 = vpack.c.b16 %v177, %v175
      %v192 = vpack.c.b16 %v180, %v178
      %v193 = vpack.c.b16 %v181, %v179
      %v194 = vpack.c.b16 %v184, %v182
      %v195 = vpack.c.b16 %v185, %v183
      %v196 = vpack.c.b16 %v186, %v186
      %v197 = vpack.c.b16 %v187, %v187
      %vm206 = vcmask 588800
      %v208 = vsel %vm206, %v160, 0
      %vm210 = vcmask 1043456
      %v212 = vsel %vm210, %v196, 0
      %v215 = vsel %vm210, %v197, 0
      %217 = vmatprep.subr.bf16.mxu0 %v189
      %218 = vmatpush1.bf16.msra.mxu0 %v188
      %219 = vmatprep.subr.bf16.mxu0 %v191
      %220 = vmatpush1.bf16.msra.mxu0 %v190
      %221 = vmatprep.subr.bf16.mxu0 %v193
      %222 = vmatpush1.bf16.msra.mxu0 %v192
      %223 = vmatprep.subr.bf16.mxu0 %v195
      %224 = vmatpush1.bf16.msra.mxu0 %v194
      %225 = vmatprep.subr.bf16.mxu0 %v215
      %226 = vmatpush1.bf16.msra.mxu0 %v212
      %227 = vmatprep.subr.bf16.mxu0 0
      %228 = vmatpush1.bf16.msra.mxu0 0
      %229 = vmatprep.subr.bf16.mxu0 0
      %230 = vmatpush1.bf16.msra.mxu0 0
      %231 = vmatprep.subr.bf16.mxu0 0
      %232 = vmatpush1.bf16.msra.mxu0 0
      %233 = vmatprep.subr.bf16.mxu0 0
      %234 = vmatpush1.bf16.msra.mxu0 0
      %235 = vmatprep.subr.bf16.mxu0 0
      %236 = vmatpush1.bf16.msra.mxu0 0
      %237 = vmatprep.subr.bf16.mxu0 0
      %238 = vmatpush1.bf16.msra.mxu0 0
      %239 = vmatprep.subr.bf16.mxu0 0
      %240 = vmatpush1.bf16.msra.mxu0 0
      %241 = vmatprep.subr.bf16.mxu0 0
      %242 = vmatpush1.bf16.msra.mxu0 0
      %243 = vmatprep.subr.bf16.mxu0 0
      %244 = vmatpush1.bf16.msra.mxu0 0
      %245 = vmatprep.subr.bf16.mxu0 0
      %246 = vmatpush1.bf16.msra.mxu0 0
      %247 = vmatprep.subr.bf16.mxu0 0
      %248 = vmatpush1.bf16.msra.mxu0 0
      %249 = vmatprep.mubr.bf16.mxu0 0
      %250 = vmatmul.mubr.bf16.gmra.mrb[0].mxu0 %v208
      %v251 = vpop.f32.mrb[0].mxu0
      %v252 = vadd.f32 0.0, %v251
      %v253 = vpop.f32.mrb[0].mxu0
      %v254 = vadd.f32 0.0, %v253
      %v255 = vpop.f32.mrb[0].mxu0
      %v256 = vadd.f32 0.0, %v255
      %v257 = vpop.f32.mrb[0].mxu0
      %v258 = vadd.f32 0.0, %v257
      %259 = vdwg.mxu0
      %v260 = vmax.f32 %v252, 0.0
      %v261 = vmax.f32 %v254, 0.0
      %v262 = vmax.f32 %v256, 0.0
      %v263 = vmax.f32 %v258, 0.0
      %v264 = vpack.c.bf16 %v262, %v260
      %v265 = vpack.c.bf16 %v263, %v261
      %v268 = vunpack.c.l.b16 %v264
      %v269 = vunpack.c.l.b16 %v265
      %v270 = vunpack.c.h.b16 %v264
      %v271 = vunpack.c.h.b16 %v265
      %v272 = vpack.c.b16 %v269, %v268
      %v273 = vpack.c.b16 %v271, %v270
      %276 = vst [vmem:[%s143] sm:$0xff] %v272
      %277 = vst [vmem:[%s143 + $0x8] sm:$0xff] %v273
      %p278 = scmp.lt.s32.totalorder %s13, 1
      %s279 = scalar_select %p278, %s13, 1
      %s280 = smul.addr %s279, 4
      %s281 = smul.addr %s280, 4
      %s282 = scalar_lea.vmem %s2, %s281
      // Predicated region
      $region29: #{efficientnet_b4_attention_forward.4} parent=27 // pred_check
        %p283 = pneg %p78
      $region30: #{efficientnet_b4_attention_forward.4} parent=27 // pred_check_branch
        %285 = sbr.rel (%p283) target = $region32
      $region31: #{efficientnet_b4_attention_forward.4} parent=27 // pred_region
        _
      $region32: #{efficientnet_b4_attention_forward.4} parent=27 // pred_fallthru
        _
    $region28: #{efficientnet_b4_attention_forward.4} parent=5 // pred_fallthru
      _
    %p286 = scmp.le.s32.totalorder 2, %s8
    // Predicated region
    $region33: #{efficientnet_b4_attention_forward.4} parent=5 // pred_check
      %p287 = pneg %p286
    $region34: #{efficientnet_b4_attention_forward.4} parent=5 // pred_check_branch
      %289 = sbr.rel (%p287) target = $region36
    $region35: #{efficientnet_b4_attention_forward.4} parent=5 // pred_region
      %s290 = ssub.s32 %s8, 2
      // Predicated region
      $region37: #{efficientnet_b4_attention_forward.4} parent=35 // pred_check
        %p291 = pneg %p84
      $region38: #{efficientnet_b4_attention_forward.4} parent=35 // pred_check_branch
        %293 = sbr.rel (%p291) target = $region40
      $region39: #{efficientnet_b4_attention_forward.4} parent=35 // pred_region
        %p294 = scmp.lt.s32.totalorder %s14, 1
        %s295 = scalar_select %p294, %s14, 1
        %s296 = smul.addr %s295, 4
        %s297 = smul.addr %s296, 4
        %s298 = scalar_lea.vmem %s2, %s297
      $region40: #{efficientnet_b4_attention_forward.4} parent=35 // pred_fallthru
        _
    $region36: #{efficientnet_b4_attention_forward.4} parent=5 // pred_fallthru
      _
  $region6: #{efficientnet_b4_attention_forward.4} parent=0 // loop_footer
    %s12 = sadd.s32 1, %s8
  $region7: #{efficientnet_b4_attention_forward.4} parent=0 // loop_footer_branch
    %7 = sbr.rel target = $region3
  $region8: #{efficientnet_b4_attention_forward.4} parent=0 // loop_exit
    _

// kernel: efficientnet_b4_attention_forward.5
$region0: #{efficientnet_b4_attention_forward.5}
  #allocation0 [shape = 'u32[]', space=smem, size = 0x4, offset = 0x4, fixed_abs, tag = 'smem constant byte address 0x4 - core index']
  #allocation1 [shape = 'u32[144,128]{1,0:T(1,128)}', space=vmem, size = 0x12000, scoped, tag = 'internal scratch']
  %s0 = inlined_call_operand.vmem [shape: bf16[144,128], index: 0, kind: input, shape index: {}]
  %s1 = inlined_call_operand.vmem [shape: bf16[24,144], index: 1, kind: input, shape index: {}]
  %s2 = inlined_call_operand.vmem [shape: f32[288,24], index: 2, kind: input, shape index: {}]
  %s3 = inlined_call_operand.vmem [shape: f32[9,128,32], index: 3, kind: input, shape index: {}]
  %s4 = inlined_call_operand.vmem [shape: f32[2,32], index: 4, kind: input, shape index: {}]
  %s5 = inlined_call_operand.vmem [shape: f32[32,2], index: 5, kind: input, shape index: {}]
  %s6 = inlined_call_operand.vmem [shape: f32[32,2], index: 6, kind: input, shape index: {}]
  %s7 = inlined_call_operand.vmem [shape: f32[2,32], index: 7, kind: input, shape index: {}]
  %s8 = inlined_call_operand.vmem [shape: f32[432,32], index: 8, kind: input, shape index: {}]
  %s9 = inlined_call_operand.vmem [shape: f32[9,32,8], index: 9, kind: input, shape index: {}]
  %s10 = inlined_call_operand.vmem [shape: f32[8,2], index: 10, kind: input, shape index: {}]
  %s11 = inlined_call_operand.vmem [shape: f32[48,1], index: 11, kind: input, shape index: {}]
  %s12 = inlined_call_operand.vmem [shape: f32[48,1], index: 12, kind: input, shape index: {}]
  %s13 = inlined_call_operand.vmem [shape: f32[10,48], index: 13, kind: input, shape index: {}]
  %s14 = inlined_call_operand.vmem [shape: f32[10,1], index: 14, kind: input, shape index: {}]
  %s15 = inlined_call_operand.vmem [shape: bf16[24,128], index: 15, kind: output, shape index: {0}]
  %s16 = inlined_call_operand.vmem [shape: bf16[32,32], index: 16, kind: output, shape index: {1}]
  %s17 = inlined_call_operand.vmem [shape: bf16[48,8], index: 17, kind: output, shape index: {2}]
  %s18 = inlined_call_operand.vmem [shape: f32[10,2], index: 18, kind: output, shape index: {3}]
  %19 = xla_tuple %s15, %s16, %s17, %s18
  %s20 = sld [smem:[#allocation0]]
  $region94: #{efficientnet_b4_attention_forward.5} parent=0
    _
  %s22 = ssub.s32 1, %s20
  %s23 = scalar_select 0, %s22, %s20
  // Predicated region
  $region2: #{efficientnet_b4_attention_forward.5} parent=0 // pred_check
    _
  $region3: #{efficientnet_b4_attention_forward.5} parent=0 // pred_check_branch
    %25 = sbr.rel (0) target = $region5
  $region4: #{efficientnet_b4_attention_forward.5} parent=0 // pred_region
    _
  $region5: #{efficientnet_b4_attention_forward.5} parent=0 // pred_fallthru
    _
  // Predicated region
  $region6: #{efficientnet_b4_attention_forward.5} parent=0 // pred_check
    _
  $region7: #{efficientnet_b4_attention_forward.5} parent=0 // pred_check_branch
    %27 = sbr.rel (0) target = $region9
  $region8: #{efficientnet_b4_attention_forward.5} parent=0 // pred_region
    _
  $region9: #{efficientnet_b4_attention_forward.5} parent=0 // pred_fallthru
    _
  // Predicated region
  $region10: #{efficientnet_b4_attention_forward.5} parent=0 // pred_check
    _
  $region11: #{efficientnet_b4_attention_forward.5} parent=0 // pred_check_branch
    %29 = sbr.rel (0) target = $region13
  $region12: #{efficientnet_b4_attention_forward.5} parent=0 // pred_region
    _
  $region13: #{efficientnet_b4_attention_forward.5} parent=0 // pred_fallthru
    _
  // Predicated region
  $region14: #{efficientnet_b4_attention_forward.5} parent=0 // pred_check
    _
  $region15: #{efficientnet_b4_attention_forward.5} parent=0 // pred_check_branch
    %31 = sbr.rel (0) target = $region17
  $region16: #{efficientnet_b4_attention_forward.5} parent=0 // pred_region
    _
  $region17: #{efficientnet_b4_attention_forward.5} parent=0 // pred_fallthru
    _
  // Predicated region
  $region18: #{efficientnet_b4_attention_forward.5} parent=0 // pred_check
    _
  $region19: #{efficientnet_b4_attention_forward.5} parent=0 // pred_check_branch
    %33 = sbr.rel (0) target = $region21
  $region20: #{efficientnet_b4_attention_forward.5} parent=0 // pred_region
    _
  $region21: #{efficientnet_b4_attention_forward.5} parent=0 // pred_fallthru
    _
  // Predicated region
  $region22: #{efficientnet_b4_attention_forward.5} parent=0 // pred_check
    _
  $region23: #{efficientnet_b4_attention_forward.5} parent=0 // pred_check_branch
    %35 = sbr.rel (0) target = $region25
  $region24: #{efficientnet_b4_attention_forward.5} parent=0 // pred_region
    _
  $region25: #{efficientnet_b4_attention_forward.5} parent=0 // pred_fallthru
    _
  // Predicated region
  $region26: #{efficientnet_b4_attention_forward.5} parent=0 // pred_check
    _
  $region27: #{efficientnet_b4_attention_forward.5} parent=0 // pred_check_branch
    %37 = sbr.rel (0) target = $region29
  $region28: #{efficientnet_b4_attention_forward.5} parent=0 // pred_region
    _
  $region29: #{efficientnet_b4_attention_forward.5} parent=0 // pred_fallthru
    _
  // Predicated region
  $region30: #{efficientnet_b4_attention_forward.5} parent=0 // pred_check
    _
  $region31: #{efficientnet_b4_attention_forward.5} parent=0 // pred_check_branch
    %39 = sbr.rel (0) target = $region33
  $region32: #{efficientnet_b4_attention_forward.5} parent=0 // pred_region
    _
  $region33: #{efficientnet_b4_attention_forward.5} parent=0 // pred_fallthru
    _
  // Predicated region
  $region34: #{efficientnet_b4_attention_forward.5} parent=0 // pred_check
    _
  $region35: #{efficientnet_b4_attention_forward.5} parent=0 // pred_check_branch
    %41 = sbr.rel (0) target = $region37
  $region36: #{efficientnet_b4_attention_forward.5} parent=0 // pred_region
    _
  $region37: #{efficientnet_b4_attention_forward.5} parent=0 // pred_fallthru
    _
  // Predicated region
  $region38: #{efficientnet_b4_attention_forward.5} parent=0 // pred_check
    _
  $region39: #{efficientnet_b4_attention_forward.5} parent=0 // pred_check_branch
    %43 = sbr.rel (0) target = $region41
  $region40: #{efficientnet_b4_attention_forward.5} parent=0 // pred_region
    _
  $region41: #{efficientnet_b4_attention_forward.5} parent=0 // pred_fallthru
    _
  // Predicated region
  $region42: #{efficientnet_b4_attention_forward.5} parent=0 // pred_check
    _
  $region43: #{efficientnet_b4_attention_forward.5} parent=0 // pred_check_branch
    %45 = sbr.rel (0) target = $region45
  $region44: #{efficientnet_b4_attention_forward.5} parent=0 // pred_region
    _
  $region45: #{efficientnet_b4_attention_forward.5} parent=0 // pred_fallthru
    _
  // Predicated region
  $region46: #{efficientnet_b4_attention_forward.5} parent=0 // pred_check
    _
  $region47: #{efficientnet_b4_attention_forward.5} parent=0 // pred_check_branch
    %47 = sbr.rel (0) target = $region49
  $region48: #{efficientnet_b4_attention_forward.5} parent=0 // pred_region
    _
  $region49: #{efficientnet_b4_attention_forward.5} parent=0 // pred_fallthru
    _
  // Predicated region
  $region50: #{efficientnet_b4_attention_forward.5} parent=0 // pred_check
    _
  $region51: #{efficientnet_b4_attention_forward.5} parent=0 // pred_check_branch
    %49 = sbr.rel (0) target = $region53
  $region52: #{efficientnet_b4_attention_forward.5} parent=0 // pred_region
    _
  $region53: #{efficientnet_b4_attention_forward.5} parent=0 // pred_fallthru
    _
  // Predicated region
  $region54: #{efficientnet_b4_attention_forward.5} parent=0 // pred_check
    _
  $region55: #{efficientnet_b4_attention_forward.5} parent=0 // pred_check_branch
    %51 = sbr.rel (0) target = $region57
  $region56: #{efficientnet_b4_attention_forward.5} parent=0 // pred_region
    _
  $region57: #{efficientnet_b4_attention_forward.5} parent=0 // pred_fallthru
    _
  // Predicated region
  $region58: #{efficientnet_b4_attention_forward.5} parent=0 // pred_check
    _
  $region59: #{efficientnet_b4_attention_forward.5} parent=0 // pred_check_branch
    %53 = sbr.rel (0) target = $region61
  $region60: #{efficientnet_b4_attention_forward.5} parent=0 // pred_region
    _
  $region61: #{efficientnet_b4_attention_forward.5} parent=0 // pred_fallthru
    _
  %v55 = vld [vmem:[%s1] sm:$0xff]
  %v56 = vld [vmem:[%s1 + $0x8] sm:$0xff]
  %v57 = vld [vmem:[%s1 + $0x10] sm:$0xff]
  %v58 = vld [vmem:[%s0] sm:$0xf]
  %v59 = vld [vmem:[%s0 + $0x4] sm:$0xf]
  %v60 = vld [vmem:[%s0 + $0x8] sm:$0xf]
  %v61 = vld [vmem:[%s0 + $0xc] sm:$0xf]
  %v62 = vld [vmem:[%s0 + $0x10] sm:$0xf]
  %v63 = vld [vmem:[%s0 + $0x14] sm:$0xf]
  %v64 = vld [vmem:[%s0 + $0x18] sm:$0xf]
  %v65 = vld [vmem:[%s0 + $0x1c] sm:$0xf]
  %v66 = vld [vmem:[%s0 + $0x20] sm:$0xf]
  %v67 = vld [vmem:[%s0 + $0x24] sm:$0xf]
  %v68 = vld [vmem:[%s0 + $0x28] sm:$0xf]
  %v69 = vld [vmem:[%s0 + $0x2c] sm:$0xf]
  %v70 = vld [vmem:[%s0 + $0x30] sm:$0xf]
  %v71 = vld [vmem:[%s0 + $0x34] sm:$0xf]
  %v72 = vld [vmem:[%s0 + $0x38] sm:$0xf]
  %v73 = vld [vmem:[%s0 + $0x3c] sm:$0xf]
  %v74 = vld [vmem:[%s0 + $0x40] sm:$0xf]
  %v75 = vld [vmem:[%s0 + $0x44] sm:$0xf]
  %v79 = vunpack.c.l.b16 %v55
  %v80 = vunpack.c.h.b16 %v55
  %v81 = vunpack.c.l.b16 %v56
  %v82 = vunpack.c.h.b16 %v56
  %v83 = vunpack.c.l.b16 %v57
  %v84 = vunpack.c.h.b16 %v57
  %v85 = vpack.c.b16 %v81, %v79
  %v86 = vpack.c.b16 %v82, %v80
  %v87 = vpack.c.b16 %v83, %v83
  %v88 = vpack.c.b16 %v84, %v84
  %v109 = vunpack.c.l.b16 %v58
  %v110 = vunpack.c.l.b16 %v59
  %v111 = vunpack.c.l.b16 %v60
  %v112 = vunpack.c.l.b16 %v61
  %v113 = vunpack.c.l.b16 %v62
  %v114 = vunpack.c.l.b16 %v63
  %v115 = vunpack.c.l.b16 %v64
  %v116 = vunpack.c.l.b16 %v65
  %v117 = vunpack.c.l.b16 %v66
  %v118 = vunpack.c.l.b16 %v67
  %v119 = vunpack.c.l.b16 %v68
  %v120 = vunpack.c.l.b16 %v69
  %v121 = vunpack.c.l.b16 %v70
  %v122 = vunpack.c.l.b16 %v71
  %v123 = vunpack.c.l.b16 %v72
  %v124 = vunpack.c.l.b16 %v73
  %v125 = vunpack.c.l.b16 %v74
  %v126 = vunpack.c.l.b16 %v75
  %v127 = vpack.c.b16 %v110, %v109
  %v128 = vpack.c.b16 %v112, %v111
  %v129 = vpack.c.b16 %v114, %v113
  %v130 = vpack.c.b16 %v116, %v115
  %v131 = vpack.c.b16 %v118, %v117
  %v132 = vpack.c.b16 %v120, %v119
  %v133 = vpack.c.b16 %v122, %v121
  %v134 = vpack.c.b16 %v124, %v123
  %v135 = vpack.c.b16 %v126, %v125
  %vm145 = vcmask 130048
  %v147 = vsel %vm145, %v86, 0
  %v150 = vsel %vm145, %v88, 0
  %152 = vmatprep.subr.bf16.mxu0 0
  %153 = vmatpush1.bf16.msra.mxu0 %v127
  %154 = vmatprep.subr.bf16.mxu0 0
  %155 = vmatpush1.bf16.msra.mxu0 %v128
  %156 = vmatprep.subr.bf16.mxu0 0
  %157 = vmatpush1.bf16.msra.mxu0 %v129
  %158 = vmatprep.subr.bf16.mxu0 0
  %159 = vmatpush1.bf16.msra.mxu0 %v130
  %160 = vmatprep.subr.bf16.mxu0 0
  %161 = vmatpush1.bf16.msra.mxu0 %v131
  %162 = vmatprep.subr.bf16.mxu0 0
  %163 = vmatpush1.bf16.msra.mxu0 %v132
  %164 = vmatprep.subr.bf16.mxu0 0
  %165 = vmatpush1.bf16.msra.mxu0 %v133
  %166 = vmatprep.subr.bf16.mxu0 0
  %167 = vmatpush1.bf16.msra.mxu0 %v134
  %168 = vmatprep.subr.bf16.mxu0 0
  %169 = vmatpush1.bf16.msra.mxu0 %v135
  %170 = vmatprep.subr.bf16.mxu0 0
  %171 = vmatpush1.bf16.msra.mxu0 0
  %172 = vmatprep.subr.bf16.mxu0 0
  %173 = vmatpush1.bf16.msra.mxu0 0
  %174 = vmatprep.subr.bf16.mxu0 0
  %175 = vmatpush1.bf16.msra.mxu0 0
  %176 = vmatprep.subr.bf16.mxu0 0
  %177 = vmatpush1.bf16.msra.mxu0 0
  %178 = vmatprep.subr.bf16.mxu0 0
  %179 = vmatpush1.bf16.msra.mxu0 0
  %180 = vmatprep.subr.bf16.mxu0 0
  %181 = vmatpush1.bf16.msra.mxu0 0
  %182 = vmatprep.subr.bf16.mxu0 0
  %183 = vmatpush1.bf16.msra.mxu0 0
  %184 = vmatprep.mubr.bf16.mxu0 %v147
  %185 = vmatmul.mubr.bf16.gmra.mrb[0].mxu0 %v85
  %v186 = vpop.f32.mrb[0].mxu0
  %v187 = vadd.f32 0.0, %v186
  %v188 = vpop.f32.mrb[0].mxu0
  %v189 = vpop.f32.mrb[0].mxu0
  %v190 = vadd.f32 0.0, %v189
  %v191 = vpop.f32.mrb[0].mxu0
  %192 = vmatprep.mubr.bf16.mxu0 %v150
  %193 = vmatmul.mubr.bf16.gmra.mrb[0].mxu0 %v87
  %v194 = vpop.f32.mrb[0].mxu0
  %v195 = vadd.f32 0.0, %v194
  %v196 = vpop.f32.mrb[0].mxu0
  %v197 = vpop.f32.mrb[0].mxu0
  %v198 = vpop.f32.mrb[0].mxu0
  %199 = vdwg.mxu0
  %v200 = vmax.f32 %v187, 0.0
  %v201 = vmax.f32 %v190, 0.0
  %v202 = vmax.f32 %v195, 0.0
  %v203 = vpack.c.bf16 %v201, %v200
  %v204 = vpack.c.bf16 %v202, %v202
  %v207 = vunpack.c.l.b16 %v203
  %v208 = vunpack.c.h.b16 %v203
  %v209 = vunpack.c.l.b16 %v204
  %v210 = vpack.c.b16 %v207, %v207
  %v211 = vpack.c.b16 %v208, %v208
  %v212 = vpack.c.b16 %v209, %v209
  %216 = vst [vmem:[%s15] sm:$0xf] %v210
  %217 = vst [vmem:[%s15 + $0x4] sm:$0xf] %v211
  %218 = vst [vmem:[%s15 + $0x8] sm:$0xf] %v212
  %v219 = vld [vmem:[%s2] sm:$0xff]
  %v220 = vld [vmem:[%s2 + $0x8] sm:$0xff]
  %v221 = vld [vmem:[%s2 + $0x10] sm:$0xff]
  %v222 = vld [vmem:[%s2 + $0x18] sm:$0xff]
  %v223 = vld [vmem:[%s2 + $0x20] sm:$0xff]
  %v224 = vld [vmem:[%s2 + $0x28] sm:$0xff]
  %v225 = vld [vmem:[%s2 + $0x30] sm:$0xff]
  %v226 = vld [vmem:[%s2 + $0x38] sm:$0xff]
  %v227 = vld [vmem:[%s2 + $0x40] sm:$0xff]
  %v228 = vld [vmem:[%s2 + $0x48] sm:$0xff]
  %v229 = vld [vmem:[%s2 + $0x50] sm:$0xff]
  %v230 = vld [vmem:[%s2 + $0x58] sm:$0xff]
  %v231 = vld [vmem:[%s2 + $0x60] sm:$0xff]
  %v232 = vld [vmem:[%s2 + $0x68] sm:$0xff]
  %v233 = vld [vmem:[%s2 + $0x70] sm:$0xff]
  %v234 = vld [vmem:[%s2 + $0x78] sm:$0xff]
  %v235 = vld [vmem:[%s2 + $0x80] sm:$0xff]
  %v236 = vld [vmem:[%s2 + $0x88] sm:$0xff]
  %v237 = vld [vmem:[%s2 + $0x90] sm:$0xff]
  %v238 = vld [vmem:[%s2 + $0x98] sm:$0xff]
  %v239 = vld [vmem:[%s2 + $0xa0] sm:$0xff]
  %v240 = vld [vmem:[%s2 + $0xa8] sm:$0xff]
  %v241 = vld [vmem:[%s2 + $0xb0] sm:$0xff]
  %v242 = vld [vmem:[%s2 + $0xb8] sm:$0xff]
  %v243 = vld [vmem:[%s2 + $0xc0] sm:$0xff]
  %v244 = vld [vmem:[%s2 + $0xc8] sm:$0xff]
  %v245 = vld [vmem:[%s2 + $0xd0] sm:$0xff]
  %v246 = vld [vmem:[%s2 + $0xd8] sm:$0xff]
  %v247 = vld [vmem:[%s2 + $0xe0] sm:$0xff]
  %v248 = vld [vmem:[%s2 + $0xe8] sm:$0xff]
  %v249 = vld [vmem:[%s2 + $0xf0] sm:$0xff]
  %v250 = vld [vmem:[%s2 + $0xf8] sm:$0xff]
  %v251 = vld [vmem:[%s2 + $0x100] sm:$0xff]
  %v252 = vld [vmem:[%s2 + $0x108] sm:$0xff]
  %v253 = vld [vmem:[%s2 + $0x110] sm:$0xff]
  %v254 = vld [vmem:[%s2 + $0x118] sm:$0xff]
  %vm255 = vcmask 195584
  %v257 = vsel %vm255, %v219, 0
  %v260 = vsel %vm255, %v220, 0
  %v263 = vsel %vm255, %v221, 0
  %v266 = vsel %vm255, %v222, 0
  %v269 = vsel %vm255, %v223, 0
  %v272 = vsel %vm255, %v224, 0
  %v275 = vsel %vm255, %v225, 0
  %v278 = vsel %vm255, %v226, 0
  %v281 = vsel %vm255, %v227, 0
  %v284 = vsel %vm255, %v228, 0
  %v287 = vsel %vm255, %v229, 0
  %v290 = vsel %vm255, %v230, 0
  %v293 = vsel %vm255, %v231, 0
  %v296 = vsel %vm255, %v232, 0
  %v299 = vsel %vm255, %v233, 0
  %v302 = vsel %vm255, %v234, 0
  %v305 = vsel %vm255, %v235, 0
  %v308 = vsel %vm255, %v236, 0
  %v311 = vsel %vm255, %v237, 0
  %v314 = vsel %vm255, %v238, 0
  %v317 = vsel %vm255, %v239, 0
  %v320 = vsel %vm255, %v240, 0
  %v323 = vsel %vm255, %v241, 0
  %v326 = vsel %vm255, %v242, 0
  %v329 = vsel %vm255, %v243, 0
  %v332 = vsel %vm255, %v244, 0
  %v335 = vsel %vm255, %v245, 0
  %v338 = vsel %vm255, %v246, 0
  %v341 = vsel %vm255, %v247, 0
  %v344 = vsel %vm255, %v248, 0
  %v347 = vsel %vm255, %v249, 0
  %v350 = vsel %vm255, %v250, 0
  %v353 = vsel %vm255, %v251, 0
  %v356 = vsel %vm255, %v252, 0
  %v359 = vsel %vm255, %v253, 0
  %v362 = vsel %vm255, %v254, 0
  %364 = vmatprep.subr.mxu0 0.0
  %365 = vmatpush1.msra.mxu0 %v200
  %366 = vmatprep.subr.mxu0 0.0
  %367 = vmatpush1.msra.mxu0 %v201
  %368 = vmatprep.subr.mxu0 0.0
  %369 = vmatpush1.msra.mxu0 %v202
  %370 = vmatprep.subr.mxu0 0.0
  %371 = vmatpush1.msra.mxu0 0.0
  %372 = vmatprep.subr.mxu0 0.0
  %373 = vmatpush1.msra.mxu0 0.0
  %374 = vmatprep.subr.mxu0 0.0
  %375 = vmatpush1.msra.mxu0 0.0
  %376 = vmatprep.subr.mxu0 0.0
  %377 = vmatpush1.msra.mxu0 0.0
  %378 = vmatprep.subr.mxu0 0.0
  %379 = vmatpush1.msra.mxu0 0.0
  %380 = vmatprep.subr.mxu0 0.0
  %381 = vmatpush1.msra.mxu0 0.0
  %382 = vmatprep.subr.mxu0 0.0
  %383 = vmatpush1.msra.mxu0 0.0
  %384 = vmatprep.subr.mxu0 0.0
  %385 = vmatpush1.msra.mxu0 0.0
  %386 = vmatprep.subr.mxu0 0.0
  %387 = vmatpush1.msra.mxu0 0.0
  %388 = vmatprep.subr.mxu0 0.0
  %389 = vmatpush1.msra.mxu0 0.0
  %390 = vmatprep.subr.mxu0 0.0
  %391 = vmatpush1.msra.mxu0 0.0
  %392 = vmatprep.subr.mxu0 0.0
  %393 = vmatpush1.msra.mxu0 0.0
  %394 = vmatprep.subr.mxu0 0.0
  %395 = vmatpush1.msra.mxu0 0.0
  %396 = vmatprep.subr.mxu0 0.0
  %397 = vmatpush1.msra.mxu0 0.0
  %398 = vmatprep.subr.mxu0 0.0
  %399 = vmatpush1.msra.mxu0 0.0
  %400 = vmatprep.subr.mxu0 0.0
  %401 = vmatpush1.msra.mxu0 0.0
  %402 = vmatprep.subr.mxu0 0.0
  %403 = vmatpush1.msra.mxu0 0.0
  %404 = vmatprep.subr.mxu0 0.0
  %405 = vmatpush1.msra.mxu0 0.0
  %406 = vmatprep.subr.mxu0 0.0
  %407 = vmatpush1.msra.mxu0 0.0
  %408 = vmatprep.subr.mxu0 0.0
  %409 = vmatpush1.msra.mxu0 0.0
  %410 = vmatprep.subr.mxu0 0.0
  %411 = vmatpush1.msra.mxu0 0.0
  %412 = vmatprep.subr.mxu0 0.0
  %413 = vmatpush1.msra.mxu0 0.0
  %414 = vmatprep.subr.mxu0 0.0
  %415 = vmatpush1.msra.mxu0 0.0
  %416 = vmatprep.subr.mxu0 0.0
  %417 = vmatpush1.msra.mxu0 0.0
  %418 = vmatprep.subr.mxu0 0.0
  %419 = vmatpush1.msra.mxu0 0.0
  %420 = vmatprep.subr.mxu0 0.0
  %421 = vmatpush1.msra.mxu0 0.0
  %422 = vmatprep.subr.mxu0 0.0
  %423 = vmatpush1.msra.mxu0 0.0
  %424 = vmatprep.subr.mxu0 0.0
  %425 = vmatpush1.msra.mxu0 0.0
  %426 = vmatprep.subr.mxu0 0.0
  %427 = vmatpush1.msra.mxu0 0.0
  %428 = vmatprep.mubr.f32.mxu0 0.0
  %429 = vmatmul.mubr.f32.gmra.mrb[0].mxu0 %v257
  %v430 = vpop.f32.mrb[0].mxu0
  %v431 = vadd.f32 0.0, %v430
  %v432 = vpop.f32.mrb[0].mxu0
  %433 = vmatprep.mubr.f32.mxu0 0.0
  %434 = vmatmul.mubr.f32.gmra.mrb[0].mxu0 %v260
  %v435 = vpop.f32.mrb[0].mxu0
  %v436 = vadd.f32 0.0, %v435
  %v437 = vpop.f32.mrb[0].mxu0
  %438 = vmatprep.mubr.f32.mxu0 0.0
  %439 = vmatmul.mubr.f32.gmra.mrb[0].mxu0 %v263
  %v440 = vpop.f32.mrb[0].mxu0
  %v441 = vadd.f32 0.0, %v440
  %v442 = vpop.f32.mrb[0].mxu0
  %443 = vmatprep.mubr.f32.mxu0 0.0
  %444 = vmatmul.mubr.f32.gmra.mrb[0].mxu0 %v266
  %v445 = vpop.f32.mrb[0].mxu0
  %v446 = vadd.f32 0.0, %v445
  %v447 = vpop.f32.mrb[0].mxu0
  %448 = vmatprep.mubr.f32.mxu0 0.0
  %449 = vmatmul.mubr.f32.gmra.mrb[0].mxu0 %v269
  %v450 = vpop.f32.mrb[0].mxu0
  %v451 = vadd.f32 0.0, %v450
  %v452 = vpop.f32.mrb[0].mxu0
  %453 = vmatprep.mubr.f32.mxu0 0.0
  %454 = vmatmul.mubr.f32.gmra.mrb[0].mxu0 %v272
  %v455 = vpop.f32.mrb[0].mxu0
  %v456 = vadd.f32 0.0, %v455
  %v457 = vpop.f32.mrb[0].mxu0
  %458 = vmatprep.mubr.f32.mxu0 0.0
  %459 = vmatmul.mubr.f32.gmra.mrb[0].mxu0 %v275
  %v460 = vpop.f32.mrb[0].mxu0
  %v461 = vadd.f32 0.0, %v460
  %v462 = vpop.f32.mrb[0].mxu0
  %463 = vmatprep.mubr.f32.mxu0 0.0
  %464 = vmatmul.mubr.f32.gmra.mrb[0].mxu0 %v278
  %v465 = vpop.f32.mrb[0].mxu0
  %v466 = vadd.f32 0.0, %v465
  %v467 = vpop.f32.mrb[0].mxu0
  %468 = vmatprep.mubr.f32.mxu0 0.0
  %469 = vmatmul.mubr.f32.gmra.mrb[0].mxu0 %v281
  %v470 = vpop.f32.mrb[0].mxu0
  %v471 = vadd.f32 0.0, %v470
  %v472 = vpop.f32.mrb[0].mxu0
  %473 = vmatprep.mubr.f32.mxu0 0.0
  %474 = vmatmul.mubr.f32.gmra.mrb[0].mxu0 %v284
  %v475 = vpop.f32.mrb[0].mxu0
  %v476 = vadd.f32 0.0, %v475
  %v477 = vpop.f32.mrb[0].mxu0
  %478 = vmatprep.mubr.f32.mxu0 0.0
  %479 = vmatmul.mubr.f32.gmra.mrb[0].mxu0 %v287
  %v480 = vpop.f32.mrb[0].mxu0
  %v481 = vadd.f32 0.0, %v480
  %v482 = vpop.f32.mrb[0].mxu0
  %483 = vmatprep.mubr.f32.mxu0 0.0
  %484 = vmatmul.mubr.f32.gmra.mrb[0].mxu0 %v290
  %v485 = vpop.f32.mrb[0].mxu0
  %v486 = vadd.f32 0.0, %v485
  %v487 = vpop.f32.mrb[0].mxu0
  %488 = vmatprep.mubr.f32.mxu0 0.0
  %489 = vmatmul.mubr.f32.gmra.mrb[0].mxu0 %v293
  %v490 = vpop.f32.mrb[0].mxu0
  %v491 = vadd.f32 0.0, %v490
  %v492 = vpop.f32.mrb[0].mxu0
  %493 = vmatprep.mubr.f32.mxu0 0.0
  %494 = vmatmul.mubr.f32.gmra.mrb[0].mxu0 %v296
  %v495 = vpop.f32.mrb[0].mxu0
  %v496 = vadd.f32 0.0, %v495
  %v497 = vpop.f32.mrb[0].mxu0
  %498 = vmatprep.mubr.f32.mxu0 0.0
  %499 = vmatmul.mubr.f32.gmra.mrb[0].mxu0 %v299
  %v500 = vpop.f32.mrb[0].mxu0
  %v501 = vadd.f32 0.0, %v500
  %v502 = vpop.f32.mrb[0].mxu0
  %503 = vmatprep.mubr.f32.mxu0 0.0
  %504 = vmatmul.mubr.f32.gmra.mrb[0].mxu0 %v302
  %v505 = vpop.f32.mrb[0].mxu0
  %v506 = vadd.f32 0.0, %v505
  %v507 = vpop.f32.mrb[0].mxu0
  %508 = vmatprep.mubr.f32.mxu0 0.0
  %509 = vmatmul.mubr.f32.gmra.mrb[0].mxu0 %v305
  %v510 = vpop.f32.mrb[0].mxu0
  %v511 = vadd.f32 0.0, %v510
  %v512 = vpop.f32.mrb[0].mxu0
  %513 = vmatprep.mubr.f32.mxu0 0.0
  %514 = vmatmul.mubr.f32.gmra.mrb[0].mxu0 %v308
  %v515 = vpop.f32.mrb[0].mxu0
  %v516 = vadd.f32 0.0, %v515
  %v517 = vpop.f32.mrb[0].mxu0
  %518 = vmatprep.mubr.f32.mxu0 0.0
  %519 = vmatmul.mubr.f32.gmra.mrb[0].mxu0 %v311
  %v520 = vpop.f32.mrb[0].mxu0
  %v521 = vadd.f32 0.0, %v520
  %v522 = vpop.f32.mrb[0].mxu0
  %523 = vmatprep.mubr.f32.mxu0 0.0
  %524 = vmatmul.mubr.f32.gmra.mrb[0].mxu0 %v314
  %v525 = vpop.f32.mrb[0].mxu0
  %v526 = vadd.f32 0.0, %v525
  %v527 = vpop.f32.mrb[0].mxu0
  %528 = vmatprep.mubr.f32.mxu0 0.0
  %529 = vmatmul.mubr.f32.gmra.mrb[0].mxu0 %v317
  %v530 = vpop.f32.mrb[0].mxu0
  %v531 = vadd.f32 0.0, %v530
  %v532 = vpop.f32.mrb[0].mxu0
  %533 = vmatprep.mubr.f32.mxu0 0.0
  %534 = vmatmul.mubr.f32.gmra.mrb[0].mxu0 %v320
  %v535 = vpop.f32.mrb[0].mxu0
  %v536 = vadd.f32 0.0, %v535
  %v537 = vpop.f32.mrb[0].mxu0
  %538 = vmatprep.mubr.f32.mxu0 0.0
  %539 = vmatmul.mubr.f32.gmra.mrb[0].mxu0 %v323
  %v540 = vpop.f32.mrb[0].mxu0
  %v541 = vadd.f32 0.0, %v540
  %v542 = vpop.f32.mrb[0].mxu0
  %543 = vmatprep.mubr.f32.mxu0 0.0
  %544 = vmatmul.mubr.f32.gmra.mrb[0].mxu0 %v326
  %v545 = vpop.f32.mrb[0].mxu0
  %v546 = vadd.f32 0.0, %v545
  %v547 = vpop.f32.mrb[0].mxu0
  %548 = vmatprep.mubr.f32.mxu0 0.0
  %549 = vmatmul.mubr.f32.gmra.mrb[0].mxu0 %v329
  %v550 = vpop.f32.mrb[0].mxu0
  %v551 = vadd.f32 0.0, %v550
  %v552 = vpop.f32.mrb[0].mxu0
  %553 = vmatprep.mubr.f32.mxu0 0.0
  %554 = vmatmul.mubr.f32.gmra.mrb[0].mxu0 %v332
  %v555 = vpop.f32.mrb[0].mxu0
  %v556 = vadd.f32 0.0, %v555
  %v557 = vpop.f32.mrb[0].mxu0
  %558 = vmatprep.mubr.f32.mxu0 0.0
  %559 = vmatmul.mubr.f32.gmra.mrb[0].mxu0 %v335
  %v560 = vpop.f32.mrb[0].mxu0
  %v561 = vadd.f32 0.0, %v560
  %v562 = vpop.f32.mrb[0].mxu0
  %563 = vmatprep.mubr.f32.mxu0 0.0
  %564 = vmatmul.mubr.f32.gmra.mrb[0].mxu0 %v338
  %v565 = vpop.f32.mrb[0].mxu0
  %v566 = vadd.f32 0.0, %v565
  %v567 = vpop.f32.mrb[0].mxu0
  %568 = vmatprep.mubr.f32.mxu0 0.0
  %569 = vmatmul.mubr.f32.gmra.mrb[0].mxu0 %v341
  %v570 = vpop.f32.mrb[0].mxu0
  %v571 = vadd.f32 0.0, %v570
  %v572 = vpop.f32.mrb[0].mxu0
  %573 = vmatprep.mubr.f32.mxu0 0.0
  %574 = vmatmul.mubr.f32.gmra.mrb[0].mxu0 %v344
  %v575 = vpop.f32.mrb[0].mxu0
  %v576 = vadd.f32 0.0, %v575
  %v577 = vpop.f32.mrb[0].mxu0
  %578 = vmatprep.mubr.f32.mxu0 0.0
  %579 = vmatmul.mubr.f32.gmra.mrb[0].mxu0 %v347
  %v580 = vpop.f32.mrb[0].mxu0
  %v581 = vadd.f32 0.0, %v580
  %v582 = vpop.f32.mrb[0].mxu0
  %583 = vmatprep.mubr.f32.mxu0 0.0
  %584 = vmatmul.mubr.f32.gmra.mrb[0].mxu0 %v350
  %v585 = vpop.f32.mrb[0].mxu0
  %v586 = vadd.f32 0.0, %v585
  %v587 = vpop.f32.mrb[0].mxu0
  %588 = vmatprep.mubr.f32.mxu0 0.0
  %589 = vmatmul.mubr.f32.gmra.mrb[0].mxu0 %v353
  %v590 = vpop.f32.mrb[0].mxu0
  %v591 = vadd.f32 0.0, %v590
  %v592 = vpop.f32.mrb[0].mxu0
  %593 = vmatprep.mubr.f32.mxu0 0.0
  %594 = vmatmul.mubr.f32.gmra.mrb[0].mxu0 %v356
  %v595 = vpop.f32.mrb[0].mxu0
  %v596 = vadd.f32 0.0, %v595
  %v597 = vpop.f32.mrb[0].mxu0
  %598 = vmatprep.mubr.f32.mxu0 0.0
  %599 = vmatmul.mubr.f32.gmra.mrb[0].mxu0 %v359
  %v600 = vpop.f32.mrb[0].mxu0
  %v601 = vadd.f32 0.0, %v600
  %v602 = vpop.f32.mrb[0].mxu0
  %603 = vmatprep.mubr.f32.mxu0 0.0
  %604 = vmatmul.mubr.f32.gmra.mrb[0].mxu0 %v362
  %v605 = vpop.f32.mrb[0].mxu0
  %v606 = vadd.f32 0.0, %v605
  %v607 = vpop.f32.mrb[0].mxu0
  %608 = vdwg.mxu0
  %v609 = vld [vmem:[%s3] sm:$0xff]
  %v610 = vld [vmem:[%s3 + $0x8] sm:$0xff]
  %v611 = vld [vmem:[%s3 + $0x10] sm:$0xff]
  %v612 = vld [vmem:[%s3 + $0x18] sm:$0xff]
  %v613 = vld [vmem:[%s3 + $0x20] sm:$0xff]
  %v614 = vld [vmem:[%s3 + $0x28] sm:$0xff]
  %v615 = vld [vmem:[%s3 + $0x30] sm:$0xff]
  %v616 = vld [vmem:[%s3 + $0x38] sm:$0xff]
  %v617 = vld [vmem:[%s3 + $0x40] sm:$0xff]
  %v618 = vld [vmem:[%s3 + $0x48] sm:$0xff]
  %v619 = vld [vmem:[%s3 + $0x50] sm:$0xff]
  %v620 = vld [vmem:[%s3 + $0x58] sm:$0xff]
  %v621 = vld [vmem:[%s3 + $0x60] sm:$0xff]
  %v622 = vld [vmem:[%s3 + $0x68] sm:$0xff]
  %v623 = vld [vmem:[%s3 + $0x70] sm:$0xff]
  %v624 = vld [vmem:[%s3 + $0x78] sm:$0xff]
  %s625 = scalar_lea.vmem %s3, 128
  %v626 = vld [vmem:[%s625] sm:$0xff]
  %v627 = vld [vmem:[%s625 + $0x8] sm:$0xff]
  %v628 = vld [vmem:[%s625 + $0x10] sm:$0xff]
  %v629 = vld [vmem:[%s625 + $0x18] sm:$0xff]
  %v630 = vld [vmem:[%s625 + $0x20] sm:$0xff]
  %v631 = vld [vmem:[%s625 + $0x28] sm:$0xff]
  %v632 = vld [vmem:[%s625 + $0x30] sm:$0xff]
  %v633 = vld [vmem:[%s625 + $0x38] sm:$0xff]
  %v634 = vld [vmem:[%s625 + $0x40] sm:$0xff]
  %v635 = vld [vmem:[%s625 + $0x48] sm:$0xff]
  %v636 = vld [vmem:[%s625 + $0x50] sm:$0xff]
  %v637 = vld [vmem:[%s625 + $0x58] sm:$0xff]
  %v638 = vld [vmem:[%s625 + $0x60] sm:$0xff]
  %v639 = vld [vmem:[%s625 + $0x68] sm:$0xff]
  %v640 = vld [vmem:[%s625 + $0x70] sm:$0xff]
  %v641 = vld [vmem:[%s625 + $0x78] sm:$0xff]
  %642 = vmatprep.subr.mxu0 0.0
  %643 = vmatpush1.msra.mxu0 %v626
  %644 = vmatprep.subr.mxu0 0.0
  %645 = vmatpush1.msra.mxu0 %v627
  %646 = vmatprep.subr.mxu0 0.0
  %647 = vmatpush1.msra.mxu0 %v628
  %648 = vmatprep.subr.mxu0 0.0
  %649 = vmatpush1.msra.mxu0 %v629
  %650 = vmatprep.subr.mxu0 0.0
  %651 = vmatpush1.msra.mxu0 %v630
  %652 = vmatprep.subr.mxu0 0.0
  %653 = vmatpush1.msra.mxu0 %v631
  %654 = vmatprep.subr.mxu0 0.0
  %655 = vmatpush1.msra.mxu0 %v632
  %656 = vmatprep.subr.mxu0 0.0
  %657 = vmatpush1.msra.mxu0 %v633
  %658 = vmatprep.subr.mxu0 0.0
  %659 = vmatpush1.msra.mxu0 %v634
  %660 = vmatprep.subr.mxu0 0.0
  %661 = vmatpush1.msra.mxu0 %v635
  %662 = vmatprep.subr.mxu0 0.0
  %663 = vmatpush1.msra.mxu0 %v636
  %664 = vmatprep.subr.mxu0 0.0
  %665 = vmatpush1.msra.mxu0 %v637
  %666 = vmatprep.subr.mxu0 0.0
  %667 = vmatpush1.msra.mxu0 %v638
  %668 = vmatprep.subr.mxu0 0.0
  %669 = vmatpush1.msra.mxu0 %v639
  %670 = vmatprep.subr.mxu0 0.0
  %671 = vmatpush1.msra.mxu0 %v640
  %672 = vmatprep.subr.mxu0 0.0
  %673 = vmatpush1.msra.mxu0 %v641
  %674 = vmatprep.subr.mxu0 0.0
  %675 = vmatpush1.msra.mxu0 0.0
  %676 = vmatprep.subr.mxu0 0.0
  %677 = vmatpush1.msra.mxu0 0.0
  %678 = vmatprep.subr.mxu0 0.0
  %679 = vmatpush1.msra.mxu0 0.0
  %680 = vmatprep.subr.mxu0 0.0
  %681 = vmatpush1.msra.mxu0 0.0
  %682 = vmatprep.subr.mxu0 0.0
  %683 = vmatpush1.msra.mxu0 0.0
  %684 = vmatprep.subr.mxu0 0.0
  %685 = vmatpush1.msra.mxu0 0.0
  %686 = vmatprep.subr.mxu0 0.0
  %687 = vmatpush1.msra.mxu0 0.0
  %688 = vmatprep.subr.mxu0 0.0
  %689 = vmatpush1.msra.mxu0 0.0
  %690 = vmatprep.subr.mxu0 0.0
  %691 = vmatpush1.msra.mxu0 0.0
  %692 = vmatprep.subr.mxu0 0.0
  %693 = vmatpush1.msra.mxu0 0.0
  %694 = vmatprep.subr.mxu0 0.0
  %695 = vmatpush1.msra.mxu0 0.0
  %696 = vmatprep.subr.mxu0 0.0
  %697 = vmatpush1.msra.mxu0 0.0
  %698 = vmatprep.subr.mxu0 0.0
  %699 = vmatpush1.msra.mxu0 0.0
  %700 = vmatprep.subr.mxu0 0.0
  %701 = vmatpush1.msra.mxu0 0.0
  %702 = vmatprep.subr.mxu0 0.0
  %703 = vmatpush1.msra.mxu0 0.0
  %704 = vmatprep.subr.mxu0 0.0
  %705 = vmatpush1.msra.mxu0 0.0
  %706 = vmatprep.mubr.f32.mxu0 0.0
  %707 = vmatmul.mubr.f32.gmra.mrb[0].mxu0 %v451
  %v708 = vpop.f32.mrb[0].mxu0
  %v709 = vadd.f32 0.0, %v708
  %v710 = vpop.f32.mrb[0].mxu0
  %711 = vmatprep.mubr.f32.mxu0 0.0
  %712 = vmatmul.mubr.f32.gmra.mrb[0].mxu0 %v456
  %v713 = vpop.f32.mrb[0].mxu0
  %v714 = vadd.f32 0.0, %v713
  %v715 = vpop.f32.mrb[0].mxu0
  %716 = vmatprep.mubr.f32.mxu0 0.0
  %717 = vmatmul.mubr.f32.gmra.mrb[0].mxu0 %v461
  %v718 = vpop.f32.mrb[0].mxu0
  %v719 = vadd.f32 0.0, %v718
  %v720 = vpop.f32.mrb[0].mxu0
  %721 = vmatprep.mubr.f32.mxu0 0.0
  %722 = vmatmul.mubr.f32.gmra.mrb[0].mxu0 %v466
  %v723 = vpop.f32.mrb[0].mxu0
  %v724 = vadd.f32 0.0, %v723
  %v725 = vpop.f32.mrb[0].mxu0
  %726 = vdwg.mxu0
  %727 = vmatprep.subr.mxu0 0.0
  %728 = vmatpush1.msra.mxu0 %v609
  %729 = vmatprep.subr.mxu0 0.0
  %730 = vmatpush1.msra.mxu0 %v610
  %731 = vmatprep.subr.mxu0 0.0
  %732 = vmatpush1.msra.mxu0 %v611
  %733 = vmatprep.subr.mxu0 0.0
  %734 = vmatpush1.msra.mxu0 %v612
  %735 = vmatprep.subr.mxu0 0.0
  %736 = vmatpush1.msra.mxu0 %v613
  %737 = vmatprep.subr.mxu0 0.0
  %738 = vmatpush1.msra.mxu0 %v614
  %739 = vmatprep.subr.mxu0 0.0
  %740 = vmatpush1.msra.mxu0 %v615
  %741 = vmatprep.subr.mxu0 0.0
  %742 = vmatpush1.msra.mxu0 %v616
  %743 = vmatprep.subr.mxu0 0.0
  %744 = vmatpush1.msra.mxu0 %v617
  %745 = vmatprep.subr.mxu0 0.0
  %746 = vmatpush1.msra.mxu0 %v618
  %747 = vmatprep.subr.mxu0 0.0
  %748 = vmatpush1.msra.mxu0 %v619
  %749 = vmatprep.subr.mxu0 0.0
  %750 = vmatpush1.msra.mxu0 %v620
  %751 = vmatprep.subr.mxu0 0.0
  %752 = vmatpush1.msra.mxu0 %v621
  %753 = vmatprep.subr.mxu0 0.0
  %754 = vmatpush1.msra.mxu0 %v622
  %755 = vmatprep.subr.mxu0 0.0
  %756 = vmatpush1.msra.mxu0 %v623
  %757 = vmatprep.subr.mxu0 0.0
  %758 = vmatpush1.msra.mxu0 %v624
  %759 = vmatprep.subr.mxu0 0.0
  %760 = vmatpush1.msra.mxu0 0.0
  %761 = vmatprep.subr.mxu0 0.0
  %762 = vmatpush1.msra.mxu0 0.0
  %763 = vmatprep.subr.mxu0 0.0
  %764 = vmatpush1.msra.mxu0 0.0
  %765 = vmatprep.subr.mxu0 0.0
  %766 = vmatpush1.msra.mxu0 0.0
  %767 = vmatprep.subr.mxu0 0.0
  %768 = vmatpush1.msra.mxu0 0.0
  %769 = vmatprep.subr.mxu0 0.0
  %770 = vmatpush1.msra.mxu0 0.0
  %771 = vmatprep.subr.mxu0 0.0
  %772 = vmatpush1.msra.mxu0 0.0
  %773 = vmatprep.subr.mxu0 0.0
  %774 = vmatpush1.msra.mxu0 0.0
  %775 = vmatprep.subr.mxu0 0.0
  %776 = vmatpush1.msra.mxu0 0.0
  %777 = vmatprep.subr.mxu0 0.0
  %778 = vmatpush1.msra.mxu0 0.0
  %779 = vmatprep.subr.mxu0 0.0
  %780 = vmatpush1.msra.mxu0 0.0
  %781 = vmatprep.subr.mxu0 0.0
  %782 = vmatpush1.msra.mxu0 0.0
  %783 = vmatprep.subr.mxu0 0.0
  %784 = vmatpush1.msra.mxu0 0.0
  %785 = vmatprep.subr.mxu0 0.0
  %786 = vmatpush1.msra.mxu0 0.0
  %787 = vmatprep.subr.mxu0 0.0
  %788 = vmatpush1.msra.mxu0 0.0
  %789 = vmatprep.subr.mxu0 0.0
  %790 = vmatpush1.msra.mxu0 0.0
  %791 = vmatprep.mubr.f32.mxu0 0.0
  %792 = vmatmul.mubr.f32.gmra.mrb[0].mxu0 %v431
  %v793 = vpop.f32.mrb[0].mxu0
  %v794 = vadd.f32 %v709, %v793
  %v795 = vpop.f32.mrb[0].mxu0
  %796 = vmatprep.mubr.f32.mxu0 0.0
  %797 = vmatmul.mubr.f32.gmra.mrb[0].mxu0 %v436
  %v798 = vpop.f32.mrb[0].mxu0
  %v799 = vadd.f32 %v714, %v798
  %v800 = vpop.f32.mrb[0].mxu0
  %801 = vmatprep.mubr.f32.mxu0 0.0
  %802 = vmatmul.mubr.f32.gmra.mrb[0].mxu0 %v441
  %v803 = vpop.f32.mrb[0].mxu0
  %v804 = vadd.f32 %v719, %v803
  %v805 = vpop.f32.mrb[0].mxu0
  %806 = vmatprep.mubr.f32.mxu0 0.0
  %807 = vmatmul.mubr.f32.gmra.mrb[0].mxu0 %v446
  %v808 = vpop.f32.mrb[0].mxu0
  %v809 = vadd.f32 %v724, %v808
  %v810 = vpop.f32.mrb[0].mxu0
  %811 = vdwg.mxu0
  %s812 = scalar_lea.vmem %s3, 256
  %v813 = vld [vmem:[%s812] sm:$0xff]
  %v814 = vld [vmem:[%s812 + $0x8] sm:$0xff]
  %v815 = vld [vmem:[%s812 + $0x10] sm:$0xff]
  %v816 = vld [vmem:[%s812 + $0x18] sm:$0xff]
  %v817 = vld [vmem:[%s812 + $0x20] sm:$0xff]
  %v818 = vld [vmem:[%s812 + $0x28] sm:$0xff]
  %v819 = vld [vmem:[%s812 + $0x30] sm:$0xff]
  %v820 = vld [vmem:[%s812 + $0x38] sm:$0xff]
  %v821 = vld [vmem:[%s812 + $0x40] sm:$0xff]
  %v822 = vld [vmem:[%s812 + $0x48] sm:$0xff]
  %v823 = vld [vmem:[%s812 + $0x50] sm:$0xff]
  %v824 = vld [vmem:[%s812 + $0x58] sm:$0xff]
  %v825 = vld [vmem:[%s812 + $0x60] sm:$0xff]
  %v826 = vld [vmem:[%s812 + $0x68] sm:$0xff]
  %v827 = vld [vmem:[%s812 + $0x70] sm:$0xff]
  %v828 = vld [vmem:[%s812 + $0x78] sm:$0xff]
  %829 = vmatprep.subr.mxu0 0.0
  %830 = vmatpush1.msra.mxu0 %v813
  %831 = vmatprep.subr.mxu0 0.0
  %832 = vmatpush1.msra.mxu0 %v814
  %833 = vmatprep.subr.mxu0 0.0
  %834 = vmatpush1.msra.mxu0 %v815
  %835 = vmatprep.subr.mxu0 0.0
  %836 = vmatpush1.msra.mxu0 %v816
  %837 = vmatprep.subr.mxu0 0.0
  %838 = vmatpush1.msra.mxu0 %v817
  %839 = vmatprep.subr.mxu0 0.0
  %840 = vmatpush1.msra.mxu0 %v818
  %841 = vmatprep.subr.mxu0 0.0
  %842 = vmatpush1.msra.mxu0 %v819
  %843 = vmatprep.subr.mxu0 0.0
  %844 = vmatpush1.msra.mxu0 %v820
  %845 = vmatprep.subr.mxu0 0.0
  %846 = vmatpush1.msra.mxu0 %v821
  %847 = vmatprep.subr.mxu0 0.0
  %848 = vmatpush1.msra.mxu0 %v822
  %849 = vmatprep.subr.mxu0 0.0
  %850 = vmatpush1.msra.mxu0 %v823
  %851 = vmatprep.subr.mxu0 0.0
  %852 = vmatpush1.msra.mxu0 %v824
  %853 = vmatprep.subr.mxu0 0.0
  %854 = vmatpush1.msra.mxu0 %v825
  %855 = vmatprep.subr.mxu0 0.0
  %856 = vmatpush1.msra.mxu0 %v826
  %857 = vmatprep.subr.mxu0 0.0
  %858 = vmatpush1.msra.mxu0 %v827
  %859 = vmatprep.subr.mxu0 0.0
  %860 = vmatpush1.msra.mxu0 %v828
  %861 = vmatprep.subr.mxu0 0.0
  %862 = vmatpush1.msra.mxu0 0.0
  %863 = vmatprep.subr.mxu0 0.0
  %864 = vmatpush1.msra.mxu0 0.0
  %865 = vmatprep.subr.mxu0 0.0
  %866 = vmatpush1.msra.mxu0 0.0
  %867 = vmatprep.subr.mxu0 0.0
  %868 = vmatpush1.msra.mxu0 0.0
  %869 = vmatprep.subr.mxu0 0.0
  %870 = vmatpush1.msra.mxu0 0.0
  %871 = vmatprep.subr.mxu0 0.0
  %872 = vmatpush1.msra.mxu0 0.0
  %873 = vmatprep.subr.mxu0 0.0
  %874 = vmatpush1.msra.mxu0 0.0
  %875 = vmatprep.subr.mxu0 0.0
  %876 = vmatpush1.msra.mxu0 0.0
  %877 = vmatprep.subr.mxu0 0.0
  %878 = vmatpush1.msra.mxu0 0.0
  %879 = vmatprep.subr.mxu0 0.0
  %880 = vmatpush1.msra.mxu0 0.0
  %881 = vmatprep.subr.mxu0 0.0
  %882 = vmatpush1.msra.mxu0 0.0
  %883 = vmatprep.subr.mxu0 0.0
  %884 = vmatpush1.msra.mxu0 0.0
  %885 = vmatprep.subr.mxu0 0.0
  %886 = vmatpush1.msra.mxu0 0.0
  %887 = vmatprep.subr.mxu0 0.0
  %888 = vmatpush1.msra.mxu0 0.0
  %889 = vmatprep.subr.mxu0 0.0
  %890 = vmatpush1.msra.mxu0 0.0
  %891 = vmatprep.subr.mxu0 0.0
  %892 = vmatpush1.msra.mxu0 0.0
  %893 = vmatprep.mubr.f32.mxu0 0.0
  %894 = vmatmul.mubr.f32.gmra.mrb[0].mxu0 %v471
  %v895 = vpop.f32.mrb[0].mxu0
  %v896 = vadd.f32 0.0, %v895
  %v897 = vpop.f32.mrb[0].mxu0
  %898 = vmatprep.mubr.f32.mxu0 0.0
  %899 = vmatmul.mubr.f32.gmra.mrb[0].mxu0 %v476
  %v900 = vpop.f32.mrb[0].mxu0
  %v901 = vadd.f32 0.0, %v900
  %v902 = vpop.f32.mrb[0].mxu0
  %903 = vmatprep.mubr.f32.mxu0 0.0
  %904 = vmatmul.mubr.f32.gmra.mrb[0].mxu0 %v481
  %v905 = vpop.f32.mrb[0].mxu0
  %v906 = vadd.f32 0.0, %v905
  %v907 = vpop.f32.mrb[0].mxu0
  %908 = vmatprep.mubr.f32.mxu0 0.0
  %909 = vmatmul.mubr.f32.gmra.mrb[0].mxu0 %v486
  %v910 = vpop.f32.mrb[0].mxu0
  %v911 = vadd.f32 0.0, %v910
  %v912 = vpop.f32.mrb[0].mxu0
  %913 = vdwg.mxu0
  %v914 = vadd.f32 %v794, %v896
  %v915 = vadd.f32 %v799, %v901
  %v916 = vadd.f32 %v804, %v906
  %v917 = vadd.f32 %v809, %v911
  %s918 = scalar_lea.vmem %s3, 384
  %v919 = vld [vmem:[%s918] sm:$0xff]
  %v920 = vld [vmem:[%s918 + $0x8] sm:$0xff]
  %v921 = vld [vmem:[%s918 + $0x10] sm:$0xff]
  %v922 = vld [vmem:[%s918 + $0x18] sm:$0xff]
  %v923 = vld [vmem:[%s918 + $0x20] sm:$0xff]
  %v924 = vld [vmem:[%s918 + $0x28] sm:$0xff]
  %v925 = vld [vmem:[%s918 + $0x30] sm:$0xff]
  %v926 = vld [vmem:[%s918 + $0x38] sm:$0xff]
  %v927 = vld [vmem:[%s918 + $0x40] sm:$0xff]
  %v928 = vld [vmem:[%s918 + $0x48] sm:$0xff]
  %v929 = vld [vmem:[%s918 + $0x50] sm:$0xff]
  %v930 = vld [vmem:[%s918 + $0x58] sm:$0xff]
  %v931 = vld [vmem:[%s918 + $0x60] sm:$0xff]
  %v932 = vld [vmem:[%s918 + $0x68] sm:$0xff]
  %v933 = vld [vmem:[%s918 + $0x70] sm:$0xff]
  %v934 = vld [vmem:[%s918 + $0x78] sm:$0xff]
  %935 = vmatprep.subr.mxu0 0.0
  %936 = vmatpush1.msra.mxu0 %v919
  %937 = vmatprep.subr.mxu0 0.0
  %938 = vmatpush1.msra.mxu0 %v920
  %939 = vmatprep.subr.mxu0 0.0
  %940 = vmatpush1.msra.mxu0 %v921
  %941 = vmatprep.subr.mxu0 0.0
  %942 = vmatpush1.msra.mxu0 %v922
  %943 = vmatprep.subr.mxu0 0.0
  %944 = vmatpush1.msra.mxu0 %v923
  %945 = vmatprep.subr.mxu0 0.0
  %946 = vmatpush1.msra.mxu0 %v924
  %947 = vmatprep.subr.mxu0 0.0
  %948 = vmatpush1.msra.mxu0 %v925
  %949 = vmatprep.subr.mxu0 0.0
  %950 = vmatpush1.msra.mxu0 %v926
  %951 = vmatprep.subr.mxu0 0.0
  %952 = vmatpush1.msra.mxu0 %v927
  %953 = vmatprep.subr.mxu0 0.0
  %954 = vmatpush1.msra.mxu0 %v928
  %955 = vmatprep.subr.mxu0 0.0
  %956 = vmatpush1.msra.mxu0 %v929
  %957 = vmatprep.subr.mxu0 0.0
  %958 = vmatpush1.msra.mxu0 %v930
  %959 = vmatprep.subr.mxu0 0.0
  %960 = vmatpush1.msra.mxu0 %v931
  %961 = vmatprep.subr.mxu0 0.0
  %962 = vmatpush1.msra.mxu0 %v932
  %963 = vmatprep.subr.mxu0 0.0
  %964 = vmatpush1.msra.mxu0 %v933
  %965 = vmatprep.subr.mxu0 0.0
  %966 = vmatpush1.msra.mxu0 %v934
  %967 = vmatprep.subr.mxu0 0.0
  %968 = vmatpush1.msra.mxu0 0.0
  %969 = vmatprep.subr.mxu0 0.0
  %970 = vmatpush1.msra.mxu0 0.0
  %971 = vmatprep.subr.mxu0 0.0
  %972 = vmatpush1.msra.mxu0 0.0
  %973 = vmatprep.subr.mxu0 0.0
  %974 = vmatpush1.msra.mxu0 0.0
  %975 = vmatprep.subr.mxu0 0.0
  %976 = vmatpush1.msra.mxu0 0.0
  %977 = vmatprep.subr.mxu0 0.0
  %978 = vmatpush1.msra.mxu0 0.0
  %979 = vmatprep.subr.mxu0 0.0
  %980 = vmatpush1.msra.mxu0 0.0
  %981 = vmatprep.subr.mxu0 0.0
  %982 = vmatpush1.msra.mxu0 0.0
  %983 = vmatprep.subr.mxu0 0.0
  %984 = vmatpush1.msra.mxu0 0.0
  %985 = vmatprep.subr.mxu0 0.0
  %986 = vmatpush1.msra.mxu0 0.0
  %987 = vmatprep.subr.mxu0 0.0
  %988 = vmatpush1.msra.mxu0 0.0
  %989 = vmatprep.subr.mxu0 0.0
  %990 = vmatpush1.msra.mxu0 0.0
  %991 = vmatprep.subr.mxu0 0.0
  %992 = vmatpush1.msra.mxu0 0.0
  %993 = vmatprep.subr.mxu0 0.0
  %994 = vmatpush1.msra.mxu0 0.0
  %995 = vmatprep.subr.mxu0 0.0
  %996 = vmatpush1.msra.mxu0 0.0
  %997 = vmatprep.subr.mxu0 0.0
  %998 = vmatpush1.msra.mxu0 0.0
  %999 = vmatprep.mubr.f32.mxu0 0.0
  %1000 = vmatmul.mubr.f32.gmra.mrb[0].mxu0 %v491
  %v1001 = vpop.f32.mrb[0].mxu0
  %v1002 = vadd.f32 0.0, %v1001
  %v1003 = vpop.f32.mrb[0].mxu0
  %1004 = vmatprep.mubr.f32.mxu0 0.0
  %1005 = vmatmul.mubr.f32.gmra.mrb[0].mxu0 %v496
  %v1006 = vpop.f32.mrb[0].mxu0
  %v1007 = vadd.f32 0.0, %v1006
  %v1008 = vpop.f32.mrb[0].mxu0
  %1009 = vmatprep.mubr.f32.mxu0 0.0
  %1010 = vmatmul.mubr.f32.gmra.mrb[0].mxu0 %v501
  %v1011 = vpop.f32.mrb[0].mxu0
  %v1012 = vadd.f32 0.0, %v1011
  %v1013 = vpop.f32.mrb[0].mxu0
  %1014 = vmatprep.mubr.f32.mxu0 0.0
  %1015 = vmatmul.mubr.f32.gmra.mrb[0].mxu0 %v506
  %v1016 = vpop.f32.mrb[0].mxu0
  %v1017 = vadd.f32 0.0, %v1016
  %v1018 = vpop.f32.mrb[0].mxu0
  %1019 = vdwg.mxu0
  %v1020 = vadd.f32 %v914, %v1002
  %v1021 = vadd.f32 %v915, %v1007
  %v1022 = vadd.f32 %v916, %v1012
  %v1023 = vadd.f32 %v917, %v1017
  %s1024 = scalar_lea.vmem %s3, 512
  %v1025 = vld [vmem:[%s1024] sm:$0xff]
  %v1026 = vld [vmem:[%s1024 + $0x8] sm:$0xff]
  %v1027 = vld [vmem:[%s1024 + $0x10] sm:$0xff]
  %v1028 = vld [vmem:[%s1024 + $0x18] sm:$0xff]
  %v1029 = vld [vmem:[%s1024 + $0x20] sm:$0xff]
  %v1030 = vld [vmem:[%s1024 + $0x28] sm:$0xff]
  %v1031 = vld [vmem:[%s1024 + $0x30] sm:$0xff]
  %v1032 = vld [vmem:[%s1024 + $0x38] sm:$0xff]
  %v1033 = vld [vmem:[%s1024 + $0x40] sm:$0xff]
  %v1034 = vld [vmem:[%s1024 + $0x48] sm:$0xff]
  %v1035 = vld [vmem:[%s1024 + $0x50] sm:$0xff]
  %v1036 = vld [vmem:[%s1024 + $0x58] sm:$0xff]
  %v1037 = vld [vmem:[%s1024 + $0x60] sm:$0xff]
  %v1038 = vld [vmem:[%s1024 + $0x68] sm:$0xff]
  %v1039 = vld [vmem:[%s1024 + $0x70] sm:$0xff]
  %v1040 = vld [vmem:[%s1024 + $0x78] sm:$0xff]
  %1041 = vmatprep.subr.mxu0 0.0
  %1042 = vmatpush1.msra.mxu0 %v1025
  %1043 = vmatprep.subr.mxu0 0.0
  %1044 = vmatpush1.msra.mxu0 %v1026
  %1045 = vmatprep.subr.mxu0 0.0
  %1046 = vmatpush1.msra.mxu0 %v1027
  %1047 = vmatprep.subr.mxu0 0.0
  %1048 = vmatpush1.msra.mxu0 %v1028
  %1049 = vmatprep.subr.mxu0 0.0
  %1050 = vmatpush1.msra.mxu0 %v1029
  %1051 = vmatprep.subr.mxu0 0.0
  %1052 = vmatpush1.msra.mxu0 %v1030
  %1053 = vmatprep.subr.mxu0 0.0
  %1054 = vmatpush1.msra.mxu0 %v1031
  %1055 = vmatprep.subr.mxu0 0.0
  %1056 = vmatpush1.msra.mxu0 %v1032
  %1057 = vmatprep.subr.mxu0 0.0
  %1058 = vmatpush1.msra.mxu0 %v1033
  %1059 = vmatprep.subr.mxu0 0.0
  %1060 = vmatpush1.msra.mxu0 %v1034
  %1061 = vmatprep.subr.mxu0 0.0
  %1062 = vmatpush1.msra.mxu0 %v1035
  %1063 = vmatprep.subr.mxu0 0.0
  %1064 = vmatpush1.msra.mxu0 %v1036
  %1065 = vmatprep.subr.mxu0 0.0
  %1066 = vmatpush1.msra.mxu0 %v1037
  %1067 = vmatprep.subr.mxu0 0.0
  %1068 = vmatpush1.msra.mxu0 %v1038
  %1069 = vmatprep.subr.mxu0 0.0
  %1070 = vmatpush1.msra.mxu0 %v1039
  %1071 = vmatprep.subr.mxu0 0.0
  %1072 = vmatpush1.msra.mxu0 %v1040
  %1073 = vmatprep.subr.mxu0 0.0
  %1074 = vmatpush1.msra.mxu0 0.0
  %1075 = vmatprep.subr.mxu0 0.0
  %1076 = vmatpush1.msra.mxu0 0.0
  %1077 = vmatprep.subr.mxu0 0.0
  %1078 = vmatpush1.msra.mxu0 0.0
  %1079 = vmatprep.subr.mxu0 0.0
  %1080 = vmatpush1.msra.mxu0 0.0
  %1081 = vmatprep.subr.mxu0 0.0
  %1082 = vmatpush1.msra.mxu0 0.0
  %1083 = vmatprep.subr.mxu0 0.0
  %1084 = vmatpush1.msra.mxu0 0.0
  %1085 = vmatprep.subr.mxu0 0.0
  %1086 = vmatpush1.msra.mxu0 0.0
  %1087 = vmatprep.subr.mxu0 0.0
  %1088 = vmatpush1.msra.mxu0 0.0
  %1089 = vmatprep.subr.mxu0 0.0
  %1090 = vmatpush1.msra.mxu0 0.0
  %1091 = vmatprep.subr.mxu0 0.0
  %1092 = vmatpush1.msra.mxu0 0.0
  %1093 = vmatprep.subr.mxu0 0.0
  %1094 = vmatpush1.msra.mxu0 0.0
  %1095 = vmatprep.subr.mxu0 0.0
  %1096 = vmatpush1.msra.mxu0 0.0
  %1097 = vmatprep.subr.mxu0 0.0
  %1098 = vmatpush1.msra.mxu0 0.0
  %1099 = vmatprep.subr.mxu0 0.0
  %1100 = vmatpush1.msra.mxu0 0.0
  %1101 = vmatprep.subr.mxu0 0.0
  %1102 = vmatpush1.msra.mxu0 0.0
  %1103 = vmatprep.subr.mxu0 0.0
  %1104 = vmatpush1.msra.mxu0 0.0
  %1105 = vmatprep.mubr.f32.mxu0 0.0
  %1106 = vmatmul.mubr.f32.gmra.mrb[0].mxu0 %v511
  %v1107 = vpop.f32.mrb[0].mxu0
  %v1108 = vadd.f32 0.0, %v1107
  %v1109 = vpop.f32.mrb[0].mxu0
  %1110 = vmatprep.mubr.f32.mxu0 0.0
  %1111 = vmatmul.mubr.f32.gmra.mrb[0].mxu0 %v516
  %v1112 = vpop.f32.mrb[0].mxu0
  %v1113 = vadd.f32 0.0, %v1112
  %v1114 = vpop.f32.mrb[0].mxu0
  %1115 = vmatprep.mubr.f32.mxu0 0.0
  %1116 = vmatmul.mubr.f32.gmra.mrb[0].mxu0 %v521
  %v1117 = vpop.f32.mrb[0].mxu0
  %v1118 = vadd.f32 0.0, %v1117
  %v1119 = vpop.f32.mrb[0].mxu0
  %1120 = vmatprep.mubr.f32.mxu0 0.0
  %1121 = vmatmul.mubr.f32.gmra.mrb[0].mxu0 %v526
  %v1122 = vpop.f32.mrb[0].mxu0
  %v1123 = vadd.f32 0.0, %v1122
  %v1124 = vpop.f32.mrb[0].mxu0
  %1125 = vdwg.mxu0
  %v1126 = vadd.f32 %v1020, %v1108
  %v1127 = vadd.f32 %v1021, %v1113
  %v1128 = vadd.f32 %v1022, %v1118
  %v1129 = vadd.f32 %v1023, %v1123
  %s1130 = scalar_lea.vmem %s3, 640
  %v1131 = vld [vmem:[%s1130] sm:$0xff]
  %v1132 = vld [vmem:[%s1130 + $0x8] sm:$0xff]
  %v1133 = vld [vmem:[%s1130 + $0x10] sm:$0xff]
  %v1134 = vld [vmem:[%s1130 + $0x18] sm:$0xff]
  %v1135 = vld [vmem:[%s1130 + $0x20] sm:$0xff]
  %v1136 = vld [vmem:[%s1130 + $0x28] sm:$0xff]
  %v1137 = vld [vmem:[%s1130 + $0x30] sm:$0xff]
  %v1138 = vld [vmem:[%s1130 + $0x38] sm:$0xff]
  %v1139 = vld [vmem:[%s1130 + $0x40] sm:$0xff]
  %v1140 = vld [vmem:[%s1130 + $0x48] sm:$0xff]
  %v1141 = vld [vmem:[%s1130 + $0x50] sm:$0xff]
  %v1142 = vld [vmem:[%s1130 + $0x58] sm:$0xff]
  %v1143 = vld [vmem:[%s1130 + $0x60] sm:$0xff]
  %v1144 = vld [vmem:[%s1130 + $0x68] sm:$0xff]
  %v1145 = vld [vmem:[%s1130 + $0x70] sm:$0xff]
  %v1146 = vld [vmem:[%s1130 + $0x78] sm:$0xff]
  %1147 = vmatprep.subr.mxu0 0.0
  %1148 = vmatpush1.msra.mxu0 %v1131
  %1149 = vmatprep.subr.mxu0 0.0
  %1150 = vmatpush1.msra.mxu0 %v1132
  %1151 = vmatprep.subr.mxu0 0.0
  %1152 = vmatpush1.msra.mxu0 %v1133
  %1153 = vmatprep.subr.mxu0 0.0
  %1154 = vmatpush1.msra.mxu0 %v1134
  %1155 = vmatprep.subr.mxu0 0.0
  %1156 = vmatpush1.msra.mxu0 %v1135
  %1157 = vmatprep.subr.mxu0 0.0
  %1158 = vmatpush1.msra.mxu0 %v1136
  %1159 = vmatprep.subr.mxu0 0.0
  %1160 = vmatpush1.msra.mxu0 %v1137
  %1161 = vmatprep.subr.mxu0 0.0
  %1162 = vmatpush1.msra.mxu0 %v1138
  %1163 = vmatprep.subr.mxu0 0.0
  %1164 = vmatpush1.msra.mxu0 %v1139
  %1165 = vmatprep.subr.mxu0 0.0
  %1166 = vmatpush1.msra.mxu0 %v1140
  %1167 = vmatprep.subr.mxu0 0.0
  %1168 = vmatpush1.msra.mxu0 %v1141
  %1169 = vmatprep.subr.mxu0 0.0
  %1170 = vmatpush1.msra.mxu0 %v1142
  %1171 = vmatprep.subr.mxu0 0.0
  %1172 = vmatpush1.msra.mxu0 %v1143
  %1173 = vmatprep.subr.mxu0 0.0
  %1174 = vmatpush1.msra.mxu0 %v1144
  %1175 = vmatprep.subr.mxu0 0.0
  %1176 = vmatpush1.msra.mxu0 %v1145
  %1177 = vmatprep.subr.mxu0 0.0
  %1178 = vmatpush1.msra.mxu0 %v1146
  %1179 = vmatprep.subr.mxu0 0.0
  %1180 = vmatpush1.msra.mxu0 0.0
  %1181 = vmatprep.subr.mxu0 0.0
  %1182 = vmatpush1.msra.mxu0 0.0
  %1183 = vmatprep.subr.mxu0 0.0
  %1184 = vmatpush1.msra.mxu0 0.0
  %1185 = vmatprep.subr.mxu0 0.0
  %1186 = vmatpush1.msra.mxu0 0.0
  %1187 = vmatprep.subr.mxu0 0.0
  %1188 = vmatpush1.msra.mxu0 0.0
  %1189 = vmatprep.subr.mxu0 0.0
  %1190 = vmatpush1.msra.mxu0 0.0
  %1191 = vmatprep.subr.mxu0 0.0
  %1192 = vmatpush1.msra.mxu0 0.0
  %1193 = vmatprep.subr.mxu0 0.0
  %1194 = vmatpush1.msra.mxu0 0.0
  %1195 = vmatprep.subr.mxu0 0.0
  %1196 = vmatpush1.msra.mxu0 0.0
  %1197 = vmatprep.subr.mxu0 0.0
  %1198 = vmatpush1.msra.mxu0 0.0
  %1199 = vmatprep.subr.mxu0 0.0
  %1200 = vmatpush1.msra.mxu0 0.0
  %1201 = vmatprep.subr.mxu0 0.0
  %1202 = vmatpush1.msra.mxu0 0.0
  %1203 = vmatprep.subr.mxu0 0.0
  %1204 = vmatpush1.msra.mxu0 0.0
  %1205 = vmatprep.subr.mxu0 0.0
  %1206 = vmatpush1.msra.mxu0 0.0
  %1207 = vmatprep.subr.mxu0 0.0
  %1208 = vmatpush1.msra.mxu0 0.0
  %1209 = vmatprep.subr.mxu0 0.0
  %1210 = vmatpush1.msra.mxu0 0.0
  %1211 = vmatprep.mubr.f32.mxu0 0.0
  %1212 = vmatmul.mubr.f32.gmra.mrb[0].mxu0 %v531
  %v1213 = vpop.f32.mrb[0].mxu0
  %v1214 = vadd.f32 0.0, %v1213
  %v1215 = vpop.f32.mrb[0].mxu0
  %1216 = vmatprep.mubr.f32.mxu0 0.0
  %1217 = vmatmul.mubr.f32.gmra.mrb[0].mxu0 %v536
  %v1218 = vpop.f32.mrb[0].mxu0
  %v1219 = vadd.f32 0.0, %v1218
  %v1220 = vpop.f32.mrb[0].mxu0
  %1221 = vmatprep.mubr.f32.mxu0 0.0
  %1222 = vmatmul.mubr.f32.gmra.mrb[0].mxu0 %v541
  %v1223 = vpop.f32.mrb[0].mxu0
  %v1224 = vadd.f32 0.0, %v1223
  %v1225 = vpop.f32.mrb[0].mxu0
  %1226 = vmatprep.mubr.f32.mxu0 0.0
  %1227 = vmatmul.mubr.f32.gmra.mrb[0].mxu0 %v546
  %v1228 = vpop.f32.mrb[0].mxu0
  %v1229 = vadd.f32 0.0, %v1228
  %v1230 = vpop.f32.mrb[0].mxu0
  %1231 = vdwg.mxu0
  %v1232 = vadd.f32 %v1126, %v1214
  %v1233 = vadd.f32 %v1127, %v1219
  %v1234 = vadd.f32 %v1128, %v1224
  %v1235 = vadd.f32 %v1129, %v1229
  %s1236 = scalar_lea.vmem %s3, 768
  %v1237 = vld [vmem:[%s1236] sm:$0xff]
  %v1238 = vld [vmem:[%s1236 + $0x8] sm:$0xff]
  %v1239 = vld [vmem:[%s1236 + $0x10] sm:$0xff]
  %v1240 = vld [vmem:[%s1236 + $0x18] sm:$0xff]
  %v1241 = vld [vmem:[%s1236 + $0x20] sm:$0xff]
  %v1242 = vld [vmem:[%s1236 + $0x28] sm:$0xff]
  %v1243 = vld [vmem:[%s1236 + $0x30] sm:$0xff]
  %v1244 = vld [vmem:[%s1236 + $0x38] sm:$0xff]
  %v1245 = vld [vmem:[%s1236 + $0x40] sm:$0xff]
  %v1246 = vld [vmem:[%s1236 + $0x48] sm:$0xff]
  %v1247 = vld [vmem:[%s1236 + $0x50] sm:$0xff]
  %v1248 = vld [vmem:[%s1236 + $0x58] sm:$0xff]
  %v1249 = vld [vmem:[%s1236 + $0x60] sm:$0xff]
  %v1250 = vld [vmem:[%s1236 + $0x68] sm:$0xff]
  %v1251 = vld [vmem:[%s1236 + $0x70] sm:$0xff]
  %v1252 = vld [vmem:[%s1236 + $0x78] sm:$0xff]
  %1253 = vmatprep.subr.mxu0 0.0
  %1254 = vmatpush1.msra.mxu0 %v1237
  %1255 = vmatprep.subr.mxu0 0.0
  %1256 = vmatpush1.msra.mxu0 %v1238
  %1257 = vmatprep.subr.mxu0 0.0
  %1258 = vmatpush1.msra.mxu0 %v1239
  %1259 = vmatprep.subr.mxu0 0.0
  %1260 = vmatpush1.msra.mxu0 %v1240
  %1261 = vmatprep.subr.mxu0 0.0
  %1262 = vmatpush1.msra.mxu0 %v1241
  %1263 = vmatprep.subr.mxu0 0.0
  %1264 = vmatpush1.msra.mxu0 %v1242
  %1265 = vmatprep.subr.mxu0 0.0
  %1266 = vmatpush1.msra.mxu0 %v1243
  %1267 = vmatprep.subr.mxu0 0.0
  %1268 = vmatpush1.msra.mxu0 %v1244
  %1269 = vmatprep.subr.mxu0 0.0
  %1270 = vmatpush1.msra.mxu0 %v1245
  %1271 = vmatprep.subr.mxu0 0.0
  %1272 = vmatpush1.msra.mxu0 %v1246
  %1273 = vmatprep.subr.mxu0 0.0
  %1274 = vmatpush1.msra.mxu0 %v1247
  %1275 = vmatprep.subr.mxu0 0.0
  %1276 = vmatpush1.msra.mxu0 %v1248
  %1277 = vmatprep.subr.mxu0 0.0
  %1278 = vmatpush1.msra.mxu0 %v1249
  %1279 = vmatprep.subr.mxu0 0.0
  %1280 = vmatpush1.msra.mxu0 %v1250
  %1281 = vmatprep.subr.mxu0 0.0
  %1282 = vmatpush1.msra.mxu0 %v1251
  %1283 = vmatprep.subr.mxu0 0.0
  %1284 = vmatpush1.msra.mxu0 %v1252
  %1285 = vmatprep.subr.mxu0 0.0
  %1286 = vmatpush1.msra.mxu0 0.0
  %1287 = vmatprep.subr.mxu0 0.0
  %1288 = vmatpush1.msra.mxu0 0.0
  %1289 = vmatprep.subr.mxu0 0.0
  %1290 = vmatpush1.msra.mxu0 0.0
  %1291 = vmatprep.subr.mxu0 0.0
  %1292 = vmatpush1.msra.mxu0 0.0
  %1293 = vmatprep.subr.mxu0 0.0
  %1294 = vmatpush1.msra.mxu0 0.0
  %1295 = vmatprep.subr.mxu0 0.0
  %1296 = vmatpush1.msra.mxu0 0.0
  %1297 = vmatprep.subr.mxu0 0.0
  %1298 = vmatpush1.msra.mxu0 0.0
  %1299 = vmatprep.subr.mxu0 0.0
  %1300 = vmatpush1.msra.mxu0 0.0
  %1301 = vmatprep.subr.mxu0 0.0
  %1302 = vmatpush1.msra.mxu0 0.0
  %1303 = vmatprep.subr.mxu0 0.0
  %1304 = vmatpush1.msra.mxu0 0.0
  %1305 = vmatprep.subr.mxu0 0.0
  %1306 = vmatpush1.msra.mxu0 0.0
  %1307 = vmatprep.subr.mxu0 0.0
  %1308 = vmatpush1.msra.mxu0 0.0
  %1309 = vmatprep.subr.mxu0 0.0
  %1310 = vmatpush1.msra.mxu0 0.0
  %1311 = vmatprep.subr.mxu0 0.0
  %1312 = vmatpush1.msra.mxu0 0.0
  %1313 = vmatprep.subr.mxu0 0.0
  %1314 = vmatpush1.msra.mxu0 0.0
  %1315 = vmatprep.subr.mxu0 0.0
  %1316 = vmatpush1.msra.mxu0 0.0
  %1317 = vmatprep.mubr.f32.mxu0 0.0
  %1318 = vmatmul.mubr.f32.gmra.mrb[0].mxu0 %v551
  %v1319 = vpop.f32.mrb[0].mxu0
  %v1320 = vadd.f32 0.0, %v1319
  %v1321 = vpop.f32.mrb[0].mxu0
  %1322 = vmatprep.mubr.f32.mxu0 0.0
  %1323 = vmatmul.mubr.f32.gmra.mrb[0].mxu0 %v556
  %v1324 = vpop.f32.mrb[0].mxu0
  %v1325 = vadd.f32 0.0, %v1324
  %v1326 = vpop.f32.mrb[0].mxu0
  %1327 = vmatprep.mubr.f32.mxu0 0.0
  %1328 = vmatmul.mubr.f32.gmra.mrb[0].mxu0 %v561
  %v1329 = vpop.f32.mrb[0].mxu0
  %v1330 = vadd.f32 0.0, %v1329
  %v1331 = vpop.f32.mrb[0].mxu0
  %1332 = vmatprep.mubr.f32.mxu0 0.0
  %1333 = vmatmul.mubr.f32.gmra.mrb[0].mxu0 %v566
  %v1334 = vpop.f32.mrb[0].mxu0
  %v1335 = vadd.f32 0.0, %v1334
  %v1336 = vpop.f32.mrb[0].mxu0
  %1337 = vdwg.mxu0
  %v1338 = vadd.f32 %v1232, %v1320
  %v1339 = vadd.f32 %v1233, %v1325
  %v1340 = vadd.f32 %v1234, %v1330
  %v1341 = vadd.f32 %v1235, %v1335
  %s1342 = scalar_lea.vmem %s3, 896
  %v1343 = vld [vmem:[%s1342] sm:$0xff]
  %v1344 = vld [vmem:[%s1342 + $0x8] sm:$0xff]
  %v1345 = vld [vmem:[%s1342 + $0x10] sm:$0xff]
  %v1346 = vld [vmem:[%s1342 + $0x18] sm:$0xff]
  %v1347 = vld [vmem:[%s1342 + $0x20] sm:$0xff]
  %v1348 = vld [vmem:[%s1342 + $0x28] sm:$0xff]
  %v1349 = vld [vmem:[%s1342 + $0x30] sm:$0xff]
  %v1350 = vld [vmem:[%s1342 + $0x38] sm:$0xff]
  %v1351 = vld [vmem:[%s1342 + $0x40] sm:$0xff]
  %v1352 = vld [vmem:[%s1342 + $0x48] sm:$0xff]
  %v1353 = vld [vmem:[%s1342 + $0x50] sm:$0xff]
  %v1354 = vld [vmem:[%s1342 + $0x58] sm:$0xff]
  %v1355 = vld [vmem:[%s1342 + $0x60] sm:$0xff]
  %v1356 = vld [vmem:[%s1342 + $0x68] sm:$0xff]
  %v1357 = vld [vmem:[%s1342 + $0x70] sm:$0xff]
  %v1358 = vld [vmem:[%s1342 + $0x78] sm:$0xff]
  %1359 = vmatprep.subr.mxu0 0.0
  %1360 = vmatpush1.msra.mxu0 %v1343
  %1361 = vmatprep.subr.mxu0 0.0
  %1362 = vmatpush1.msra.mxu0 %v1344
  %1363 = vmatprep.subr.mxu0 0.0
  %1364 = vmatpush1.msra.mxu0 %v1345
  %1365 = vmatprep.subr.mxu0 0.0
  %1366 = vmatpush1.msra.mxu0 %v1346
  %1367 = vmatprep.subr.mxu0 0.0
  %1368 = vmatpush1.msra.mxu0 %v1347
  %1369 = vmatprep.subr.mxu0 0.0
  %1370 = vmatpush1.msra.mxu0 %v1348
  %1371 = vmatprep.subr.mxu0 0.0
  %1372 = vmatpush1.msra.mxu0 %v1349
  %1373 = vmatprep.subr.mxu0 0.0
  %1374 = vmatpush1.msra.mxu0 %v1350
  %1375 = vmatprep.subr.mxu0 0.0
  %1376 = vmatpush1.msra.mxu0 %v1351
  %1377 = vmatprep.subr.mxu0 0.0
  %1378 = vmatpush1.msra.mxu0 %v1352
  %1379 = vmatprep.subr.mxu0 0.0
  %1380 = vmatpush1.msra.mxu0 %v1353
  %1381 = vmatprep.subr.mxu0 0.0
  %1382 = vmatpush1.msra.mxu0 %v1354
  %1383 = vmatprep.subr.mxu0 0.0
  %1384 = vmatpush1.msra.mxu0 %v1355
  %1385 = vmatprep.subr.mxu0 0.0
  %1386 = vmatpush1.msra.mxu0 %v1356
  %1387 = vmatprep.subr.mxu0 0.0
  %1388 = vmatpush1.msra.mxu0 %v1357
  %1389 = vmatprep.subr.mxu0 0.0
  %1390 = vmatpush1.msra.mxu0 %v1358
  %1391 = vmatprep.subr.mxu0 0.0
  %1392 = vmatpush1.msra.mxu0 0.0
  %1393 = vmatprep.subr.mxu0 0.0
  %1394 = vmatpush1.msra.mxu0 0.0
  %1395 = vmatprep.subr.mxu0 0.0
  %1396 = vmatpush1.msra.mxu0 0.0
  %1397 = vmatprep.subr.mxu0 0.0
  %1398 = vmatpush1.msra.mxu0 0.0
  %1399 = vmatprep.subr.mxu0 0.0
  %1400 = vmatpush1.msra.mxu0 0.0
  %1401 = vmatprep.subr.mxu0 0.0
  %1402 = vmatpush1.msra.mxu0 0.0
  %1403 = vmatprep.subr.mxu0 0.0
  %1404 = vmatpush1.msra.mxu0 0.0
  %1405 = vmatprep.subr.mxu0 0.0
  %1406 = vmatpush1.msra.mxu0 0.0
  %1407 = vmatprep.subr.mxu0 0.0
  %1408 = vmatpush1.msra.mxu0 0.0
  %1409 = vmatprep.subr.mxu0 0.0
  %1410 = vmatpush1.msra.mxu0 0.0
  %1411 = vmatprep.subr.mxu0 0.0
  %1412 = vmatpush1.msra.mxu0 0.0
  %1413 = vmatprep.subr.mxu0 0.0
  %1414 = vmatpush1.msra.mxu0 0.0
  %1415 = vmatprep.subr.mxu0 0.0
  %1416 = vmatpush1.msra.mxu0 0.0
  %1417 = vmatprep.subr.mxu0 0.0
  %1418 = vmatpush1.msra.mxu0 0.0
  %1419 = vmatprep.subr.mxu0 0.0
  %1420 = vmatpush1.msra.mxu0 0.0
  %1421 = vmatprep.subr.mxu0 0.0
  %1422 = vmatpush1.msra.mxu0 0.0
  %1423 = vmatprep.mubr.f32.mxu0 0.0
  %1424 = vmatmul.mubr.f32.gmra.mrb[0].mxu0 %v571
  %v1425 = vpop.f32.mrb[0].mxu0
  %v1426 = vadd.f32 0.0, %v1425
  %v1427 = vpop.f32.mrb[0].mxu0
  %1428 = vmatprep.mubr.f32.mxu0 0.0
  %1429 = vmatmul.mubr.f32.gmra.mrb[0].mxu0 %v576
  %v1430 = vpop.f32.mrb[0].mxu0
  %v1431 = vadd.f32 0.0, %v1430
  %v1432 = vpop.f32.mrb[0].mxu0
  %1433 = vmatprep.mubr.f32.mxu0 0.0
  %1434 = vmatmul.mubr.f32.gmra.mrb[0].mxu0 %v581
  %v1435 = vpop.f32.mrb[0].mxu0
  %v1436 = vadd.f32 0.0, %v1435
  %v1437 = vpop.f32.mrb[0].mxu0
  %1438 = vmatprep.mubr.f32.mxu0 0.0
  %1439 = vmatmul.mubr.f32.gmra.mrb[0].mxu0 %v586
  %v1440 = vpop.f32.mrb[0].mxu0
  %v1441 = vadd.f32 0.0, %v1440
  %v1442 = vpop.f32.mrb[0].mxu0
  %1443 = vdwg.mxu0
  %v1444 = vadd.f32 %v1338, %v1426
  %v1445 = vadd.f32 %v1339, %v1431
  %v1446 = vadd.f32 %v1340, %v1436
  %v1447 = vadd.f32 %v1341, %v1441
  %s1448 = scalar_lea.vmem %s3, 1024
  %v1449 = vld [vmem:[%s1448] sm:$0xff]
  %v1450 = vld [vmem:[%s1448 + $0x8] sm:$0xff]
  %v1451 = vld [vmem:[%s1448 + $0x10] sm:$0xff]
  %v1452 = vld [vmem:[%s1448 + $0x18] sm:$0xff]
  %v1453 = vld [vmem:[%s1448 + $0x20] sm:$0xff]
  %v1454 = vld [vmem:[%s1448 + $0x28] sm:$0xff]
  %v1455 = vld [vmem:[%s1448 + $0x30] sm:$0xff]
  %v1456 = vld [vmem:[%s1448 + $0x38] sm:$0xff]
  %v1457 = vld [vmem:[%s1448 + $0x40] sm:$0xff]
  %v1458 = vld [vmem:[%s1448 + $0x48] sm:$0xff]
  %v1459 = vld [vmem:[%s1448 + $0x50] sm:$0xff]
  %v1460 = vld [vmem:[%s1448 + $0x58] sm:$0xff]
  %v1461 = vld [vmem:[%s1448 + $0x60] sm:$0xff]
  %v1462 = vld [vmem:[%s1448 + $0x68] sm:$0xff]
  %v1463 = vld [vmem:[%s1448 + $0x70] sm:$0xff]
  %v1464 = vld [vmem:[%s1448 + $0x78] sm:$0xff]
  %1465 = vmatprep.subr.mxu0 0.0
  %1466 = vmatpush1.msra.mxu0 %v1449
  %1467 = vmatprep.subr.mxu0 0.0
  %1468 = vmatpush1.msra.mxu0 %v1450
  %1469 = vmatprep.subr.mxu0 0.0
  %1470 = vmatpush1.msra.mxu0 %v1451
  %1471 = vmatprep.subr.mxu0 0.0
  %1472 = vmatpush1.msra.mxu0 %v1452
  %1473 = vmatprep.subr.mxu0 0.0
  %1474 = vmatpush1.msra.mxu0 %v1453
  %1475 = vmatprep.subr.mxu0 0.0
  %1476 = vmatpush1.msra.mxu0 %v1454
  %1477 = vmatprep.subr.mxu0 0.0
  %1478 = vmatpush1.msra.mxu0 %v1455
  %1479 = vmatprep.subr.mxu0 0.0
  %1480 = vmatpush1.msra.mxu0 %v1456
  %1481 = vmatprep.subr.mxu0 0.0
  %1482 = vmatpush1.msra.mxu0 %v1457
  %1483 = vmatprep.subr.mxu0 0.0
  %1484 = vmatpush1.msra.mxu0 %v1458
  %1485 = vmatprep.subr.mxu0 0.0
  %1486 = vmatpush1.msra.mxu0 %v1459
  %1487 = vmatprep.subr.mxu0 0.0
  %1488 = vmatpush1.msra.mxu0 %v1460
  %1489 = vmatprep.subr.mxu0 0.0
  %1490 = vmatpush1.msra.mxu0 %v1461
  %1491 = vmatprep.subr.mxu0 0.0
  %1492 = vmatpush1.msra.mxu0 %v1462
  %1493 = vmatprep.subr.mxu0 0.0
  %1494 = vmatpush1.msra.mxu0 %v1463
  %1495 = vmatprep.subr.mxu0 0.0
  %1496 = vmatpush1.msra.mxu0 %v1464
  %1497 = vmatprep.subr.mxu0 0.0
  %1498 = vmatpush1.msra.mxu0 0.0
  %1499 = vmatprep.subr.mxu0 0.0
  %1500 = vmatpush1.msra.mxu0 0.0
  %1501 = vmatprep.subr.mxu0 0.0
  %1502 = vmatpush1.msra.mxu0 0.0
  %1503 = vmatprep.subr.mxu0 0.0
  %1504 = vmatpush1.msra.mxu0 0.0
  %1505 = vmatprep.subr.mxu0 0.0
  %1506 = vmatpush1.msra.mxu0 0.0
  %1507 = vmatprep.subr.mxu0 0.0
  %1508 = vmatpush1.msra.mxu0 0.0
  %1509 = vmatprep.subr.mxu0 0.0
  %1510 = vmatpush1.msra.mxu0 0.0
  %1511 = vmatprep.subr.mxu0 0.0
  %1512 = vmatpush1.msra.mxu0 0.0
  %1513 = vmatprep.subr.mxu0 0.0
  %1514 = vmatpush1.msra.mxu0 0.0
  %1515 = vmatprep.subr.mxu0 0.0
  %1516 = vmatpush1.msra.mxu0 0.0
  %1517 = vmatprep.subr.mxu0 0.0
  %1518 = vmatpush1.msra.mxu0 0.0
  %1519 = vmatprep.subr.mxu0 0.0
  %1520 = vmatpush1.msra.mxu0 0.0
  %1521 = vmatprep.subr.mxu0 0.0
  %1522 = vmatpush1.msra.mxu0 0.0
  %1523 = vmatprep.subr.mxu0 0.0
  %1524 = vmatpush1.msra.mxu0 0.0
  %1525 = vmatprep.subr.mxu0 0.0
  %1526 = vmatpush1.msra.mxu0 0.0
  %1527 = vmatprep.subr.mxu0 0.0
  %1528 = vmatpush1.msra.mxu0 0.0
  %1529 = vmatprep.mubr.f32.mxu0 0.0
  %1530 = vmatmul.mubr.f32.gmra.mrb[0].mxu0 %v591
  %v1531 = vpop.f32.mrb[0].mxu0
  %v1532 = vadd.f32 0.0, %v1531
  %v1533 = vpop.f32.mrb[0].mxu0
  %1534 = vmatprep.mubr.f32.mxu0 0.0
  %1535 = vmatmul.mubr.f32.gmra.mrb[0].mxu0 %v596
  %v1536 = vpop.f32.mrb[0].mxu0
  %v1537 = vadd.f32 0.0, %v1536
  %v1538 = vpop.f32.mrb[0].mxu0
  %1539 = vmatprep.mubr.f32.mxu0 0.0
  %1540 = vmatmul.mubr.f32.gmra.mrb[0].mxu0 %v601
  %v1541 = vpop.f32.mrb[0].mxu0
  %v1542 = vadd.f32 0.0, %v1541
  %v1543 = vpop.f32.mrb[0].mxu0
  %1544 = vmatprep.mubr.f32.mxu0 0.0
  %1545 = vmatmul.mubr.f32.gmra.mrb[0].mxu0 %v606
  %v1546 = vpop.f32.mrb[0].mxu0
  %v1547 = vadd.f32 0.0, %v1546
  %v1548 = vpop.f32.mrb[0].mxu0
  %1549 = vdwg.mxu0
  %v1550 = vadd.f32 %v1444, %v1532
  %v1551 = vadd.f32 %v1445, %v1537
  %v1552 = vadd.f32 %v1446, %v1542
  %v1553 = vadd.f32 %v1447, %v1547
  %v1554 = vmax.f32 %v1550, 0.0
  %v1555 = vmax.f32 %v1551, 0.0
  %v1556 = vmax.f32 %v1552, 0.0
  %v1557 = vmax.f32 %v1553, 0.0
  %v1558 = vld [vmem:[%s6] sm:$0xff]
  %v1559 = vld [vmem:[%s6 + $0x8] sm:$0xff]
  %v1560 = vld [vmem:[%s6 + $0x10] sm:$0xff]
  %v1561 = vld [vmem:[%s6 + $0x18] sm:$0xff]
  %vm1562 = vcmask 261120
  %v1564 = vsel %vm1562, %v1554, 0
  %v1567 = vsel %vm1562, %v1555, 0
  %v1570 = vsel %vm1562, %v1556, 0
  %v1573 = vsel %vm1562, %v1557, 0
  %1575 = vmatprep.subr.mxu0 0.0
  %1576 = vmatpush1.msra.mxu0 %v1558
  %1577 = vmatprep.subr.mxu0 0.0
  %1578 = vmatpush1.msra.mxu0 %v1559
  %1579 = vmatprep.subr.mxu0 0.0
  %1580 = vmatpush1.msra.mxu0 %v1560
  %1581 = vmatprep.subr.mxu0 0.0
  %1582 = vmatpush1.msra.mxu0 %v1561
  %1583 = vmatprep.subr.mxu0 0.0
  %1584 = vmatpush1.msra.mxu0 0.0
  %1585 = vmatprep.subr.mxu0 0.0
  %1586 = vmatpush1.msra.mxu0 0.0
  %1587 = vmatprep.subr.mxu0 0.0
  %1588 = vmatpush1.msra.mxu0 0.0
  %1589 = vmatprep.subr.mxu0 0.0
  %1590 = vmatpush1.msra.mxu0 0.0
  %1591 = vmatprep.subr.mxu0 0.0
  %1592 = vmatpush1.msra.mxu0 0.0
  %1593 = vmatprep.subr.mxu0 0.0
  %1594 = vmatpush1.msra.mxu0 0.0
  %1595 = vmatprep.subr.mxu0 0.0
  %1596 = vmatpush1.msra.mxu0 0.0
  %1597 = vmatprep.subr.mxu0 0.0
  %1598 = vmatpush1.msra.mxu0 0.0
  %1599 = vmatprep.subr.mxu0 0.0
  %1600 = vmatpush1.msra.mxu0 0.0
  %1601 = vmatprep.subr.mxu0 0.0
  %1602 = vmatpush1.msra.mxu0 0.0
  %1603 = vmatprep.subr.mxu0 0.0
  %1604 = vmatpush1.msra.mxu0 0.0
  %1605 = vmatprep.subr.mxu0 0.0
  %1606 = vmatpush1.msra.mxu0 0.0
  %1607 = vmatprep.subr.mxu0 0.0
  %1608 = vmatpush1.msra.mxu0 0.0
  %1609 = vmatprep.subr.mxu0 0.0
  %1610 = vmatpush1.msra.mxu0 0.0
  %1611 = vmatprep.subr.mxu0 0.0
  %1612 = vmatpush1.msra.mxu0 0.0
  %1613 = vmatprep.subr.mxu0 0.0
  %1614 = vmatpush1.msra.mxu0 0.0
  %1615 = vmatprep.subr.mxu0 0.0
  %1616 = vmatpush1.msra.mxu0 0.0
  %1617 = vmatprep.subr.mxu0 0.0
  %1618 = vmatpush1.msra.mxu0 0.0
  %1619 = vmatprep.subr.mxu0 0.0
  %1620 = vmatpush1.msra.mxu0 0.0
  %1621 = vmatprep.subr.mxu0 0.0
  %1622 = vmatpush1.msra.mxu0 0.0
  %1623 = vmatprep.subr.mxu0 0.0
  %1624 = vmatpush1.msra.mxu0 0.0
  %1625 = vmatprep.subr.mxu0 0.0
  %1626 = vmatpush1.msra.mxu0 0.0
  %1627 = vmatprep.subr.mxu0 0.0
  %1628 = vmatpush1.msra.mxu0 0.0
  %1629 = vmatprep.subr.mxu0 0.0
  %1630 = vmatpush1.msra.mxu0 0.0
  %1631 = vmatprep.subr.mxu0 0.0
  %1632 = vmatpush1.msra.mxu0 0.0
  %1633 = vmatprep.subr.mxu0 0.0
  %1634 = vmatpush1.msra.mxu0 0.0
  %1635 = vmatprep.subr.mxu0 0.0
  %1636 = vmatpush1.msra.mxu0 0.0
  %1637 = vmatprep.subr.mxu0 0.0
  %1638 = vmatpush1.msra.mxu0 0.0
  %1639 = vmatprep.mubr.f32.mxu0 0.0
  %1640 = vmatmul.mubr.f32.gmra.mrb[0].mxu0 %v1564
  %v1641 = vpop.f32.mrb[0].mxu0
  %v1642 = vadd.f32 0.0, %v1641
  %v1643 = vpop.f32.mrb[0].mxu0
  %1644 = vmatprep.mubr.f32.mxu0 0.0
  %1645 = vmatmul.mubr.f32.gmra.mrb[0].mxu0 %v1567
  %v1646 = vpop.f32.mrb[0].mxu0
  %v1647 = vadd.f32 0.0, %v1646
  %v1648 = vpop.f32.mrb[0].mxu0
  %1649 = vmatprep.mubr.f32.mxu0 0.0
  %1650 = vmatmul.mubr.f32.gmra.mrb[0].mxu0 %v1570
  %v1651 = vpop.f32.mrb[0].mxu0
  %v1652 = vadd.f32 0.0, %v1651
  %v1653 = vpop.f32.mrb[0].mxu0
  %1654 = vmatprep.mubr.f32.mxu0 0.0
  %1655 = vmatmul.mubr.f32.gmra.mrb[0].mxu0 %v1573
  %v1656 = vpop.f32.mrb[0].mxu0
  %v1657 = vadd.f32 0.0, %v1656
  %v1658 = vpop.f32.mrb[0].mxu0
  %1659 = vdwg.mxu0
  %v1660 = vld [vmem:[%s4] sm:$0x3]
  %v1662 = vsel %vm1562, %v1660, 0
  %1664 = vmatprep.subr.mxu0 0.0
  %1665 = vmatpush1.msra.mxu0 %v1642
  %1666 = vmatprep.subr.mxu0 0.0
  %1667 = vmatpush1.msra.mxu0 %v1647
  %1668 = vmatprep.subr.mxu0 0.0
  %1669 = vmatpush1.msra.mxu0 %v1652
  %1670 = vmatprep.subr.mxu0 0.0
  %1671 = vmatpush1.msra.mxu0 %v1657
  %1672 = vmatprep.subr.mxu0 0.0
  %1673 = vmatpush1.msra.mxu0 0.0
  %1674 = vmatprep.subr.mxu0 0.0
  %1675 = vmatpush1.msra.mxu0 0.0
  %1676 = vmatprep.subr.mxu0 0.0
  %1677 = vmatpush1.msra.mxu0 0.0
  %1678 = vmatprep.subr.mxu0 0.0
  %1679 = vmatpush1.msra.mxu0 0.0
  %1680 = vmatprep.subr.mxu0 0.0
  %1681 = vmatpush1.msra.mxu0 0.0
  %1682 = vmatprep.subr.mxu0 0.0
  %1683 = vmatpush1.msra.mxu0 0.0
  %1684 = vmatprep.subr.mxu0 0.0
  %1685 = vmatpush1.msra.mxu0 0.0
  %1686 = vmatprep.subr.mxu0 0.0
  %1687 = vmatpush1.msra.mxu0 0.0
  %1688 = vmatprep.subr.mxu0 0.0
  %1689 = vmatpush1.msra.mxu0 0.0
  %1690 = vmatprep.subr.mxu0 0.0
  %1691 = vmatpush1.msra.mxu0 0.0
  %1692 = vmatprep.subr.mxu0 0.0
  %1693 = vmatpush1.msra.mxu0 0.0
  %1694 = vmatprep.subr.mxu0 0.0
  %1695 = vmatpush1.msra.mxu0 0.0
  %1696 = vmatprep.subr.mxu0 0.0
  %1697 = vmatpush1.msra.mxu0 0.0
  %1698 = vmatprep.subr.mxu0 0.0
  %1699 = vmatpush1.msra.mxu0 0.0
  %1700 = vmatprep.subr.mxu0 0.0
  %1701 = vmatpush1.msra.mxu0 0.0
  %1702 = vmatprep.subr.mxu0 0.0
  %1703 = vmatpush1.msra.mxu0 0.0
  %1704 = vmatprep.subr.mxu0 0.0
  %1705 = vmatpush1.msra.mxu0 0.0
  %1706 = vmatprep.subr.mxu0 0.0
  %1707 = vmatpush1.msra.mxu0 0.0
  %1708 = vmatprep.subr.mxu0 0.0
  %1709 = vmatpush1.msra.mxu0 0.0
  %1710 = vmatprep.subr.mxu0 0.0
  %1711 = vmatpush1.msra.mxu0 0.0
  %1712 = vmatprep.subr.mxu0 0.0
  %1713 = vmatpush1.msra.mxu0 0.0
  %1714 = vmatprep.subr.mxu0 0.0
  %1715 = vmatpush1.msra.mxu0 0.0
  %1716 = vmatprep.subr.mxu0 0.0
  %1717 = vmatpush1.msra.mxu0 0.0
  %1718 = vmatprep.subr.mxu0 0.0
  %1719 = vmatpush1.msra.mxu0 0.0
  %1720 = vmatprep.subr.mxu0 0.0
  %1721 = vmatpush1.msra.mxu0 0.0
  %1722 = vmatprep.subr.mxu0 0.0
  %1723 = vmatpush1.msra.mxu0 0.0
  %1724 = vmatprep.subr.mxu0 0.0
  %1725 = vmatpush1.msra.mxu0 0.0
  %1726 = vmatprep.subr.mxu0 0.0
  %1727 = vmatpush1.msra.mxu0 0.0
  %1728 = vmatprep.mubr.f32.mxu0 0.0
  %1729 = vmatmul.mubr.f32.gmra.mrb[0].mxu0 %v1662
  %v1730 = vpop.f32.mrb[0].mxu0
  %v1731 = vadd.f32 0.0, %v1730
  %v1732 = vpop.f32.mrb[0].mxu0
  %1733 = vdwg.mxu0
  %v1734 = vmax.f32 %v1731, 0.0
  %v1735 = vld [vmem:[%s5] sm:$0xff]
  %v1736 = vld [vmem:[%s5 + $0x8] sm:$0xff]
  %v1737 = vld [vmem:[%s5 + $0x10] sm:$0xff]
  %v1738 = vld [vmem:[%s5 + $0x18] sm:$0xff]
  %vm1739 = vcmask 15360
  %v1741 = vsel %vm1739, %v1735, 0
  %v1744 = vsel %vm1739, %v1736, 0
  %v1747 = vsel %vm1739, %v1737, 0
  %v1750 = vsel %vm1739, %v1738, 0
  %vm1752 = vcmask 1041408
  %v1754 = vsel %vm1752, %v1734, 0
  %1756 = vmatprep.subr.mxu0 0.0
  %1757 = vmatpush1.msra.mxu0 %v1754
  %1758 = vmatprep.subr.mxu0 0.0
  %1759 = vmatpush1.msra.mxu0 0.0
  %1760 = vmatprep.subr.mxu0 0.0
  %1761 = vmatpush1.msra.mxu0 0.0
  %1762 = vmatprep.subr.mxu0 0.0
  %1763 = vmatpush1.msra.mxu0 0.0
  %1764 = vmatprep.subr.mxu0 0.0
  %1765 = vmatpush1.msra.mxu0 0.0
  %1766 = vmatprep.subr.mxu0 0.0
  %1767 = vmatpush1.msra.mxu0 0.0
  %1768 = vmatprep.subr.mxu0 0.0
  %1769 = vmatpush1.msra.mxu0 0.0
  %1770 = vmatprep.subr.mxu0 0.0
  %1771 = vmatpush1.msra.mxu0 0.0
  %1772 = vmatprep.subr.mxu0 0.0
  %1773 = vmatpush1.msra.mxu0 0.0
  %1774 = vmatprep.subr.mxu0 0.0
  %1775 = vmatpush1.msra.mxu0 0.0
  %1776 = vmatprep.subr.mxu0 0.0
  %1777 = vmatpush1.msra.mxu0 0.0
  %1778 = vmatprep.subr.mxu0 0.0
  %1779 = vmatpush1.msra.mxu0 0.0
  %1780 = vmatprep.subr.mxu0 0.0
  %1781 = vmatpush1.msra.mxu0 0.0
  %1782 = vmatprep.subr.mxu0 0.0
  %1783 = vmatpush1.msra.mxu0 0.0
  %1784 = vmatprep.subr.mxu0 0.0
  %1785 = vmatpush1.msra.mxu0 0.0
  %1786 = vmatprep.subr.mxu0 0.0
  %1787 = vmatpush1.msra.mxu0 0.0
  %1788 = vmatprep.subr.mxu0 0.0
  %1789 = vmatpush1.msra.mxu0 0.0
  %1790 = vmatprep.subr.mxu0 0.0
  %1791 = vmatpush1.msra.mxu0 0.0
  %1792 = vmatprep.subr.mxu0 0.0
  %1793 = vmatpush1.msra.mxu0 0.0
  %1794 = vmatprep.subr.mxu0 0.0
  %1795 = vmatpush1.msra.mxu0 0.0
  %1796 = vmatprep.subr.mxu0 0.0
  %1797 = vmatpush1.msra.mxu0 0.0
  %1798 = vmatprep.subr.mxu0 0.0
  %1799 = vmatpush1.msra.mxu0 0.0
  %1800 = vmatprep.subr.mxu0 0.0
  %1801 = vmatpush1.msra.mxu0 0.0
  %1802 = vmatprep.subr.mxu0 0.0
  %1803 = vmatpush1.msra.mxu0 0.0
  %1804 = vmatprep.subr.mxu0 0.0
  %1805 = vmatpush1.msra.mxu0 0.0
  %1806 = vmatprep.subr.mxu0 0.0
  %1807 = vmatpush1.msra.mxu0 0.0
  %1808 = vmatprep.subr.mxu0 0.0
  %1809 = vmatpush1.msra.mxu0 0.0
  %1810 = vmatprep.subr.mxu0 0.0
  %1811 = vmatpush1.msra.mxu0 0.0
  %1812 = vmatprep.subr.mxu0 0.0
  %1813 = vmatpush1.msra.mxu0 0.0
  %1814 = vmatprep.subr.mxu0 0.0
  %1815 = vmatpush1.msra.mxu0 0.0
  %1816 = vmatprep.subr.mxu0 0.0
  %1817 = vmatpush1.msra.mxu0 0.0
  %1818 = vmatprep.subr.mxu0 0.0
  %1819 = vmatpush1.msra.mxu0 0.0
  %1820 = vmatprep.mubr.f32.mxu0 0.0
  %1821 = vmatmul.mubr.f32.gmra.mrb[0].mxu0 %v1741
  %v1822 = vpop.f32.mrb[0].mxu0
  %v1823 = vadd.f32 0.0, %v1822
  %v1824 = vpop.f32.mrb[0].mxu0
  %1825 = vmatprep.mubr.f32.mxu0 0.0
  %1826 = vmatmul.mubr.f32.gmra.mrb[0].mxu0 %v1744
  %v1827 = vpop.f32.mrb[0].mxu0
  %v1828 = vadd.f32 0.0, %v1827
  %v1829 = vpop.f32.mrb[0].mxu0
  %1830 = vmatprep.mubr.f32.mxu0 0.0
  %1831 = vmatmul.mubr.f32.gmra.mrb[0].mxu0 %v1747
  %v1832 = vpop.f32.mrb[0].mxu0
  %v1833 = vadd.f32 0.0, %v1832
  %v1834 = vpop.f32.mrb[0].mxu0
  %1835 = vmatprep.mubr.f32.mxu0 0.0
  %1836 = vmatmul.mubr.f32.gmra.mrb[0].mxu0 %v1750
  %v1837 = vpop.f32.mrb[0].mxu0
  %v1838 = vadd.f32 0.0, %v1837
  %v1839 = vpop.f32.mrb[0].mxu0
  %1840 = vdwg.mxu0
  %v1841 = vxor.u32 %v1823, 2147483648
  %v1842 = vxor.u32 %v1828, 2147483648
  %v1843 = vxor.u32 %v1833, 2147483648
  %v1844 = vxor.u32 %v1838, 2147483648
  %v1845 = vmul.f32 %v1841, 1.442695
  %v1846 = vpow.pop %v1845
  %v1847 = vmul.f32 %v1842, 1.442695
  %v1848 = vpow.pop %v1847
  %v1849 = vmul.f32 %v1843, 1.442695
  %v1850 = vpow.pop %v1849
  %v1851 = vmul.f32 %v1844, 1.442695
  %v1852 = vpow.pop %v1851
  %v1853 = vadd.f32 %v1846, 1.0
  %v1854 = vadd.f32 %v1848, 1.0
  %v1855 = vadd.f32 %v1850, 1.0
  %v1856 = vadd.f32 %v1852, 1.0
  %v1857 = vrcp.pop %v1853
  %v1858 = vmul.f32 1.0, %v1857
  %v1859 = vrcp.pop %v1854
  %v1860 = vmul.f32 1.0, %v1859
  %v1861 = vrcp.pop %v1855
  %v1862 = vmul.f32 1.0, %v1861
  %v1863 = vrcp.pop %v1856
  %v1864 = vmul.f32 1.0, %v1863
  %v1865 = vld [vmem:[%s7] sm:$0x3]
  %v1867 = vsel %vm1739, %v1858, 0
  %v1870 = vsel %vm1739, %v1860, 0
  %v1873 = vsel %vm1739, %v1862, 0
  %v1876 = vsel %vm1739, %v1864, 0
  %v1879 = vsel %vm1752, %v1865, 0
  %1881 = vmatprep.subr.mxu0 0.0
  %1882 = vmatpush1.msra.mxu0 %v1879
  %1883 = vmatprep.subr.mxu0 0.0
  %1884 = vmatpush1.msra.mxu0 0.0
  %1885 = vmatprep.subr.mxu0 0.0
  %1886 = vmatpush1.msra.mxu0 0.0
  %1887 = vmatprep.subr.mxu0 0.0
  %1888 = vmatpush1.msra.mxu0 0.0
  %1889 = vmatprep.subr.mxu0 0.0
  %1890 = vmatpush1.msra.mxu0 0.0
  %1891 = vmatprep.subr.mxu0 0.0
  %1892 = vmatpush1.msra.mxu0 0.0
  %1893 = vmatprep.subr.mxu0 0.0
  %1894 = vmatpush1.msra.mxu0 0.0
  %1895 = vmatprep.subr.mxu0 0.0
  %1896 = vmatpush1.msra.mxu0 0.0
  %1897 = vmatprep.subr.mxu0 0.0
  %1898 = vmatpush1.msra.mxu0 0.0
  %1899 = vmatprep.subr.mxu0 0.0
  %1900 = vmatpush1.msra.mxu0 0.0
  %1901 = vmatprep.subr.mxu0 0.0
  %1902 = vmatpush1.msra.mxu0 0.0
  %1903 = vmatprep.subr.mxu0 0.0
  %1904 = vmatpush1.msra.mxu0 0.0
  %1905 = vmatprep.subr.mxu0 0.0
  %1906 = vmatpush1.msra.mxu0 0.0
  %1907 = vmatprep.subr.mxu0 0.0
  %1908 = vmatpush1.msra.mxu0 0.0
  %1909 = vmatprep.subr.mxu0 0.0
  %1910 = vmatpush1.msra.mxu0 0.0
  %1911 = vmatprep.subr.mxu0 0.0
  %1912 = vmatpush1.msra.mxu0 0.0
  %1913 = vmatprep.subr.mxu0 0.0
  %1914 = vmatpush1.msra.mxu0 0.0
  %1915 = vmatprep.subr.mxu0 0.0
  %1916 = vmatpush1.msra.mxu0 0.0
  %1917 = vmatprep.subr.mxu0 0.0
  %1918 = vmatpush1.msra.mxu0 0.0
  %1919 = vmatprep.subr.mxu0 0.0
  %1920 = vmatpush1.msra.mxu0 0.0
  %1921 = vmatprep.subr.mxu0 0.0
  %1922 = vmatpush1.msra.mxu0 0.0
  %1923 = vmatprep.subr.mxu0 0.0
  %1924 = vmatpush1.msra.mxu0 0.0
  %1925 = vmatprep.subr.mxu0 0.0
  %1926 = vmatpush1.msra.mxu0 0.0
  %1927 = vmatprep.subr.mxu0 0.0
  %1928 = vmatpush1.msra.mxu0 0.0
  %1929 = vmatprep.subr.mxu0 0.0
  %1930 = vmatpush1.msra.mxu0 0.0
  %1931 = vmatprep.subr.mxu0 0.0
  %1932 = vmatpush1.msra.mxu0 0.0
  %1933 = vmatprep.subr.mxu0 0.0
  %1934 = vmatpush1.msra.mxu0 0.0
  %1935 = vmatprep.subr.mxu0 0.0
  %1936 = vmatpush1.msra.mxu0 0.0
  %1937 = vmatprep.subr.mxu0 0.0
  %1938 = vmatpush1.msra.mxu0 0.0
  %1939 = vmatprep.subr.mxu0 0.0
  %1940 = vmatpush1.msra.mxu0 0.0
  %1941 = vmatprep.subr.mxu0 0.0
  %1942 = vmatpush1.msra.mxu0 0.0
  %1943 = vmatprep.subr.mxu0 0.0
  %1944 = vmatpush1.msra.mxu0 0.0
  %1945 = vmatprep.mubr.f32.mxu0 0.0
  %1946 = vmatmul.mubr.f32.gmra.mrb[0].mxu0 %v1867
  %v1947 = vpop.f32.mrb[0].mxu0
  %v1948 = vadd.f32 0.0, %v1947
  %v1949 = vpop.f32.mrb[0].mxu0
  %1950 = vmatprep.mubr.f32.mxu0 0.0
  %1951 = vmatmul.mubr.f32.gmra.mrb[0].mxu0 %v1870
  %v1952 = vpop.f32.mrb[0].mxu0
  %v1953 = vadd.f32 0.0, %v1952
  %v1954 = vpop.f32.mrb[0].mxu0
  %1955 = vmatprep.mubr.f32.mxu0 0.0
  %1956 = vmatmul.mubr.f32.gmra.mrb[0].mxu0 %v1873
  %v1957 = vpop.f32.mrb[0].mxu0
  %v1958 = vadd.f32 0.0, %v1957
  %v1959 = vpop.f32.mrb[0].mxu0
  %1960 = vmatprep.mubr.f32.mxu0 0.0
  %1961 = vmatmul.mubr.f32.gmra.mrb[0].mxu0 %v1876
  %v1962 = vpop.f32.mrb[0].mxu0
  %v1963 = vadd.f32 0.0, %v1962
  %v1964 = vpop.f32.mrb[0].mxu0
  %1965 = vdwg.mxu0
  %v1966 = vmul.f32 %v1554, %v1948
  %v1967 = vmul.f32 %v1555, %v1953
  %v1968 = vmul.f32 %v1556, %v1958
  %v1969 = vmul.f32 %v1557, %v1963
  %v1970 = vpack.c.bf16 %v1967, %v1966
  %v1971 = vpack.c.bf16 %v1969, %v1968
  %v1974 = vunpack.c.l.b16 %v1970
  %v1975 = vunpack.c.h.b16 %v1970
  %v1976 = vunpack.c.l.b16 %v1971
  %v1977 = vunpack.c.h.b16 %v1971
  %v1978 = vpack.c.b16 %v1974, %v1974
  %v1979 = vpack.c.b16 %v1975, %v1975
  %v1980 = vpack.c.b16 %v1976, %v1976
  %v1981 = vpack.c.b16 %v1977, %v1977
  %vm1986 = vcmask 257024
  %1987 = vst.msk [vmem:[%s16] sm:$0xf] %vm1986, %v1978
  %1988 = vst.msk [vmem:[%s16 + $0x4] sm:$0xf] %vm1986, %v1979
  %1989 = vst.msk [vmem:[%s16 + $0x8] sm:$0xf] %vm1986, %v1980
  %1990 = vst.msk [vmem:[%s16 + $0xc] sm:$0xf] %vm1986, %v1981
  %v1991 = vld [vmem:[%s8] sm:$0xff]
  %v1992 = vld [vmem:[%s8 + $0x8] sm:$0xff]
  %v1993 = vld [vmem:[%s8 + $0x10] sm:$0xff]
  %v1994 = vld [vmem:[%s8 + $0x18] sm:$0xff]
  %v1995 = vld [vmem:[%s8 + $0x20] sm:$0xff]
  %v1996 = vld [vmem:[%s8 + $0x28] sm:$0xff]
  %v1997 = vld [vmem:[%s8 + $0x30] sm:$0xff]
  %v1998 = vld [vmem:[%s8 + $0x38] sm:$0xff]
  %v1999 = vld [vmem:[%s8 + $0x40] sm:$0xff]
  %v2000 = vld [vmem:[%s8 + $0x48] sm:$0xff]
  %v2001 = vld [vmem:[%s8 + $0x50] sm:$0xff]
  %v2002 = vld [vmem:[%s8 + $0x58] sm:$0xff]
  %v2003 = vld [vmem:[%s8 + $0x60] sm:$0xff]
  %v2004 = vld [vmem:[%s8 + $0x68] sm:$0xff]
  %v2005 = vld [vmem:[%s8 + $0x70] sm:$0xff]
  %v2006 = vld [vmem:[%s8 + $0x78] sm:$0xff]
  %v2007 = vld [vmem:[%s8 + $0x80] sm:$0xff]
  %v2008 = vld [vmem:[%s8 + $0x88] sm:$0xff]
  %v2009 = vld [vmem:[%s8 + $0x90] sm:$0xff]
  %v2010 = vld [vmem:[%s8 + $0x98] sm:$0xff]
  %v2011 = vld [vmem:[%s8 + $0xa0] sm:$0xff]
  %v2012 = vld [vmem:[%s8 + $0xa8] sm:$0xff]
  %v2013 = vld [vmem:[%s8 + $0xb0] sm:$0xff]
  %v2014 = vld [vmem:[%s8 + $0xb8] sm:$0xff]
  %v2015 = vld [vmem:[%s8 + $0xc0] sm:$0xff]
  %v2016 = vld [vmem:[%s8 + $0xc8] sm:$0xff]
  %v2017 = vld [vmem:[%s8 + $0xd0] sm:$0xff]
  %v2018 = vld [vmem:[%s8 + $0xd8] sm:$0xff]
  %v2019 = vld [vmem:[%s8 + $0xe0] sm:$0xff]
  %v2020 = vld [vmem:[%s8 + $0xe8] sm:$0xff]
  %v2021 = vld [vmem:[%s8 + $0xf0] sm:$0xff]
  %v2022 = vld [vmem:[%s8 + $0xf8] sm:$0xff]
  %v2023 = vld [vmem:[%s8 + $0x100] sm:$0xff]
  %v2024 = vld [vmem:[%s8 + $0x108] sm:$0xff]
  %v2025 = vld [vmem:[%s8 + $0x110] sm:$0xff]
  %v2026 = vld [vmem:[%s8 + $0x118] sm:$0xff]
  %v2027 = vld [vmem:[%s8 + $0x120] sm:$0xff]
  %v2028 = vld [vmem:[%s8 + $0x128] sm:$0xff]
  %v2029 = vld [vmem:[%s8 + $0x130] sm:$0xff]
  %v2030 = vld [vmem:[%s8 + $0x138] sm:$0xff]
  %v2031 = vld [vmem:[%s8 + $0x140] sm:$0xff]
  %v2032 = vld [vmem:[%s8 + $0x148] sm:$0xff]
  %v2033 = vld [vmem:[%s8 + $0x150] sm:$0xff]
  %v2034 = vld [vmem:[%s8 + $0x158] sm:$0xff]
  %v2035 = vld [vmem:[%s8 + $0x160] sm:$0xff]
  %v2036 = vld [vmem:[%s8 + $0x168] sm:$0xff]
  %v2037 = vld [vmem:[%s8 + $0x170] sm:$0xff]
  %v2038 = vld [vmem:[%s8 + $0x178] sm:$0xff]
  %v2039 = vld [vmem:[%s8 + $0x180] sm:$0xff]
  %v2040 = vld [vmem:[%s8 + $0x188] sm:$0xff]
  %v2041 = vld [vmem:[%s8 + $0x190] sm:$0xff]
  %v2042 = vld [vmem:[%s8 + $0x198] sm:$0xff]
  %v2043 = vld [vmem:[%s8 + $0x1a0] sm:$0xff]
  %v2044 = vld [vmem:[%s8 + $0x1a8] sm:$0xff]
  %v2046 = vsel %vm1562, %v1991, 0
  %v2049 = vsel %vm1562, %v1992, 0
  %v2052 = vsel %vm1562, %v1993, 0
  %v2055 = vsel %vm1562, %v1994, 0
  %v2058 = vsel %vm1562, %v1995, 0
  %v2061 = vsel %vm1562, %v1996, 0
  %v2064 = vsel %vm1562, %v1997, 0
  %v2067 = vsel %vm1562, %v1998, 0
  %v2070 = vsel %vm1562, %v1999, 0
  %v2073 = vsel %vm1562, %v2000, 0
  %v2076 = vsel %vm1562, %v2001, 0
  %v2079 = vsel %vm1562, %v2002, 0
  %v2082 = vsel %vm1562, %v2003, 0
  %v2085 = vsel %vm1562, %v2004, 0
  %v2088 = vsel %vm1562, %v2005, 0
  %v2091 = vsel %vm1562, %v2006, 0
  %v2094 = vsel %vm1562, %v2007, 0
  %v2097 = vsel %vm1562, %v2008, 0
  %v2100 = vsel %vm1562, %v2009, 0
  %v2103 = vsel %vm1562, %v2010, 0
  %v2106 = vsel %vm1562, %v2011, 0
  %v2109 = vsel %vm1562, %v2012, 0
  %v2112 = vsel %vm1562, %v2013, 0
  %v2115 = vsel %vm1562, %v2014, 0
  %v2118 = vsel %vm1562, %v2015, 0
  %v2121 = vsel %vm1562, %v2016, 0
  %v2124 = vsel %vm1562, %v2017, 0
  %v2127 = vsel %vm1562, %v2018, 0
  %v2130 = vsel %vm1562, %v2019, 0
  %v2133 = vsel %vm1562, %v2020, 0
  %v2136 = vsel %vm1562, %v2021, 0
  %v2139 = vsel %vm1562, %v2022, 0
  %v2142 = vsel %vm1562, %v2023, 0
  %v2145 = vsel %vm1562, %v2024, 0
  %v2148 = vsel %vm1562, %v2025, 0
  %v2151 = vsel %vm1562, %v2026, 0
  %v2154 = vsel %vm1562, %v2027, 0
  %v2157 = vsel %vm1562, %v2028, 0
  %v2160 = vsel %vm1562, %v2029, 0
  %v2163 = vsel %vm1562, %v2030, 0
  %v2166 = vsel %vm1562, %v2031, 0
  %v2169 = vsel %vm1562, %v2032, 0
  %v2172 = vsel %vm1562, %v2033, 0
  %v2175 = vsel %vm1562, %v2034, 0
  %v2178 = vsel %vm1562, %v2035, 0
  %v2181 = vsel %vm1562, %v2036, 0
  %v2184 = vsel %vm1562, %v2037, 0
  %v2187 = vsel %vm1562, %v2038, 0
  %v2190 = vsel %vm1562, %v2039, 0
  %v2193 = vsel %vm1562, %v2040, 0
  %v2196 = vsel %vm1562, %v2041, 0
  %v2199 = vsel %vm1562, %v2042, 0
  %v2202 = vsel %vm1562, %v2043, 0
  %v2205 = vsel %vm1562, %v2044, 0
  %2207 = vmatprep.subr.mxu0 0.0
  %2208 = vmatpush1.msra.mxu0 %v1554
  %2209 = vmatprep.subr.mxu0 0.0
  %2210 = vmatpush1.msra.mxu0 %v1555
  %2211 = vmatprep.subr.mxu0 0.0
  %2212 = vmatpush1.msra.mxu0 %v1556
  %2213 = vmatprep.subr.mxu0 0.0
  %2214 = vmatpush1.msra.mxu0 %v1557
  %2215 = vmatprep.subr.mxu0 0.0
  %2216 = vmatpush1.msra.mxu0 0.0
  %2217 = vmatprep.subr.mxu0 0.0
  %2218 = vmatpush1.msra.mxu0 0.0
  %2219 = vmatprep.subr.mxu0 0.0
  %2220 = vmatpush1.msra.mxu0 0.0
  %2221 = vmatprep.subr.mxu0 0.0
  %2222 = vmatpush1.msra.mxu0 0.0
  %2223 = vmatprep.subr.mxu0 0.0
  %2224 = vmatpush1.msra.mxu0 0.0
  %2225 = vmatprep.subr.mxu0 0.0
  %2226 = vmatpush1.msra.mxu0 0.0
  %2227 = vmatprep.subr.mxu0 0.0
  %2228 = vmatpush1.msra.mxu0 0.0
  %2229 = vmatprep.subr.mxu0 0.0
  %2230 = vmatpush1.msra.mxu0 0.0
  %2231 = vmatprep.subr.mxu0 0.0
  %2232 = vmatpush1.msra.mxu0 0.0
  %2233 = vmatprep.subr.mxu0 0.0
  %2234 = vmatpush1.msra.mxu0 0.0
  %2235 = vmatprep.subr.mxu0 0.0
  %2236 = vmatpush1.msra.mxu0 0.0
  %2237 = vmatprep.subr.mxu0 0.0
  %2238 = vmatpush1.msra.mxu0 0.0
  %2239 = vmatprep.subr.mxu0 0.0
  %2240 = vmatpush1.msra.mxu0 0.0
  %2241 = vmatprep.subr.mxu0 0.0
  %2242 = vmatpush1.msra.mxu0 0.0
  %2243 = vmatprep.subr.mxu0 0.0
  %2244 = vmatpush1.msra.mxu0 0.0
  %2245 = vmatprep.subr.mxu0 0.0
  %2246 = vmatpush1.msra.mxu0 0.0
  %2247 = vmatprep.subr.mxu0 0.0
  %2248 = vmatpush1.msra.mxu0 0.0
  %2249 = vmatprep.subr.mxu0 0.0
  %2250 = vmatpush1.msra.mxu0 0.0
  %2251 = vmatprep.subr.mxu0 0.0
  %2252 = vmatpush1.msra.mxu0 0.0
  %2253 = vmatprep.subr.mxu0 0.0
  %2254 = vmatpush1.msra.mxu0 0.0
  %2255 = vmatprep.subr.mxu0 0.0
  %2256 = vmatpush1.msra.mxu0 0.0
  %2257 = vmatprep.subr.mxu0 0.0
  %2258 = vmatpush1.msra.mxu0 0.0
  %2259 = vmatprep.subr.mxu0 0.0
  %2260 = vmatpush1.msra.mxu0 0.0
  %2261 = vmatprep.subr.mxu0 0.0
  %2262 = vmatpush1.msra.mxu0 0.0
  %2263 = vmatprep.subr.mxu0 0.0
  %2264 = vmatpush1.msra.mxu0 0.0
  %2265 = vmatprep.subr.mxu0 0.0
  %2266 = vmatpush1.msra.mxu0 0.0
  %2267 = vmatprep.subr.mxu0 0.0
  %2268 = vmatpush1.msra.mxu0 0.0
  %2269 = vmatprep.subr.mxu0 0.0
  %2270 = vmatpush1.msra.mxu0 0.0
  %2271 = vmatprep.mubr.f32.mxu0 0.0
  %2272 = vmatmul.mubr.f32.gmra.mrb[0].mxu0 %v2046
  %v2273 = vpop.f32.mrb[0].mxu0
  %v2274 = vadd.f32 0.0, %v2273
  %v2275 = vpop.f32.mrb[0].mxu0
  %2276 = vmatprep.mubr.f32.mxu0 0.0
  %2277 = vmatmul.mubr.f32.gmra.mrb[0].mxu0 %v2049
  %v2278 = vpop.f32.mrb[0].mxu0
  %v2279 = vadd.f32 0.0, %v2278
  %v2280 = vpop.f32.mrb[0].mxu0
  %2281 = vmatprep.mubr.f32.mxu0 0.0
  %2282 = vmatmul.mubr.f32.gmra.mrb[0].mxu0 %v2052
  %v2283 = vpop.f32.mrb[0].mxu0
  %v2284 = vadd.f32 0.0, %v2283
  %v2285 = vpop.f32.mrb[0].mxu0
  %2286 = vmatprep.mubr.f32.mxu0 0.0
  %2287 = vmatmul.mubr.f32.gmra.mrb[0].mxu0 %v2055
  %v2288 = vpop.f32.mrb[0].mxu0
  %v2289 = vadd.f32 0.0, %v2288
  %v2290 = vpop.f32.mrb[0].mxu0
  %2291 = vmatprep.mubr.f32.mxu0 0.0
  %2292 = vmatmul.mubr.f32.gmra.mrb[0].mxu0 %v2058
  %v2293 = vpop.f32.mrb[0].mxu0
  %v2294 = vadd.f32 0.0, %v2293
  %v2295 = vpop.f32.mrb[0].mxu0
  %2296 = vmatprep.mubr.f32.mxu0 0.0
  %2297 = vmatmul.mubr.f32.gmra.mrb[0].mxu0 %v2061
  %v2298 = vpop.f32.mrb[0].mxu0
  %v2299 = vadd.f32 0.0, %v2298
  %v2300 = vpop.f32.mrb[0].mxu0
  %2301 = vmatprep.mubr.f32.mxu0 0.0
  %2302 = vmatmul.mubr.f32.gmra.mrb[0].mxu0 %v2064
  %v2303 = vpop.f32.mrb[0].mxu0
  %v2304 = vadd.f32 0.0, %v2303
  %v2305 = vpop.f32.mrb[0].mxu0
  %2306 = vmatprep.mubr.f32.mxu0 0.0
  %2307 = vmatmul.mubr.f32.gmra.mrb[0].mxu0 %v2067
  %v2308 = vpop.f32.mrb[0].mxu0
  %v2309 = vadd.f32 0.0, %v2308
  %v2310 = vpop.f32.mrb[0].mxu0
  %2311 = vmatprep.mubr.f32.mxu0 0.0
  %2312 = vmatmul.mubr.f32.gmra.mrb[0].mxu0 %v2070
  %v2313 = vpop.f32.mrb[0].mxu0
  %v2314 = vadd.f32 0.0, %v2313
  %v2315 = vpop.f32.mrb[0].mxu0
  %2316 = vmatprep.mubr.f32.mxu0 0.0
  %2317 = vmatmul.mubr.f32.gmra.mrb[0].mxu0 %v2073
  %v2318 = vpop.f32.mrb[0].mxu0
  %v2319 = vadd.f32 0.0, %v2318
  %v2320 = vpop.f32.mrb[0].mxu0
  %2321 = vmatprep.mubr.f32.mxu0 0.0
  %2322 = vmatmul.mubr.f32.gmra.mrb[0].mxu0 %v2076
  %v2323 = vpop.f32.mrb[0].mxu0
  %v2324 = vadd.f32 0.0, %v2323
  %v2325 = vpop.f32.mrb[0].mxu0
  %2326 = vmatprep.mubr.f32.mxu0 0.0
  %2327 = vmatmul.mubr.f32.gmra.mrb[0].mxu0 %v2079
  %v2328 = vpop.f32.mrb[0].mxu0
  %v2329 = vadd.f32 0.0, %v2328
  %v2330 = vpop.f32.mrb[0].mxu0
  %2331 = vmatprep.mubr.f32.mxu0 0.0
  %2332 = vmatmul.mubr.f32.gmra.mrb[0].mxu0 %v2082
  %v2333 = vpop.f32.mrb[0].mxu0
  %v2334 = vadd.f32 0.0, %v2333
  %v2335 = vpop.f32.mrb[0].mxu0
  %2336 = vmatprep.mubr.f32.mxu0 0.0
  %2337 = vmatmul.mubr.f32.gmra.mrb[0].mxu0 %v2085
  %v2338 = vpop.f32.mrb[0].mxu0
  %v2339 = vadd.f32 0.0, %v2338
  %v2340 = vpop.f32.mrb[0].mxu0
  %2341 = vmatprep.mubr.f32.mxu0 0.0
  %2342 = vmatmul.mubr.f32.gmra.mrb[0].mxu0 %v2088
  %v2343 = vpop.f32.mrb[0].mxu0
  %v2344 = vadd.f32 0.0, %v2343
  %v2345 = vpop.f32.mrb[0].mxu0
  %2346 = vmatprep.mubr.f32.mxu0 0.0
  %2347 = vmatmul.mubr.f32.gmra.mrb[0].mxu0 %v2091
  %v2348 = vpop.f32.mrb[0].mxu0
  %v2349 = vadd.f32 0.0, %v2348
  %v2350 = vpop.f32.mrb[0].mxu0
  %2351 = vmatprep.mubr.f32.mxu0 0.0
  %2352 = vmatmul.mubr.f32.gmra.mrb[0].mxu0 %v2094
  %v2353 = vpop.f32.mrb[0].mxu0
  %v2354 = vadd.f32 0.0, %v2353
  %v2355 = vpop.f32.mrb[0].mxu0
  %2356 = vmatprep.mubr.f32.mxu0 0.0
  %2357 = vmatmul.mubr.f32.gmra.mrb[0].mxu0 %v2097
  %v2358 = vpop.f32.mrb[0].mxu0
  %v2359 = vadd.f32 0.0, %v2358
  %v2360 = vpop.f32.mrb[0].mxu0
  %2361 = vmatprep.mubr.f32.mxu0 0.0
  %2362 = vmatmul.mubr.f32.gmra.mrb[0].mxu0 %v2100
  %v2363 = vpop.f32.mrb[0].mxu0
  %v2364 = vadd.f32 0.0, %v2363
  %v2365 = vpop.f32.mrb[0].mxu0
  %2366 = vmatprep.mubr.f32.mxu0 0.0
  %2367 = vmatmul.mubr.f32.gmra.mrb[0].mxu0 %v2103
  %v2368 = vpop.f32.mrb[0].mxu0
  %v2369 = vadd.f32 0.0, %v2368
  %v2370 = vpop.f32.mrb[0].mxu0
  %2371 = vmatprep.mubr.f32.mxu0 0.0
  %2372 = vmatmul.mubr.f32.gmra.mrb[0].mxu0 %v2106
  %v2373 = vpop.f32.mrb[0].mxu0
  %v2374 = vadd.f32 0.0, %v2373
  %v2375 = vpop.f32.mrb[0].mxu0
  %2376 = vmatprep.mubr.f32.mxu0 0.0
  %2377 = vmatmul.mubr.f32.gmra.mrb[0].mxu0 %v2109
  %v2378 = vpop.f32.mrb[0].mxu0
  %v2379 = vadd.f32 0.0, %v2378
  %v2380 = vpop.f32.mrb[0].mxu0
  %2381 = vmatprep.mubr.f32.mxu0 0.0
  %2382 = vmatmul.mubr.f32.gmra.mrb[0].mxu0 %v2112
  %v2383 = vpop.f32.mrb[0].mxu0
  %v2384 = vadd.f32 0.0, %v2383
  %v2385 = vpop.f32.mrb[0].mxu0
  %2386 = vmatprep.mubr.f32.mxu0 0.0
  %2387 = vmatmul.mubr.f32.gmra.mrb[0].mxu0 %v2115
  %v2388 = vpop.f32.mrb[0].mxu0
  %v2389 = vadd.f32 0.0, %v2388
  %v2390 = vpop.f32.mrb[0].mxu0
  %2391 = vmatprep.mubr.f32.mxu0 0.0
  %2392 = vmatmul.mubr.f32.gmra.mrb[0].mxu0 %v2118
  %v2393 = vpop.f32.mrb[0].mxu0
  %v2394 = vadd.f32 0.0, %v2393
  %v2395 = vpop.f32.mrb[0].mxu0
  %2396 = vmatprep.mubr.f32.mxu0 0.0
  %2397 = vmatmul.mubr.f32.gmra.mrb[0].mxu0 %v2121
  %v2398 = vpop.f32.mrb[0].mxu0
  %v2399 = vadd.f32 0.0, %v2398
  %v2400 = vpop.f32.mrb[0].mxu0
  %2401 = vmatprep.mubr.f32.mxu0 0.0
  %2402 = vmatmul.mubr.f32.gmra.mrb[0].mxu0 %v2124
  %v2403 = vpop.f32.mrb[0].mxu0
  %v2404 = vadd.f32 0.0, %v2403
  %v2405 = vpop.f32.mrb[0].mxu0
  %2406 = vmatprep.mubr.f32.mxu0 0.0
  %2407 = vmatmul.mubr.f32.gmra.mrb[0].mxu0 %v2127
  %v2408 = vpop.f32.mrb[0].mxu0
  %v2409 = vadd.f32 0.0, %v2408
  %v2410 = vpop.f32.mrb[0].mxu0
  %2411 = vmatprep.mubr.f32.mxu0 0.0
  %2412 = vmatmul.mubr.f32.gmra.mrb[0].mxu0 %v2130
  %v2413 = vpop.f32.mrb[0].mxu0
  %v2414 = vadd.f32 0.0, %v2413
  %v2415 = vpop.f32.mrb[0].mxu0
  %2416 = vmatprep.mubr.f32.mxu0 0.0
  %2417 = vmatmul.mubr.f32.gmra.mrb[0].mxu0 %v2133
  %v2418 = vpop.f32.mrb[0].mxu0
  %v2419 = vadd.f32 0.0, %v2418
  %v2420 = vpop.f32.mrb[0].mxu0
  %2421 = vmatprep.mubr.f32.mxu0 0.0
  %2422 = vmatmul.mubr.f32.gmra.mrb[0].mxu0 %v2136
  %v2423 = vpop.f32.mrb[0].mxu0
  %v2424 = vadd.f32 0.0, %v2423
  %v2425 = vpop.f32.mrb[0].mxu0
  %2426 = vmatprep.mubr.f32.mxu0 0.0
  %2427 = vmatmul.mubr.f32.gmra.mrb[0].mxu0 %v2139
  %v2428 = vpop.f32.mrb[0].mxu0
  %v2429 = vadd.f32 0.0, %v2428
  %v2430 = vpop.f32.mrb[0].mxu0
  %2431 = vmatprep.mubr.f32.mxu0 0.0
  %2432 = vmatmul.mubr.f32.gmra.mrb[0].mxu0 %v2142
  %v2433 = vpop.f32.mrb[0].mxu0
  %v2434 = vadd.f32 0.0, %v2433
  %v2435 = vpop.f32.mrb[0].mxu0
  %2436 = vmatprep.mubr.f32.mxu0 0.0
  %2437 = vmatmul.mubr.f32.gmra.mrb[0].mxu0 %v2145
  %v2438 = vpop.f32.mrb[0].mxu0
  %v2439 = vadd.f32 0.0, %v2438
  %v2440 = vpop.f32.mrb[0].mxu0
  %2441 = vmatprep.mubr.f32.mxu0 0.0
  %2442 = vmatmul.mubr.f32.gmra.mrb[0].mxu0 %v2148
  %v2443 = vpop.f32.mrb[0].mxu0
  %v2444 = vadd.f32 0.0, %v2443
  %v2445 = vpop.f32.mrb[0].mxu0
  %2446 = vmatprep.mubr.f32.mxu0 0.0
  %2447 = vmatmul.mubr.f32.gmra.mrb[0].mxu0 %v2151
  %v2448 = vpop.f32.mrb[0].mxu0
  %v2449 = vadd.f32 0.0, %v2448
  %v2450 = vpop.f32.mrb[0].mxu0
  %2451 = vmatprep.mubr.f32.mxu0 0.0
  %2452 = vmatmul.mubr.f32.gmra.mrb[0].mxu0 %v2154
  %v2453 = vpop.f32.mrb[0].mxu0
  %v2454 = vadd.f32 0.0, %v2453
  %v2455 = vpop.f32.mrb[0].mxu0
  %2456 = vmatprep.mubr.f32.mxu0 0.0
  %2457 = vmatmul.mubr.f32.gmra.mrb[0].mxu0 %v2157
  %v2458 = vpop.f32.mrb[0].mxu0
  %v2459 = vadd.f32 0.0, %v2458
  %v2460 = vpop.f32.mrb[0].mxu0
  %2461 = vmatprep.mubr.f32.mxu0 0.0
  %2462 = vmatmul.mubr.f32.gmra.mrb[0].mxu0 %v2160
  %v2463 = vpop.f32.mrb[0].mxu0
  %v2464 = vadd.f32 0.0, %v2463
  %v2465 = vpop.f32.mrb[0].mxu0
  %2466 = vmatprep.mubr.f32.mxu0 0.0
  %2467 = vmatmul.mubr.f32.gmra.mrb[0].mxu0 %v2163
  %v2468 = vpop.f32.mrb[0].mxu0
  %v2469 = vadd.f32 0.0, %v2468
  %v2470 = vpop.f32.mrb[0].mxu0
  %2471 = vmatprep.mubr.f32.mxu0 0.0
  %2472 = vmatmul.mubr.f32.gmra.mrb[0].mxu0 %v2166
  %v2473 = vpop.f32.mrb[0].mxu0
  %v2474 = vadd.f32 0.0, %v2473
  %v2475 = vpop.f32.mrb[0].mxu0
  %2476 = vmatprep.mubr.f32.mxu0 0.0
  %2477 = vmatmul.mubr.f32.gmra.mrb[0].mxu0 %v2169
  %v2478 = vpop.f32.mrb[0].mxu0
  %v2479 = vadd.f32 0.0, %v2478
  %v2480 = vpop.f32.mrb[0].mxu0
  %2481 = vmatprep.mubr.f32.mxu0 0.0
  %2482 = vmatmul.mubr.f32.gmra.mrb[0].mxu0 %v2172
  %v2483 = vpop.f32.mrb[0].mxu0
  %v2484 = vadd.f32 0.0, %v2483
  %v2485 = vpop.f32.mrb[0].mxu0
  %2486 = vmatprep.mubr.f32.mxu0 0.0
  %2487 = vmatmul.mubr.f32.gmra.mrb[0].mxu0 %v2175
  %v2488 = vpop.f32.mrb[0].mxu0
  %v2489 = vadd.f32 0.0, %v2488
  %v2490 = vpop.f32.mrb[0].mxu0
  %2491 = vmatprep.mubr.f32.mxu0 0.0
  %2492 = vmatmul.mubr.f32.gmra.mrb[0].mxu0 %v2178
  %v2493 = vpop.f32.mrb[0].mxu0
  %v2494 = vadd.f32 0.0, %v2493
  %v2495 = vpop.f32.mrb[0].mxu0
  %2496 = vmatprep.mubr.f32.mxu0 0.0
  %2497 = vmatmul.mubr.f32.gmra.mrb[0].mxu0 %v2181
  %v2498 = vpop.f32.mrb[0].mxu0
  %v2499 = vadd.f32 0.0, %v2498
  %v2500 = vpop.f32.mrb[0].mxu0
  %2501 = vmatprep.mubr.f32.mxu0 0.0
  %2502 = vmatmul.mubr.f32.gmra.mrb[0].mxu0 %v2184
  %v2503 = vpop.f32.mrb[0].mxu0
  %v2504 = vadd.f32 0.0, %v2503
  %v2505 = vpop.f32.mrb[0].mxu0
  %2506 = vmatprep.mubr.f32.mxu0 0.0
  %2507 = vmatmul.mubr.f32.gmra.mrb[0].mxu0 %v2187
  %v2508 = vpop.f32.mrb[0].mxu0
  %v2509 = vadd.f32 0.0, %v2508
  %v2510 = vpop.f32.mrb[0].mxu0
  %2511 = vmatprep.mubr.f32.mxu0 0.0
  %2512 = vmatmul.mubr.f32.gmra.mrb[0].mxu0 %v2190
  %v2513 = vpop.f32.mrb[0].mxu0
  %v2514 = vadd.f32 0.0, %v2513
  %v2515 = vpop.f32.mrb[0].mxu0
  %2516 = vmatprep.mubr.f32.mxu0 0.0
  %2517 = vmatmul.mubr.f32.gmra.mrb[0].mxu0 %v2193
  %v2518 = vpop.f32.mrb[0].mxu0
  %v2519 = vadd.f32 0.0, %v2518
  %v2520 = vpop.f32.mrb[0].mxu0
  %2521 = vmatprep.mubr.f32.mxu0 0.0
  %2522 = vmatmul.mubr.f32.gmra.mrb[0].mxu0 %v2196
  %v2523 = vpop.f32.mrb[0].mxu0
  %v2524 = vadd.f32 0.0, %v2523
  %v2525 = vpop.f32.mrb[0].mxu0
  %2526 = vmatprep.mubr.f32.mxu0 0.0
  %2527 = vmatmul.mubr.f32.gmra.mrb[0].mxu0 %v2199
  %v2528 = vpop.f32.mrb[0].mxu0
  %v2529 = vadd.f32 0.0, %v2528
  %v2530 = vpop.f32.mrb[0].mxu0
  %2531 = vmatprep.mubr.f32.mxu0 0.0
  %2532 = vmatmul.mubr.f32.gmra.mrb[0].mxu0 %v2202
  %v2533 = vpop.f32.mrb[0].mxu0
  %v2534 = vadd.f32 0.0, %v2533
  %v2535 = vpop.f32.mrb[0].mxu0
  %2536 = vmatprep.mubr.f32.mxu0 0.0
  %2537 = vmatmul.mubr.f32.gmra.mrb[0].mxu0 %v2205
  %v2538 = vpop.f32.mrb[0].mxu0
  %v2539 = vadd.f32 0.0, %v2538
  %v2540 = vpop.f32.mrb[0].mxu0
  %2541 = vdwg.mxu0
  %v2542 = vld [vmem:[%s9] sm:$0xff]
  %v2543 = vld [vmem:[%s9 + $0x8] sm:$0xff]
  %v2544 = vld [vmem:[%s9 + $0x10] sm:$0xff]
  %v2545 = vld [vmem:[%s9 + $0x18] sm:$0xff]
  %s2546 = scalar_lea.vmem %s9, 32
  %v2547 = vld [vmem:[%s2546] sm:$0xff]
  %v2548 = vld [vmem:[%s2546 + $0x8] sm:$0xff]
  %v2549 = vld [vmem:[%s2546 + $0x10] sm:$0xff]
  %v2550 = vld [vmem:[%s2546 + $0x18] sm:$0xff]
  %v2552 = vsel %vm1562, %v2304, 0
  %v2555 = vsel %vm1562, %v2309, 0
  %v2558 = vsel %vm1562, %v2314, 0
  %v2561 = vsel %vm1562, %v2319, 0
  %v2564 = vsel %vm1562, %v2324, 0
  %v2567 = vsel %vm1562, %v2329, 0
  %2569 = vmatprep.subr.mxu0 0.0
  %2570 = vmatpush1.msra.mxu0 %v2547
  %2571 = vmatprep.subr.mxu0 0.0
  %2572 = vmatpush1.msra.mxu0 %v2548
  %2573 = vmatprep.subr.mxu0 0.0
  %2574 = vmatpush1.msra.mxu0 %v2549
  %2575 = vmatprep.subr.mxu0 0.0
  %2576 = vmatpush1.msra.mxu0 %v2550
  %2577 = vmatprep.subr.mxu0 0.0
  %2578 = vmatpush1.msra.mxu0 0.0
  %2579 = vmatprep.subr.mxu0 0.0
  %2580 = vmatpush1.msra.mxu0 0.0
  %2581 = vmatprep.subr.mxu0 0.0
  %2582 = vmatpush1.msra.mxu0 0.0
  %2583 = vmatprep.subr.mxu0 0.0
  %2584 = vmatpush1.msra.mxu0 0.0
  %2585 = vmatprep.subr.mxu0 0.0
  %2586 = vmatpush1.msra.mxu0 0.0
  %2587 = vmatprep.subr.mxu0 0.0
  %2588 = vmatpush1.msra.mxu0 0.0
  %2589 = vmatprep.subr.mxu0 0.0
  %2590 = vmatpush1.msra.mxu0 0.0
  %2591 = vmatprep.subr.mxu0 0.0
  %2592 = vmatpush1.msra.mxu0 0.0
  %2593 = vmatprep.subr.mxu0 0.0
  %2594 = vmatpush1.msra.mxu0 0.0
  %2595 = vmatprep.subr.mxu0 0.0
  %2596 = vmatpush1.msra.mxu0 0.0
  %2597 = vmatprep.subr.mxu0 0.0
  %2598 = vmatpush1.msra.mxu0 0.0
  %2599 = vmatprep.subr.mxu0 0.0
  %2600 = vmatpush1.msra.mxu0 0.0
  %2601 = vmatprep.subr.mxu0 0.0
  %2602 = vmatpush1.msra.mxu0 0.0
  %2603 = vmatprep.subr.mxu0 0.0
  %2604 = vmatpush1.msra.mxu0 0.0
  %2605 = vmatprep.subr.mxu0 0.0
  %2606 = vmatpush1.msra.mxu0 0.0
  %2607 = vmatprep.subr.mxu0 0.0
  %2608 = vmatpush1.msra.mxu0 0.0
  %2609 = vmatprep.subr.mxu0 0.0
  %2610 = vmatpush1.msra.mxu0 0.0
  %2611 = vmatprep.subr.mxu0 0.0
  %2612 = vmatpush1.msra.mxu0 0.0
  %2613 = vmatprep.subr.mxu0 0.0
  %2614 = vmatpush1.msra.mxu0 0.0
  %2615 = vmatprep.subr.mxu0 0.0
  %2616 = vmatpush1.msra.mxu0 0.0
  %2617 = vmatprep.subr.mxu0 0.0
  %2618 = vmatpush1.msra.mxu0 0.0
  %2619 = vmatprep.subr.mxu0 0.0
  %2620 = vmatpush1.msra.mxu0 0.0
  %2621 = vmatprep.subr.mxu0 0.0
  %2622 = vmatpush1.msra.mxu0 0.0
  %2623 = vmatprep.subr.mxu0 0.0
  %2624 = vmatpush1.msra.mxu0 0.0
  %2625 = vmatprep.subr.mxu0 0.0
  %2626 = vmatpush1.msra.mxu0 0.0
  %2627 = vmatprep.subr.mxu0 0.0
  %2628 = vmatpush1.msra.mxu0 0.0
  %2629 = vmatprep.subr.mxu0 0.0
  %2630 = vmatpush1.msra.mxu0 0.0
  %2631 = vmatprep.subr.mxu0 0.0
  %2632 = vmatpush1.msra.mxu0 0.0
  %2633 = vmatprep.mubr.f32.mxu0 0.0
  %2634 = vmatmul.mubr.f32.gmra.mrb[0].mxu0 %v2552
  %v2635 = vpop.f32.mrb[0].mxu0
  %v2636 = vadd.f32 0.0, %v2635
  %v2637 = vpop.f32.mrb[0].mxu0
  %2638 = vmatprep.mubr.f32.mxu0 0.0
  %2639 = vmatmul.mubr.f32.gmra.mrb[0].mxu0 %v2555
  %v2640 = vpop.f32.mrb[0].mxu0
  %v2641 = vadd.f32 0.0, %v2640
  %v2642 = vpop.f32.mrb[0].mxu0
  %2643 = vmatprep.mubr.f32.mxu0 0.0
  %2644 = vmatmul.mubr.f32.gmra.mrb[0].mxu0 %v2558
  %v2645 = vpop.f32.mrb[0].mxu0
  %v2646 = vadd.f32 0.0, %v2645
  %v2647 = vpop.f32.mrb[0].mxu0
  %2648 = vmatprep.mubr.f32.mxu0 0.0
  %2649 = vmatmul.mubr.f32.gmra.mrb[0].mxu0 %v2561
  %v2650 = vpop.f32.mrb[0].mxu0
  %v2651 = vadd.f32 0.0, %v2650
  %v2652 = vpop.f32.mrb[0].mxu0
  %2653 = vmatprep.mubr.f32.mxu0 0.0
  %2654 = vmatmul.mubr.f32.gmra.mrb[0].mxu0 %v2564
  %v2655 = vpop.f32.mrb[0].mxu0
  %v2656 = vadd.f32 0.0, %v2655
  %v2657 = vpop.f32.mrb[0].mxu0
  %2658 = vmatprep.mubr.f32.mxu0 0.0
  %2659 = vmatmul.mubr.f32.gmra.mrb[0].mxu0 %v2567
  %v2660 = vpop.f32.mrb[0].mxu0
  %v2661 = vadd.f32 0.0, %v2660
  %v2662 = vpop.f32.mrb[0].mxu0
  %2663 = vdwg.mxu0
  %v2665 = vsel %vm1562, %v2274, 0
  %v2668 = vsel %vm1562, %v2279, 0
  %v2671 = vsel %vm1562, %v2284, 0
  %v2674 = vsel %vm1562, %v2289, 0
  %v2677 = vsel %vm1562, %v2294, 0
  %v2680 = vsel %vm1562, %v2299, 0
  %2682 = vmatprep.subr.mxu0 0.0
  %2683 = vmatpush1.msra.mxu0 %v2542
  %2684 = vmatprep.subr.mxu0 0.0
  %2685 = vmatpush1.msra.mxu0 %v2543
  %2686 = vmatprep.subr.mxu0 0.0
  %2687 = vmatpush1.msra.mxu0 %v2544
  %2688 = vmatprep.subr.mxu0 0.0
  %2689 = vmatpush1.msra.mxu0 %v2545
  %2690 = vmatprep.subr.mxu0 0.0
  %2691 = vmatpush1.msra.mxu0 0.0
  %2692 = vmatprep.subr.mxu0 0.0
  %2693 = vmatpush1.msra.mxu0 0.0
  %2694 = vmatprep.subr.mxu0 0.0
  %2695 = vmatpush1.msra.mxu0 0.0
  %2696 = vmatprep.subr.mxu0 0.0
  %2697 = vmatpush1.msra.mxu0 0.0
  %2698 = vmatprep.subr.mxu0 0.0
  %2699 = vmatpush1.msra.mxu0 0.0
  %2700 = vmatprep.subr.mxu0 0.0
  %2701 = vmatpush1.msra.mxu0 0.0
  %2702 = vmatprep.subr.mxu0 0.0
  %2703 = vmatpush1.msra.mxu0 0.0
  %2704 = vmatprep.subr.mxu0 0.0
  %2705 = vmatpush1.msra.mxu0 0.0
  %2706 = vmatprep.subr.mxu0 0.0
  %2707 = vmatpush1.msra.mxu0 0.0
  %2708 = vmatprep.subr.mxu0 0.0
  %2709 = vmatpush1.msra.mxu0 0.0
  %2710 = vmatprep.subr.mxu0 0.0
  %2711 = vmatpush1.msra.mxu0 0.0
  %2712 = vmatprep.subr.mxu0 0.0
  %2713 = vmatpush1.msra.mxu0 0.0
  %2714 = vmatprep.subr.mxu0 0.0
  %2715 = vmatpush1.msra.mxu0 0.0
  %2716 = vmatprep.subr.mxu0 0.0
  %2717 = vmatpush1.msra.mxu0 0.0
  %2718 = vmatprep.subr.mxu0 0.0
  %2719 = vmatpush1.msra.mxu0 0.0
  %2720 = vmatprep.subr.mxu0 0.0
  %2721 = vmatpush1.msra.mxu0 0.0
  %2722 = vmatprep.subr.mxu0 0.0
  %2723 = vmatpush1.msra.mxu0 0.0
  %2724 = vmatprep.subr.mxu0 0.0
  %2725 = vmatpush1.msra.mxu0 0.0
  %2726 = vmatprep.subr.mxu0 0.0
  %2727 = vmatpush1.msra.mxu0 0.0
  %2728 = vmatprep.subr.mxu0 0.0
  %2729 = vmatpush1.msra.mxu0 0.0
  %2730 = vmatprep.subr.mxu0 0.0
  %2731 = vmatpush1.msra.mxu0 0.0
  %2732 = vmatprep.subr.mxu0 0.0
  %2733 = vmatpush1.msra.mxu0 0.0
  %2734 = vmatprep.subr.mxu0 0.0
  %2735 = vmatpush1.msra.mxu0 0.0
  %2736 = vmatprep.subr.mxu0 0.0
  %2737 = vmatpush1.msra.mxu0 0.0
  %2738 = vmatprep.subr.mxu0 0.0
  %2739 = vmatpush1.msra.mxu0 0.0
  %2740 = vmatprep.subr.mxu0 0.0
  %2741 = vmatpush1.msra.mxu0 0.0
  %2742 = vmatprep.subr.mxu0 0.0
  %2743 = vmatpush1.msra.mxu0 0.0
  %2744 = vmatprep.subr.mxu0 0.0
  %2745 = vmatpush1.msra.mxu0 0.0
  %2746 = vmatprep.mubr.f32.mxu0 0.0
  %2747 = vmatmul.mubr.f32.gmra.mrb[0].mxu0 %v2665
  %v2748 = vpop.f32.mrb[0].mxu0
  %v2749 = vadd.f32 %v2636, %v2748
  %v2750 = vpop.f32.mrb[0].mxu0
  %2751 = vmatprep.mubr.f32.mxu0 0.0
  %2752 = vmatmul.mubr.f32.gmra.mrb[0].mxu0 %v2668
  %v2753 = vpop.f32.mrb[0].mxu0
  %v2754 = vadd.f32 %v2641, %v2753
  %v2755 = vpop.f32.mrb[0].mxu0
  %2756 = vmatprep.mubr.f32.mxu0 0.0
  %2757 = vmatmul.mubr.f32.gmra.mrb[0].mxu0 %v2671
  %v2758 = vpop.f32.mrb[0].mxu0
  %v2759 = vadd.f32 %v2646, %v2758
  %v2760 = vpop.f32.mrb[0].mxu0
  %2761 = vmatprep.mubr.f32.mxu0 0.0
  %2762 = vmatmul.mubr.f32.gmra.mrb[0].mxu0 %v2674
  %v2763 = vpop.f32.mrb[0].mxu0
  %v2764 = vadd.f32 %v2651, %v2763
  %v2765 = vpop.f32.mrb[0].mxu0
  %2766 = vmatprep.mubr.f32.mxu0 0.0
  %2767 = vmatmul.mubr.f32.gmra.mrb[0].mxu0 %v2677
  %v2768 = vpop.f32.mrb[0].mxu0
  %v2769 = vadd.f32 %v2656, %v2768
  %v2770 = vpop.f32.mrb[0].mxu0
  %2771 = vmatprep.mubr.f32.mxu0 0.0
  %2772 = vmatmul.mubr.f32.gmra.mrb[0].mxu0 %v2680
  %v2773 = vpop.f32.mrb[0].mxu0
  %v2774 = vadd.f32 %v2661, %v2773
  %v2775 = vpop.f32.mrb[0].mxu0
  %2776 = vdwg.mxu0
  %s2777 = scalar_lea.vmem %s9, 64
  %v2778 = vld [vmem:[%s2777] sm:$0xff]
  %v2779 = vld [vmem:[%s2777 + $0x8] sm:$0xff]
  %v2780 = vld [vmem:[%s2777 + $0x10] sm:$0xff]
  %v2781 = vld [vmem:[%s2777 + $0x18] sm:$0xff]
  %v2783 = vsel %vm1562, %v2334, 0
  %v2786 = vsel %vm1562, %v2339, 0
  %v2789 = vsel %vm1562, %v2344, 0
  %v2792 = vsel %vm1562, %v2349, 0
  %v2795 = vsel %vm1562, %v2354, 0
  %v2798 = vsel %vm1562, %v2359, 0
  %2800 = vmatprep.subr.mxu0 0.0
  %2801 = vmatpush1.msra.mxu0 %v2778
  %2802 = vmatprep.subr.mxu0 0.0
  %2803 = vmatpush1.msra.mxu0 %v2779
  %2804 = vmatprep.subr.mxu0 0.0
  %2805 = vmatpush1.msra.mxu0 %v2780
  %2806 = vmatprep.subr.mxu0 0.0
  %2807 = vmatpush1.msra.mxu0 %v2781
  %2808 = vmatprep.subr.mxu0 0.0
  %2809 = vmatpush1.msra.mxu0 0.0
  %2810 = vmatprep.subr.mxu0 0.0
  %2811 = vmatpush1.msra.mxu0 0.0
  %2812 = vmatprep.subr.mxu0 0.0
  %2813 = vmatpush1.msra.mxu0 0.0
  %2814 = vmatprep.subr.mxu0 0.0
  %2815 = vmatpush1.msra.mxu0 0.0
  %2816 = vmatprep.subr.mxu0 0.0
  %2817 = vmatpush1.msra.mxu0 0.0
  %2818 = vmatprep.subr.mxu0 0.0
  %2819 = vmatpush1.msra.mxu0 0.0
  %2820 = vmatprep.subr.mxu0 0.0
  %2821 = vmatpush1.msra.mxu0 0.0
  %2822 = vmatprep.subr.mxu0 0.0
  %2823 = vmatpush1.msra.mxu0 0.0
  %2824 = vmatprep.subr.mxu0 0.0
  %2825 = vmatpush1.msra.mxu0 0.0
  %2826 = vmatprep.subr.mxu0 0.0
  %2827 = vmatpush1.msra.mxu0 0.0
  %2828 = vmatprep.subr.mxu0 0.0
  %2829 = vmatpush1.msra.mxu0 0.0
  %2830 = vmatprep.subr.mxu0 0.0
  %2831 = vmatpush1.msra.mxu0 0.0
  %2832 = vmatprep.subr.mxu0 0.0
  %2833 = vmatpush1.msra.mxu0 0.0
  %2834 = vmatprep.subr.mxu0 0.0
  %2835 = vmatpush1.msra.mxu0 0.0
  %2836 = vmatprep.subr.mxu0 0.0
  %2837 = vmatpush1.msra.mxu0 0.0
  %2838 = vmatprep.subr.mxu0 0.0
  %2839 = vmatpush1.msra.mxu0 0.0
  %2840 = vmatprep.subr.mxu0 0.0
  %2841 = vmatpush1.msra.mxu0 0.0
  %2842 = vmatprep.subr.mxu0 0.0
  %2843 = vmatpush1.msra.mxu0 0.0
  %2844 = vmatprep.subr.mxu0 0.0
  %2845 = vmatpush1.msra.mxu0 0.0
  %2846 = vmatprep.subr.mxu0 0.0
  %2847 = vmatpush1.msra.mxu0 0.0
  %2848 = vmatprep.subr.mxu0 0.0
  %2849 = vmatpush1.msra.mxu0 0.0
  %2850 = vmatprep.subr.mxu0 0.0
  %2851 = vmatpush1.msra.mxu0 0.0
  %2852 = vmatprep.subr.mxu0 0.0
  %2853 = vmatpush1.msra.mxu0 0.0
  %2854 = vmatprep.subr.mxu0 0.0
  %2855 = vmatpush1.msra.mxu0 0.0
  %2856 = vmatprep.subr.mxu0 0.0
  %2857 = vmatpush1.msra.mxu0 0.0
  %2858 = vmatprep.subr.mxu0 0.0
  %2859 = vmatpush1.msra.mxu0 0.0
  %2860 = vmatprep.subr.mxu0 0.0
  %2861 = vmatpush1.msra.mxu0 0.0
  %2862 = vmatprep.subr.mxu0 0.0
  %2863 = vmatpush1.msra.mxu0 0.0
  %2864 = vmatprep.mubr.f32.mxu0 0.0
  %2865 = vmatmul.mubr.f32.gmra.mrb[0].mxu0 %v2783
  %v2866 = vpop.f32.mrb[0].mxu0
  %v2867 = vadd.f32 0.0, %v2866
  %v2868 = vpop.f32.mrb[0].mxu0
  %2869 = vmatprep.mubr.f32.mxu0 0.0
  %2870 = vmatmul.mubr.f32.gmra.mrb[0].mxu0 %v2786
  %v2871 = vpop.f32.mrb[0].mxu0
  %v2872 = vadd.f32 0.0, %v2871
  %v2873 = vpop.f32.mrb[0].mxu0
  %2874 = vmatprep.mubr.f32.mxu0 0.0
  %2875 = vmatmul.mubr.f32.gmra.mrb[0].mxu0 %v2789
  %v2876 = vpop.f32.mrb[0].mxu0
  %v2877 = vadd.f32 0.0, %v2876
  %v2878 = vpop.f32.mrb[0].mxu0
  %2879 = vmatprep.mubr.f32.mxu0 0.0
  %2880 = vmatmul.mubr.f32.gmra.mrb[0].mxu0 %v2792
  %v2881 = vpop.f32.mrb[0].mxu0
  %v2882 = vadd.f32 0.0, %v2881
  %v2883 = vpop.f32.mrb[0].mxu0
  %2884 = vmatprep.mubr.f32.mxu0 0.0
  %2885 = vmatmul.mubr.f32.gmra.mrb[0].mxu0 %v2795
  %v2886 = vpop.f32.mrb[0].mxu0
  %v2887 = vadd.f32 0.0, %v2886
  %v2888 = vpop.f32.mrb[0].mxu0
  %2889 = vmatprep.mubr.f32.mxu0 0.0
  %2890 = vmatmul.mubr.f32.gmra.mrb[0].mxu0 %v2798
  %v2891 = vpop.f32.mrb[0].mxu0
  %v2892 = vadd.f32 0.0, %v2891
  %v2893 = vpop.f32.mrb[0].mxu0
  %2894 = vdwg.mxu0
  %v2895 = vadd.f32 %v2749, %v2867
  %v2896 = vadd.f32 %v2754, %v2872
  %v2897 = vadd.f32 %v2759, %v2877
  %v2898 = vadd.f32 %v2764, %v2882
  %v2899 = vadd.f32 %v2769, %v2887
  %v2900 = vadd.f32 %v2774, %v2892
  %s2901 = scalar_lea.vmem %s9, 96
  %v2902 = vld [vmem:[%s2901] sm:$0xff]
  %v2903 = vld [vmem:[%s2901 + $0x8] sm:$0xff]
  %v2904 = vld [vmem:[%s2901 + $0x10] sm:$0xff]
  %v2905 = vld [vmem:[%s2901 + $0x18] sm:$0xff]
  %v2907 = vsel %vm1562, %v2364, 0
  %v2910 = vsel %vm1562, %v2369, 0
  %v2913 = vsel %vm1562, %v2374, 0
  %v2916 = vsel %vm1562, %v2379, 0
  %v2919 = vsel %vm1562, %v2384, 0
  %v2922 = vsel %vm1562, %v2389, 0
  %2924 = vmatprep.subr.mxu0 0.0
  %2925 = vmatpush1.msra.mxu0 %v2902
  %2926 = vmatprep.subr.mxu0 0.0
  %2927 = vmatpush1.msra.mxu0 %v2903
  %2928 = vmatprep.subr.mxu0 0.0
  %2929 = vmatpush1.msra.mxu0 %v2904
  %2930 = vmatprep.subr.mxu0 0.0
  %2931 = vmatpush1.msra.mxu0 %v2905
  %2932 = vmatprep.subr.mxu0 0.0
  %2933 = vmatpush1.msra.mxu0 0.0
  %2934 = vmatprep.subr.mxu0 0.0
  %2935 = vmatpush1.msra.mxu0 0.0
  %2936 = vmatprep.subr.mxu0 0.0
  %2937 = vmatpush1.msra.mxu0 0.0
  %2938 = vmatprep.subr.mxu0 0.0
  %2939 = vmatpush1.msra.mxu0 0.0
  %2940 = vmatprep.subr.mxu0 0.0
  %2941 = vmatpush1.msra.mxu0 0.0
  %2942 = vmatprep.subr.mxu0 0.0
  %2943 = vmatpush1.msra.mxu0 0.0
  %2944 = vmatprep.subr.mxu0 0.0
  %2945 = vmatpush1.msra.mxu0 0.0
  %2946 = vmatprep.subr.mxu0 0.0
  %2947 = vmatpush1.msra.mxu0 0.0
  %2948 = vmatprep.subr.mxu0 0.0
  %2949 = vmatpush1.msra.mxu0 0.0
  %2950 = vmatprep.subr.mxu0 0.0
  %2951 = vmatpush1.msra.mxu0 0.0
  %2952 = vmatprep.subr.mxu0 0.0
  %2953 = vmatpush1.msra.mxu0 0.0
  %2954 = vmatprep.subr.mxu0 0.0
  %2955 = vmatpush1.msra.mxu0 0.0
  %2956 = vmatprep.subr.mxu0 0.0
  %2957 = vmatpush1.msra.mxu0 0.0
  %2958 = vmatprep.subr.mxu0 0.0
  %2959 = vmatpush1.msra.mxu0 0.0
  %2960 = vmatprep.subr.mxu0 0.0
  %2961 = vmatpush1.msra.mxu0 0.0
  %2962 = vmatprep.subr.mxu0 0.0
  %2963 = vmatpush1.msra.mxu0 0.0
  %2964 = vmatprep.subr.mxu0 0.0
  %2965 = vmatpush1.msra.mxu0 0.0
  %2966 = vmatprep.subr.mxu0 0.0
  %2967 = vmatpush1.msra.mxu0 0.0
  %2968 = vmatprep.subr.mxu0 0.0
  %2969 = vmatpush1.msra.mxu0 0.0
  %2970 = vmatprep.subr.mxu0 0.0
  %2971 = vmatpush1.msra.mxu0 0.0
  %2972 = vmatprep.subr.mxu0 0.0
  %2973 = vmatpush1.msra.mxu0 0.0
  %2974 = vmatprep.subr.mxu0 0.0
  %2975 = vmatpush1.msra.mxu0 0.0
  %2976 = vmatprep.subr.mxu0 0.0
  %2977 = vmatpush1.msra.mxu0 0.0
  %2978 = vmatprep.subr.mxu0 0.0
  %2979 = vmatpush1.msra.mxu0 0.0
  %2980 = vmatprep.subr.mxu0 0.0
  %2981 = vmatpush1.msra.mxu0 0.0
  %2982 = vmatprep.subr.mxu0 0.0
  %2983 = vmatpush1.msra.mxu0 0.0
  %2984 = vmatprep.subr.mxu0 0.0
  %2985 = vmatpush1.msra.mxu0 0.0
  %2986 = vmatprep.subr.mxu0 0.0
  %2987 = vmatpush1.msra.mxu0 0.0
  %2988 = vmatprep.mubr.f32.mxu0 0.0
  %2989 = vmatmul.mubr.f32.gmra.mrb[0].mxu0 %v2907
  %v2990 = vpop.f32.mrb[0].mxu0
  %v2991 = vadd.f32 0.0, %v2990
  %v2992 = vpop.f32.mrb[0].mxu0
  %2993 = vmatprep.mubr.f32.mxu0 0.0
  %2994 = vmatmul.mubr.f32.gmra.mrb[0].mxu0 %v2910
  %v2995 = vpop.f32.mrb[0].mxu0
  %v2996 = vadd.f32 0.0, %v2995
  %v2997 = vpop.f32.mrb[0].mxu0
  %2998 = vmatprep.mubr.f32.mxu0 0.0
  %2999 = vmatmul.mubr.f32.gmra.mrb[0].mxu0 %v2913
  %v3000 = vpop.f32.mrb[0].mxu0
  %v3001 = vadd.f32 0.0, %v3000
  %v3002 = vpop.f32.mrb[0].mxu0
  %3003 = vmatprep.mubr.f32.mxu0 0.0
  %3004 = vmatmul.mubr.f32.gmra.mrb[0].mxu0 %v2916
  %v3005 = vpop.f32.mrb[0].mxu0
  %v3006 = vadd.f32 0.0, %v3005
  %v3007 = vpop.f32.mrb[0].mxu0
  %3008 = vmatprep.mubr.f32.mxu0 0.0
  %3009 = vmatmul.mubr.f32.gmra.mrb[0].mxu0 %v2919
  %v3010 = vpop.f32.mrb[0].mxu0
  %v3011 = vadd.f32 0.0, %v3010
  %v3012 = vpop.f32.mrb[0].mxu0
  %3013 = vmatprep.mubr.f32.mxu0 0.0
  %3014 = vmatmul.mubr.f32.gmra.mrb[0].mxu0 %v2922
  %v3015 = vpop.f32.mrb[0].mxu0
  %v3016 = vadd.f32 0.0, %v3015
  %v3017 = vpop.f32.mrb[0].mxu0
  %3018 = vdwg.mxu0
  %v3019 = vadd.f32 %v2895, %v2991
  %v3020 = vadd.f32 %v2896, %v2996
  %v3021 = vadd.f32 %v2897, %v3001
  %v3022 = vadd.f32 %v2898, %v3006
  %v3023 = vadd.f32 %v2899, %v3011
  %v3024 = vadd.f32 %v2900, %v3016
  %s3025 = scalar_lea.vmem %s9, 128
  %v3026 = vld [vmem:[%s3025] sm:$0xff]
  %v3027 = vld [vmem:[%s3025 + $0x8] sm:$0xff]
  %v3028 = vld [vmem:[%s3025 + $0x10] sm:$0xff]
  %v3029 = vld [vmem:[%s3025 + $0x18] sm:$0xff]
  %v3031 = vsel %vm1562, %v2394, 0
  %v3034 = vsel %vm1562, %v2399, 0
  %v3037 = vsel %vm1562, %v2404, 0
  %v3040 = vsel %vm1562, %v2409, 0
  %v3043 = vsel %vm1562, %v2414, 0
  %v3046 = vsel %vm1562, %v2419, 0
  %3048 = vmatprep.subr.mxu0 0.0
  %3049 = vmatpush1.msra.mxu0 %v3026
  %3050 = vmatprep.subr.mxu0 0.0
  %3051 = vmatpush1.msra.mxu0 %v3027
  %3052 = vmatprep.subr.mxu0 0.0
  %3053 = vmatpush1.msra.mxu0 %v3028
  %3054 = vmatprep.subr.mxu0 0.0
  %3055 = vmatpush1.msra.mxu0 %v3029
  %3056 = vmatprep.subr.mxu0 0.0
  %3057 = vmatpush1.msra.mxu0 0.0
  %3058 = vmatprep.subr.mxu0 0.0
  %3059 = vmatpush1.msra.mxu0 0.0
  %3060 = vmatprep.subr.mxu0 0.0
  %3061 = vmatpush1.msra.mxu0 0.0
  %3062 = vmatprep.subr.mxu0 0.0
  %3063 = vmatpush1.msra.mxu0 0.0
  %3064 = vmatprep.subr.mxu0 0.0
  %3065 = vmatpush1.msra.mxu0 0.0
  %3066 = vmatprep.subr.mxu0 0.0
  %3067 = vmatpush1.msra.mxu0 0.0
  %3068 = vmatprep.subr.mxu0 0.0
  %3069 = vmatpush1.msra.mxu0 0.0
  %3070 = vmatprep.subr.mxu0 0.0
  %3071 = vmatpush1.msra.mxu0 0.0
  %3072 = vmatprep.subr.mxu0 0.0
  %3073 = vmatpush1.msra.mxu0 0.0
  %3074 = vmatprep.subr.mxu0 0.0
  %3075 = vmatpush1.msra.mxu0 0.0
  %3076 = vmatprep.subr.mxu0 0.0
  %3077 = vmatpush1.msra.mxu0 0.0
  %3078 = vmatprep.subr.mxu0 0.0
  %3079 = vmatpush1.msra.mxu0 0.0
  %3080 = vmatprep.subr.mxu0 0.0
  %3081 = vmatpush1.msra.mxu0 0.0
  %3082 = vmatprep.subr.mxu0 0.0
  %3083 = vmatpush1.msra.mxu0 0.0
  %3084 = vmatprep.subr.mxu0 0.0
  %3085 = vmatpush1.msra.mxu0 0.0
  %3086 = vmatprep.subr.mxu0 0.0
  %3087 = vmatpush1.msra.mxu0 0.0
  %3088 = vmatprep.subr.mxu0 0.0
  %3089 = vmatpush1.msra.mxu0 0.0
  %3090 = vmatprep.subr.mxu0 0.0
  %3091 = vmatpush1.msra.mxu0 0.0
  %3092 = vmatprep.subr.mxu0 0.0
  %3093 = vmatpush1.msra.mxu0 0.0
  %3094 = vmatprep.subr.mxu0 0.0
  %3095 = vmatpush1.msra.mxu0 0.0
  %3096 = vmatprep.subr.mxu0 0.0
  %3097 = vmatpush1.msra.mxu0 0.0
  %3098 = vmatprep.subr.mxu0 0.0
  %3099 = vmatpush1.msra.mxu0 0.0
  %3100 = vmatprep.subr.mxu0 0.0
  %3101 = vmatpush1.msra.mxu0 0.0
  %3102 = vmatprep.subr.mxu0 0.0
  %3103 = vmatpush1.msra.mxu0 0.0
  %3104 = vmatprep.subr.mxu0 0.0
  %3105 = vmatpush1.msra.mxu0 0.0
  %3106 = vmatprep.subr.mxu0 0.0
  %3107 = vmatpush1.msra.mxu0 0.0
  %3108 = vmatprep.subr.mxu0 0.0
  %3109 = vmatpush1.msra.mxu0 0.0
  %3110 = vmatprep.subr.mxu0 0.0
  %3111 = vmatpush1.msra.mxu0 0.0
  %3112 = vmatprep.mubr.f32.mxu0 0.0
  %3113 = vmatmul.mubr.f32.gmra.mrb[0].mxu0 %v3031
  %v3114 = vpop.f32.mrb[0].mxu0
  %v3115 = vadd.f32 0.0, %v3114
  %v3116 = vpop.f32.mrb[0].mxu0
  %3117 = vmatprep.mubr.f32.mxu0 0.0
  %3118 = vmatmul.mubr.f32.gmra.mrb[0].mxu0 %v3034
  %v3119 = vpop.f32.mrb[0].mxu0
  %v3120 = vadd.f32 0.0, %v3119
  %v3121 = vpop.f32.mrb[0].mxu0
  %3122 = vmatprep.mubr.f32.mxu0 0.0
  %3123 = vmatmul.mubr.f32.gmra.mrb[0].mxu0 %v3037
  %v3124 = vpop.f32.mrb[0].mxu0
  %v3125 = vadd.f32 0.0, %v3124
  %v3126 = vpop.f32.mrb[0].mxu0
  %3127 = vmatprep.mubr.f32.mxu0 0.0
  %3128 = vmatmul.mubr.f32.gmra.mrb[0].mxu0 %v3040
  %v3129 = vpop.f32.mrb[0].mxu0
  %v3130 = vadd.f32 0.0, %v3129
  %v3131 = vpop.f32.mrb[0].mxu0
  %3132 = vmatprep.mubr.f32.mxu0 0.0
  %3133 = vmatmul.mubr.f32.gmra.mrb[0].mxu0 %v3043
  %v3134 = vpop.f32.mrb[0].mxu0
  %v3135 = vadd.f32 0.0, %v3134
  %v3136 = vpop.f32.mrb[0].mxu0
  %3137 = vmatprep.mubr.f32.mxu0 0.0
  %3138 = vmatmul.mubr.f32.gmra.mrb[0].mxu0 %v3046
  %v3139 = vpop.f32.mrb[0].mxu0
  %v3140 = vadd.f32 0.0, %v3139
  %v3141 = vpop.f32.mrb[0].mxu0
  %3142 = vdwg.mxu0
  %v3143 = vadd.f32 %v3019, %v3115
  %v3144 = vadd.f32 %v3020, %v3120
  %v3145 = vadd.f32 %v3021, %v3125
  %v3146 = vadd.f32 %v3022, %v3130
  %v3147 = vadd.f32 %v3023, %v3135
  %v3148 = vadd.f32 %v3024, %v3140
  %s3149 = scalar_lea.vmem %s9, 160
  %v3150 = vld [vmem:[%s3149] sm:$0xff]
  %v3151 = vld [vmem:[%s3149 + $0x8] sm:$0xff]
  %v3152 = vld [vmem:[%s3149 + $0x10] sm:$0xff]
  %v3153 = vld [vmem:[%s3149 + $0x18] sm:$0xff]
  %v3155 = vsel %vm1562, %v2424, 0
  %v3158 = vsel %vm1562, %v2429, 0
  %v3161 = vsel %vm1562, %v2434, 0
  %v3164 = vsel %vm1562, %v2439, 0
  %v3167 = vsel %vm1562, %v2444, 0
  %v3170 = vsel %vm1562, %v2449, 0
  %3172 = vmatprep.subr.mxu0 0.0
  %3173 = vmatpush1.msra.mxu0 %v3150
  %3174 = vmatprep.subr.mxu0 0.0
  %3175 = vmatpush1.msra.mxu0 %v3151
  %3176 = vmatprep.subr.mxu0 0.0
  %3177 = vmatpush1.msra.mxu0 %v3152
  %3178 = vmatprep.subr.mxu0 0.0
  %3179 = vmatpush1.msra.mxu0 %v3153
  %3180 = vmatprep.subr.mxu0 0.0
  %3181 = vmatpush1.msra.mxu0 0.0
  %3182 = vmatprep.subr.mxu0 0.0
  %3183 = vmatpush1.msra.mxu0 0.0
  %3184 = vmatprep.subr.mxu0 0.0
  %3185 = vmatpush1.msra.mxu0 0.0
  %3186 = vmatprep.subr.mxu0 0.0
  %3187 = vmatpush1.msra.mxu0 0.0
  %3188 = vmatprep.subr.mxu0 0.0
  %3189 = vmatpush1.msra.mxu0 0.0
  %3190 = vmatprep.subr.mxu0 0.0
  %3191 = vmatpush1.msra.mxu0 0.0
  %3192 = vmatprep.subr.mxu0 0.0
  %3193 = vmatpush1.msra.mxu0 0.0
  %3194 = vmatprep.subr.mxu0 0.0
  %3195 = vmatpush1.msra.mxu0 0.0
  %3196 = vmatprep.subr.mxu0 0.0
  %3197 = vmatpush1.msra.mxu0 0.0
  %3198 = vmatprep.subr.mxu0 0.0
  %3199 = vmatpush1.msra.mxu0 0.0
  %3200 = vmatprep.subr.mxu0 0.0
  %3201 = vmatpush1.msra.mxu0 0.0
  %3202 = vmatprep.subr.mxu0 0.0
  %3203 = vmatpush1.msra.mxu0 0.0
  %3204 = vmatprep.subr.mxu0 0.0
  %3205 = vmatpush1.msra.mxu0 0.0
  %3206 = vmatprep.subr.mxu0 0.0
  %3207 = vmatpush1.msra.mxu0 0.0
  %3208 = vmatprep.subr.mxu0 0.0
  %3209 = vmatpush1.msra.mxu0 0.0
  %3210 = vmatprep.subr.mxu0 0.0
  %3211 = vmatpush1.msra.mxu0 0.0
  %3212 = vmatprep.subr.mxu0 0.0
  %3213 = vmatpush1.msra.mxu0 0.0
  %3214 = vmatprep.subr.mxu0 0.0
  %3215 = vmatpush1.msra.mxu0 0.0
  %3216 = vmatprep.subr.mxu0 0.0
  %3217 = vmatpush1.msra.mxu0 0.0
  %3218 = vmatprep.subr.mxu0 0.0
  %3219 = vmatpush1.msra.mxu0 0.0
  %3220 = vmatprep.subr.mxu0 0.0
  %3221 = vmatpush1.msra.mxu0 0.0
  %3222 = vmatprep.subr.mxu0 0.0
  %3223 = vmatpush1.msra.mxu0 0.0
  %3224 = vmatprep.subr.mxu0 0.0
  %3225 = vmatpush1.msra.mxu0 0.0
  %3226 = vmatprep.subr.mxu0 0.0
  %3227 = vmatpush1.msra.mxu0 0.0
  %3228 = vmatprep.subr.mxu0 0.0
  %3229 = vmatpush1.msra.mxu0 0.0
  %3230 = vmatprep.subr.mxu0 0.0
  %3231 = vmatpush1.msra.mxu0 0.0
  %3232 = vmatprep.subr.mxu0 0.0
  %3233 = vmatpush1.msra.mxu0 0.0
  %3234 = vmatprep.subr.mxu0 0.0
  %3235 = vmatpush1.msra.mxu0 0.0
  %3236 = vmatprep.mubr.f32.mxu0 0.0
  %3237 = vmatmul.mubr.f32.gmra.mrb[0].mxu0 %v3155
  %v3238 = vpop.f32.mrb[0].mxu0
  %v3239 = vadd.f32 0.0, %v3238
  %v3240 = vpop.f32.mrb[0].mxu0
  %3241 = vmatprep.mubr.f32.mxu0 0.0
  %3242 = vmatmul.mubr.f32.gmra.mrb[0].mxu0 %v3158
  %v3243 = vpop.f32.mrb[0].mxu0
  %v3244 = vadd.f32 0.0, %v3243
  %v3245 = vpop.f32.mrb[0].mxu0
  %3246 = vmatprep.mubr.f32.mxu0 0.0
  %3247 = vmatmul.mubr.f32.gmra.mrb[0].mxu0 %v3161
  %v3248 = vpop.f32.mrb[0].mxu0
  %v3249 = vadd.f32 0.0, %v3248
  %v3250 = vpop.f32.mrb[0].mxu0
  %3251 = vmatprep.mubr.f32.mxu0 0.0
  %3252 = vmatmul.mubr.f32.gmra.mrb[0].mxu0 %v3164
  %v3253 = vpop.f32.mrb[0].mxu0
  %v3254 = vadd.f32 0.0, %v3253
  %v3255 = vpop.f32.mrb[0].mxu0
  %3256 = vmatprep.mubr.f32.mxu0 0.0
  %3257 = vmatmul.mubr.f32.gmra.mrb[0].mxu0 %v3167
  %v3258 = vpop.f32.mrb[0].mxu0
  %v3259 = vadd.f32 0.0, %v3258
  %v3260 = vpop.f32.mrb[0].mxu0
  %3261 = vmatprep.mubr.f32.mxu0 0.0
  %3262 = vmatmul.mubr.f32.gmra.mrb[0].mxu0 %v3170
  %v3263 = vpop.f32.mrb[0].mxu0
  %v3264 = vadd.f32 0.0, %v3263
  %v3265 = vpop.f32.mrb[0].mxu0
  %3266 = vdwg.mxu0
  %v3267 = vadd.f32 %v3143, %v3239
  %v3268 = vadd.f32 %v3144, %v3244
  %v3269 = vadd.f32 %v3145, %v3249
  %v3270 = vadd.f32 %v3146, %v3254
  %v3271 = vadd.f32 %v3147, %v3259
  %v3272 = vadd.f32 %v3148, %v3264
  %s3273 = scalar_lea.vmem %s9, 192
  %v3274 = vld [vmem:[%s3273] sm:$0xff]
  %v3275 = vld [vmem:[%s3273 + $0x8] sm:$0xff]
  %v3276 = vld [vmem:[%s3273 + $0x10] sm:$0xff]
  %v3277 = vld [vmem:[%s3273 + $0x18] sm:$0xff]
  %v3279 = vsel %vm1562, %v2454, 0
  %v3282 = vsel %vm1562, %v2459, 0
  %v3285 = vsel %vm1562, %v2464, 0
  %v3288 = vsel %vm1562, %v2469, 0
  %v3291 = vsel %vm1562, %v2474, 0
  %v3294 = vsel %vm1562, %v2479, 0
  %3296 = vmatprep.subr.mxu0 0.0
  %3297 = vmatpush1.msra.mxu0 %v3274
  %3298 = vmatprep.subr.mxu0 0.0
  %3299 = vmatpush1.msra.mxu0 %v3275
  %3300 = vmatprep.subr.mxu0 0.0
  %3301 = vmatpush1.msra.mxu0 %v3276
  %3302 = vmatprep.subr.mxu0 0.0
  %3303 = vmatpush1.msra.mxu0 %v3277
  %3304 = vmatprep.subr.mxu0 0.0
  %3305 = vmatpush1.msra.mxu0 0.0
  %3306 = vmatprep.subr.mxu0 0.0
  %3307 = vmatpush1.msra.mxu0 0.0
  %3308 = vmatprep.subr.mxu0 0.0
  %3309 = vmatpush1.msra.mxu0 0.0
  %3310 = vmatprep.subr.mxu0 0.0
  %3311 = vmatpush1.msra.mxu0 0.0
  %3312 = vmatprep.subr.mxu0 0.0
  %3313 = vmatpush1.msra.mxu0 0.0
  %3314 = vmatprep.subr.mxu0 0.0
  %3315 = vmatpush1.msra.mxu0 0.0
  %3316 = vmatprep.subr.mxu0 0.0
  %3317 = vmatpush1.msra.mxu0 0.0
  %3318 = vmatprep.subr.mxu0 0.0
  %3319 = vmatpush1.msra.mxu0 0.0
  %3320 = vmatprep.subr.mxu0 0.0
  %3321 = vmatpush1.msra.mxu0 0.0
  %3322 = vmatprep.subr.mxu0 0.0
  %3323 = vmatpush1.msra.mxu0 0.0
  %3324 = vmatprep.subr.mxu0 0.0
  %3325 = vmatpush1.msra.mxu0 0.0
  %3326 = vmatprep.subr.mxu0 0.0
  %3327 = vmatpush1.msra.mxu0 0.0
  %3328 = vmatprep.subr.mxu0 0.0
  %3329 = vmatpush1.msra.mxu0 0.0
  %3330 = vmatprep.subr.mxu0 0.0
  %3331 = vmatpush1.msra.mxu0 0.0
  %3332 = vmatprep.subr.mxu0 0.0
  %3333 = vmatpush1.msra.mxu0 0.0
  %3334 = vmatprep.subr.mxu0 0.0
  %3335 = vmatpush1.msra.mxu0 0.0
  %3336 = vmatprep.subr.mxu0 0.0
  %3337 = vmatpush1.msra.mxu0 0.0
  %3338 = vmatprep.subr.mxu0 0.0
  %3339 = vmatpush1.msra.mxu0 0.0
  %3340 = vmatprep.subr.mxu0 0.0
  %3341 = vmatpush1.msra.mxu0 0.0
  %3342 = vmatprep.subr.mxu0 0.0
  %3343 = vmatpush1.msra.mxu0 0.0
  %3344 = vmatprep.subr.mxu0 0.0
  %3345 = vmatpush1.msra.mxu0 0.0
  %3346 = vmatprep.subr.mxu0 0.0
  %3347 = vmatpush1.msra.mxu0 0.0
  %3348 = vmatprep.subr.mxu0 0.0
  %3349 = vmatpush1.msra.mxu0 0.0
  %3350 = vmatprep.subr.mxu0 0.0
  %3351 = vmatpush1.msra.mxu0 0.0
  %3352 = vmatprep.subr.mxu0 0.0
  %3353 = vmatpush1.msra.mxu0 0.0
  %3354 = vmatprep.subr.mxu0 0.0
  %3355 = vmatpush1.msra.mxu0 0.0
  %3356 = vmatprep.subr.mxu0 0.0
  %3357 = vmatpush1.msra.mxu0 0.0
  %3358 = vmatprep.subr.mxu0 0.0
  %3359 = vmatpush1.msra.mxu0 0.0
  %3360 = vmatprep.mubr.f32.mxu0 0.0
  %3361 = vmatmul.mubr.f32.gmra.mrb[0].mxu0 %v3279
  %v3362 = vpop.f32.mrb[0].mxu0
  %v3363 = vadd.f32 0.0, %v3362
  %v3364 = vpop.f32.mrb[0].mxu0
  %3365 = vmatprep.mubr.f32.mxu0 0.0
  %3366 = vmatmul.mubr.f32.gmra.mrb[0].mxu0 %v3282
  %v3367 = vpop.f32.mrb[0].mxu0
  %v3368 = vadd.f32 0.0, %v3367
  %v3369 = vpop.f32.mrb[0].mxu0
  %3370 = vmatprep.mubr.f32.mxu0 0.0
  %3371 = vmatmul.mubr.f32.gmra.mrb[0].mxu0 %v3285
  %v3372 = vpop.f32.mrb[0].mxu0
  %v3373 = vadd.f32 0.0, %v3372
  %v3374 = vpop.f32.mrb[0].mxu0
  %3375 = vmatprep.mubr.f32.mxu0 0.0
  %3376 = vmatmul.mubr.f32.gmra.mrb[0].mxu0 %v3288
  %v3377 = vpop.f32.mrb[0].mxu0
  %v3378 = vadd.f32 0.0, %v3377
  %v3379 = vpop.f32.mrb[0].mxu0
  %3380 = vmatprep.mubr.f32.mxu0 0.0
  %3381 = vmatmul.mubr.f32.gmra.mrb[0].mxu0 %v3291
  %v3382 = vpop.f32.mrb[0].mxu0
  %v3383 = vadd.f32 0.0, %v3382
  %v3384 = vpop.f32.mrb[0].mxu0
  %3385 = vmatprep.mubr.f32.mxu0 0.0
  %3386 = vmatmul.mubr.f32.gmra.mrb[0].mxu0 %v3294
  %v3387 = vpop.f32.mrb[0].mxu0
  %v3388 = vadd.f32 0.0, %v3387
  %v3389 = vpop.f32.mrb[0].mxu0
  %3390 = vdwg.mxu0
  %v3391 = vadd.f32 %v3267, %v3363
  %v3392 = vadd.f32 %v3268, %v3368
  %v3393 = vadd.f32 %v3269, %v3373
  %v3394 = vadd.f32 %v3270, %v3378
  %v3395 = vadd.f32 %v3271, %v3383
  %v3396 = vadd.f32 %v3272, %v3388
  %s3397 = scalar_lea.vmem %s9, 224
  %v3398 = vld [vmem:[%s3397] sm:$0xff]
  %v3399 = vld [vmem:[%s3397 + $0x8] sm:$0xff]
  %v3400 = vld [vmem:[%s3397 + $0x10] sm:$0xff]
  %v3401 = vld [vmem:[%s3397 + $0x18] sm:$0xff]
  %v3403 = vsel %vm1562, %v2484, 0
  %v3406 = vsel %vm1562, %v2489, 0
  %v3409 = vsel %vm1562, %v2494, 0
  %v3412 = vsel %vm1562, %v2499, 0
  %v3415 = vsel %vm1562, %v2504, 0
  %v3418 = vsel %vm1562, %v2509, 0
  %3420 = vmatprep.subr.mxu0 0.0
  %3421 = vmatpush1.msra.mxu0 %v3398
  %3422 = vmatprep.subr.mxu0 0.0
  %3423 = vmatpush1.msra.mxu0 %v3399
  %3424 = vmatprep.subr.mxu0 0.0
  %3425 = vmatpush1.msra.mxu0 %v3400
  %3426 = vmatprep.subr.mxu0 0.0
  %3427 = vmatpush1.msra.mxu0 %v3401
  %3428 = vmatprep.subr.mxu0 0.0
  %3429 = vmatpush1.msra.mxu0 0.0
  %3430 = vmatprep.subr.mxu0 0.0
  %3431 = vmatpush1.msra.mxu0 0.0
  %3432 = vmatprep.subr.mxu0 0.0
  %3433 = vmatpush1.msra.mxu0 0.0
  %3434 = vmatprep.subr.mxu0 0.0
  %3435 = vmatpush1.msra.mxu0 0.0
  %3436 = vmatprep.subr.mxu0 0.0
  %3437 = vmatpush1.msra.mxu0 0.0
  %3438 = vmatprep.subr.mxu0 0.0
  %3439 = vmatpush1.msra.mxu0 0.0
  %3440 = vmatprep.subr.mxu0 0.0
  %3441 = vmatpush1.msra.mxu0 0.0
  %3442 = vmatprep.subr.mxu0 0.0
  %3443 = vmatpush1.msra.mxu0 0.0
  %3444 = vmatprep.subr.mxu0 0.0
  %3445 = vmatpush1.msra.mxu0 0.0
  %3446 = vmatprep.subr.mxu0 0.0
  %3447 = vmatpush1.msra.mxu0 0.0
  %3448 = vmatprep.subr.mxu0 0.0
  %3449 = vmatpush1.msra.mxu0 0.0
  %3450 = vmatprep.subr.mxu0 0.0
  %3451 = vmatpush1.msra.mxu0 0.0
  %3452 = vmatprep.subr.mxu0 0.0
  %3453 = vmatpush1.msra.mxu0 0.0
  %3454 = vmatprep.subr.mxu0 0.0
  %3455 = vmatpush1.msra.mxu0 0.0
  %3456 = vmatprep.subr.mxu0 0.0
  %3457 = vmatpush1.msra.mxu0 0.0
  %3458 = vmatprep.subr.mxu0 0.0
  %3459 = vmatpush1.msra.mxu0 0.0
  %3460 = vmatprep.subr.mxu0 0.0
  %3461 = vmatpush1.msra.mxu0 0.0
  %3462 = vmatprep.subr.mxu0 0.0
  %3463 = vmatpush1.msra.mxu0 0.0
  %3464 = vmatprep.subr.mxu0 0.0
  %3465 = vmatpush1.msra.mxu0 0.0
  %3466 = vmatprep.subr.mxu0 0.0
  %3467 = vmatpush1.msra.mxu0 0.0
  %3468 = vmatprep.subr.mxu0 0.0
  %3469 = vmatpush1.msra.mxu0 0.0
  %3470 = vmatprep.subr.mxu0 0.0
  %3471 = vmatpush1.msra.mxu0 0.0
  %3472 = vmatprep.subr.mxu0 0.0
  %3473 = vmatpush1.msra.mxu0 0.0
  %3474 = vmatprep.subr.mxu0 0.0
  %3475 = vmatpush1.msra.mxu0 0.0
  %3476 = vmatprep.subr.mxu0 0.0
  %3477 = vmatpush1.msra.mxu0 0.0
  %3478 = vmatprep.subr.mxu0 0.0
  %3479 = vmatpush1.msra.mxu0 0.0
  %3480 = vmatprep.subr.mxu0 0.0
  %3481 = vmatpush1.msra.mxu0 0.0
  %3482 = vmatprep.subr.mxu0 0.0
  %3483 = vmatpush1.msra.mxu0 0.0
  %3484 = vmatprep.mubr.f32.mxu0 0.0
  %3485 = vmatmul.mubr.f32.gmra.mrb[0].mxu0 %v3403
  %v3486 = vpop.f32.mrb[0].mxu0
  %v3487 = vadd.f32 0.0, %v3486
  %v3488 = vpop.f32.mrb[0].mxu0
  %3489 = vmatprep.mubr.f32.mxu0 0.0
  %3490 = vmatmul.mubr.f32.gmra.mrb[0].mxu0 %v3406
  %v3491 = vpop.f32.mrb[0].mxu0
  %v3492 = vadd.f32 0.0, %v3491
  %v3493 = vpop.f32.mrb[0].mxu0
  %3494 = vmatprep.mubr.f32.mxu0 0.0
  %3495 = vmatmul.mubr.f32.gmra.mrb[0].mxu0 %v3409
  %v3496 = vpop.f32.mrb[0].mxu0
  %v3497 = vadd.f32 0.0, %v3496
  %v3498 = vpop.f32.mrb[0].mxu0
  %3499 = vmatprep.mubr.f32.mxu0 0.0
  %3500 = vmatmul.mubr.f32.gmra.mrb[0].mxu0 %v3412
  %v3501 = vpop.f32.mrb[0].mxu0
  %v3502 = vadd.f32 0.0, %v3501
  %v3503 = vpop.f32.mrb[0].mxu0
  %3504 = vmatprep.mubr.f32.mxu0 0.0
  %3505 = vmatmul.mubr.f32.gmra.mrb[0].mxu0 %v3415
  %v3506 = vpop.f32.mrb[0].mxu0
  %v3507 = vadd.f32 0.0, %v3506
  %v3508 = vpop.f32.mrb[0].mxu0
  %3509 = vmatprep.mubr.f32.mxu0 0.0
  %3510 = vmatmul.mubr.f32.gmra.mrb[0].mxu0 %v3418
  %v3511 = vpop.f32.mrb[0].mxu0
  %v3512 = vadd.f32 0.0, %v3511
  %v3513 = vpop.f32.mrb[0].mxu0
  %3514 = vdwg.mxu0
  %v3515 = vadd.f32 %v3391, %v3487
  %v3516 = vadd.f32 %v3392, %v3492
  %v3517 = vadd.f32 %v3393, %v3497
  %v3518 = vadd.f32 %v3394, %v3502
  %v3519 = vadd.f32 %v3395, %v3507
  %v3520 = vadd.f32 %v3396, %v3512
  %s3521 = scalar_lea.vmem %s9, 256
  %v3522 = vld [vmem:[%s3521] sm:$0xff]
  %v3523 = vld [vmem:[%s3521 + $0x8] sm:$0xff]
  %v3524 = vld [vmem:[%s3521 + $0x10] sm:$0xff]
  %v3525 = vld [vmem:[%s3521 + $0x18] sm:$0xff]
  %v3527 = vsel %vm1562, %v2514, 0
  %v3530 = vsel %vm1562, %v2519, 0
  %v3533 = vsel %vm1562, %v2524, 0
  %v3536 = vsel %vm1562, %v2529, 0
  %v3539 = vsel %vm1562, %v2534, 0
  %v3542 = vsel %vm1562, %v2539, 0
  %3544 = vmatprep.subr.mxu0 0.0
  %3545 = vmatpush1.msra.mxu0 %v3522
  %3546 = vmatprep.subr.mxu0 0.0
  %3547 = vmatpush1.msra.mxu0 %v3523
  %3548 = vmatprep.subr.mxu0 0.0
  %3549 = vmatpush1.msra.mxu0 %v3524
  %3550 = vmatprep.subr.mxu0 0.0
  %3551 = vmatpush1.msra.mxu0 %v3525
  %3552 = vmatprep.subr.mxu0 0.0
  %3553 = vmatpush1.msra.mxu0 0.0
  %3554 = vmatprep.subr.mxu0 0.0
  %3555 = vmatpush1.msra.mxu0 0.0
  %3556 = vmatprep.subr.mxu0 0.0
  %3557 = vmatpush1.msra.mxu0 0.0
  %3558 = vmatprep.subr.mxu0 0.0
  %3559 = vmatpush1.msra.mxu0 0.0
  %3560 = vmatprep.subr.mxu0 0.0
  %3561 = vmatpush1.msra.mxu0 0.0
  %3562 = vmatprep.subr.mxu0 0.0
  %3563 = vmatpush1.msra.mxu0 0.0
  %3564 = vmatprep.subr.mxu0 0.0
  %3565 = vmatpush1.msra.mxu0 0.0
  %3566 = vmatprep.subr.mxu0 0.0
  %3567 = vmatpush1.msra.mxu0 0.0
  %3568 = vmatprep.subr.mxu0 0.0
  %3569 = vmatpush1.msra.mxu0 0.0
  %3570 = vmatprep.subr.mxu0 0.0
  %3571 = vmatpush1.msra.mxu0 0.0
  %3572 = vmatprep.subr.mxu0 0.0
  %3573 = vmatpush1.msra.mxu0 0.0
  %3574 = vmatprep.subr.mxu0 0.0
  %3575 = vmatpush1.msra.mxu0 0.0
  %3576 = vmatprep.subr.mxu0 0.0
  %3577 = vmatpush1.msra.mxu0 0.0
  %3578 = vmatprep.subr.mxu0 0.0
  %3579 = vmatpush1.msra.mxu0 0.0
  %3580 = vmatprep.subr.mxu0 0.0
  %3581 = vmatpush1.msra.mxu0 0.0
  %3582 = vmatprep.subr.mxu0 0.0
  %3583 = vmatpush1.msra.mxu0 0.0
  %3584 = vmatprep.subr.mxu0 0.0
  %3585 = vmatpush1.msra.mxu0 0.0
  %3586 = vmatprep.subr.mxu0 0.0
  %3587 = vmatpush1.msra.mxu0 0.0
  %3588 = vmatprep.subr.mxu0 0.0
  %3589 = vmatpush1.msra.mxu0 0.0
  %3590 = vmatprep.subr.mxu0 0.0
  %3591 = vmatpush1.msra.mxu0 0.0
  %3592 = vmatprep.subr.mxu0 0.0
  %3593 = vmatpush1.msra.mxu0 0.0
  %3594 = vmatprep.subr.mxu0 0.0
  %3595 = vmatpush1.msra.mxu0 0.0
  %3596 = vmatprep.subr.mxu0 0.0
  %3597 = vmatpush1.msra.mxu0 0.0
  %3598 = vmatprep.subr.mxu0 0.0
  %3599 = vmatpush1.msra.mxu0 0.0
  %3600 = vmatprep.subr.mxu0 0.0
  %3601 = vmatpush1.msra.mxu0 0.0
  %3602 = vmatprep.subr.mxu0 0.0
  %3603 = vmatpush1.msra.mxu0 0.0
  %3604 = vmatprep.subr.mxu0 0.0
  %3605 = vmatpush1.msra.mxu0 0.0
  %3606 = vmatprep.subr.mxu0 0.0
  %3607 = vmatpush1.msra.mxu0 0.0
  %3608 = vmatprep.mubr.f32.mxu0 0.0
  %3609 = vmatmul.mubr.f32.gmra.mrb[0].mxu0 %v3527
  %v3610 = vpop.f32.mrb[0].mxu0
  %v3611 = vadd.f32 0.0, %v3610
  %v3612 = vpop.f32.mrb[0].mxu0
  %3613 = vmatprep.mubr.f32.mxu0 0.0
  %3614 = vmatmul.mubr.f32.gmra.mrb[0].mxu0 %v3530
  %v3615 = vpop.f32.mrb[0].mxu0
  %v3616 = vadd.f32 0.0, %v3615
  %v3617 = vpop.f32.mrb[0].mxu0
  %3618 = vmatprep.mubr.f32.mxu0 0.0
  %3619 = vmatmul.mubr.f32.gmra.mrb[0].mxu0 %v3533
  %v3620 = vpop.f32.mrb[0].mxu0
  %v3621 = vadd.f32 0.0, %v3620
  %v3622 = vpop.f32.mrb[0].mxu0
  %3623 = vmatprep.mubr.f32.mxu0 0.0
  %3624 = vmatmul.mubr.f32.gmra.mrb[0].mxu0 %v3536
  %v3625 = vpop.f32.mrb[0].mxu0
  %v3626 = vadd.f32 0.0, %v3625
  %v3627 = vpop.f32.mrb[0].mxu0
  %3628 = vmatprep.mubr.f32.mxu0 0.0
  %3629 = vmatmul.mubr.f32.gmra.mrb[0].mxu0 %v3539
  %v3630 = vpop.f32.mrb[0].mxu0
  %v3631 = vadd.f32 0.0, %v3630
  %v3632 = vpop.f32.mrb[0].mxu0
  %3633 = vmatprep.mubr.f32.mxu0 0.0
  %3634 = vmatmul.mubr.f32.gmra.mrb[0].mxu0 %v3542
  %v3635 = vpop.f32.mrb[0].mxu0
  %v3636 = vadd.f32 0.0, %v3635
  %v3637 = vpop.f32.mrb[0].mxu0
  %3638 = vdwg.mxu0
  %v3639 = vadd.f32 %v3515, %v3611
  %v3640 = vadd.f32 %v3516, %v3616
  %v3641 = vadd.f32 %v3517, %v3621
  %v3642 = vadd.f32 %v3518, %v3626
  %v3643 = vadd.f32 %v3519, %v3631
  %v3644 = vadd.f32 %v3520, %v3636
  %v3645 = vmax.f32 %v3639, 0.0
  %v3646 = vmax.f32 %v3640, 0.0
  %v3647 = vmax.f32 %v3641, 0.0
  %v3648 = vmax.f32 %v3642, 0.0
  %v3649 = vmax.f32 %v3643, 0.0
  %v3650 = vmax.f32 %v3644, 0.0
  %v3651 = vpack.c.bf16 %v3646, %v3645
  %v3652 = vpack.c.bf16 %v3648, %v3647
  %v3653 = vpack.c.bf16 %v3650, %v3649
  %v3657 = vunpack.c.l.b16 %v3651
  %v3658 = vunpack.c.h.b16 %v3651
  %v3659 = vunpack.c.l.b16 %v3652
  %v3660 = vunpack.c.h.b16 %v3652
  %v3661 = vunpack.c.l.b16 %v3653
  %v3662 = vunpack.c.h.b16 %v3653
  %v3663 = vpack.c.b16 %v3657, %v3657
  %v3664 = vpack.c.b16 %v3658, %v3658
  %v3665 = vpack.c.b16 %v3659, %v3659
  %v3666 = vpack.c.b16 %v3660, %v3660
  %v3667 = vpack.c.b16 %v3661, %v3661
  %v3668 = vpack.c.b16 %v3662, %v3662
  %vm3675 = vcmask 60416
  %3676 = vst.msk [vmem:[%s17] sm:$0xf] %vm3675, %v3663
  %3677 = vst.msk [vmem:[%s17 + $0x4] sm:$0xf] %vm3675, %v3664
  %3678 = vst.msk [vmem:[%s17 + $0x8] sm:$0xf] %vm3675, %v3665
  %3679 = vst.msk [vmem:[%s17 + $0xc] sm:$0xf] %vm3675, %v3666
  %3680 = vst.msk [vmem:[%s17 + $0x10] sm:$0xf] %vm3675, %v3667
  %3681 = vst.msk [vmem:[%s17 + $0x14] sm:$0xf] %vm3675, %v3668
  %v3682 = vld [vmem:[%s10] sm:$0xff]
  %vm3683 = vcmask 64512
  %v3685 = vsel %vm3683, %v3645, 0
  %v3688 = vsel %vm3683, %v3646, 0
  %v3691 = vsel %vm3683, %v3647, 0
  %v3694 = vsel %vm3683, %v3648, 0
  %v3697 = vsel %vm3683, %v3649, 0
  %v3700 = vsel %vm3683, %v3650, 0
  %3702 = vmatprep.subr.mxu0 0.0
  %3703 = vmatpush1.msra.mxu0 %v3682
  %3704 = vmatprep.subr.mxu0 0.0
  %3705 = vmatpush1.msra.mxu0 0.0
  %3706 = vmatprep.subr.mxu0 0.0
  %3707 = vmatpush1.msra.mxu0 0.0
  %3708 = vmatprep.subr.mxu0 0.0
  %3709 = vmatpush1.msra.mxu0 0.0
  %3710 = vmatprep.subr.mxu0 0.0
  %3711 = vmatpush1.msra.mxu0 0.0
  %3712 = vmatprep.subr.mxu0 0.0
  %3713 = vmatpush1.msra.mxu0 0.0
  %3714 = vmatprep.subr.mxu0 0.0
  %3715 = vmatpush1.msra.mxu0 0.0
  %3716 = vmatprep.subr.mxu0 0.0
  %3717 = vmatpush1.msra.mxu0 0.0
  %3718 = vmatprep.subr.mxu0 0.0
  %3719 = vmatpush1.msra.mxu0 0.0
  %3720 = vmatprep.subr.mxu0 0.0
  %3721 = vmatpush1.msra.mxu0 0.0
  %3722 = vmatprep.subr.mxu0 0.0
  %3723 = vmatpush1.msra.mxu0 0.0
  %3724 = vmatprep.subr.mxu0 0.0
  %3725 = vmatpush1.msra.mxu0 0.0
  %3726 = vmatprep.subr.mxu0 0.0
  %3727 = vmatpush1.msra.mxu0 0.0
  %3728 = vmatprep.subr.mxu0 0.0
  %3729 = vmatpush1.msra.mxu0 0.0
  %3730 = vmatprep.subr.mxu0 0.0
  %3731 = vmatpush1.msra.mxu0 0.0
  %3732 = vmatprep.subr.mxu0 0.0
  %3733 = vmatpush1.msra.mxu0 0.0
  %3734 = vmatprep.subr.mxu0 0.0
  %3735 = vmatpush1.msra.mxu0 0.0
  %3736 = vmatprep.subr.mxu0 0.0
  %3737 = vmatpush1.msra.mxu0 0.0
  %3738 = vmatprep.subr.mxu0 0.0
  %3739 = vmatpush1.msra.mxu0 0.0
  %3740 = vmatprep.subr.mxu0 0.0
  %3741 = vmatpush1.msra.mxu0 0.0
  %3742 = vmatprep.subr.mxu0 0.0
  %3743 = vmatpush1.msra.mxu0 0.0
  %3744 = vmatprep.subr.mxu0 0.0
  %3745 = vmatpush1.msra.mxu0 0.0
  %3746 = vmatprep.subr.mxu0 0.0
  %3747 = vmatpush1.msra.mxu0 0.0
  %3748 = vmatprep.subr.mxu0 0.0
  %3749 = vmatpush1.msra.mxu0 0.0
  %3750 = vmatprep.subr.mxu0 0.0
  %3751 = vmatpush1.msra.mxu0 0.0
  %3752 = vmatprep.subr.mxu0 0.0
  %3753 = vmatpush1.msra.mxu0 0.0
  %3754 = vmatprep.subr.mxu0 0.0
  %3755 = vmatpush1.msra.mxu0 0.0
  %3756 = vmatprep.subr.mxu0 0.0
  %3757 = vmatpush1.msra.mxu0 0.0
  %3758 = vmatprep.subr.mxu0 0.0
  %3759 = vmatpush1.msra.mxu0 0.0
  %3760 = vmatprep.subr.mxu0 0.0
  %3761 = vmatpush1.msra.mxu0 0.0
  %3762 = vmatprep.subr.mxu0 0.0
  %3763 = vmatpush1.msra.mxu0 0.0
  %3764 = vmatprep.subr.mxu0 0.0
  %3765 = vmatpush1.msra.mxu0 0.0
  %3766 = vmatprep.mubr.f32.mxu0 0.0
  %3767 = vmatmul.mubr.f32.gmra.mrb[0].mxu0 %v3685
  %v3768 = vpop.f32.mrb[0].mxu0
  %v3769 = vadd.f32 0.0, %v3768
  %v3770 = vpop.f32.mrb[0].mxu0
  %3771 = vmatprep.mubr.f32.mxu0 0.0
  %3772 = vmatmul.mubr.f32.gmra.mrb[0].mxu0 %v3688
  %v3773 = vpop.f32.mrb[0].mxu0
  %v3774 = vadd.f32 0.0, %v3773
  %v3775 = vpop.f32.mrb[0].mxu0
  %3776 = vmatprep.mubr.f32.mxu0 0.0
  %3777 = vmatmul.mubr.f32.gmra.mrb[0].mxu0 %v3691
  %v3778 = vpop.f32.mrb[0].mxu0
  %v3779 = vadd.f32 0.0, %v3778
  %v3780 = vpop.f32.mrb[0].mxu0
  %3781 = vmatprep.mubr.f32.mxu0 0.0
  %3782 = vmatmul.mubr.f32.gmra.mrb[0].mxu0 %v3694
  %v3783 = vpop.f32.mrb[0].mxu0
  %v3784 = vadd.f32 0.0, %v3783
  %v3785 = vpop.f32.mrb[0].mxu0
  %3786 = vmatprep.mubr.f32.mxu0 0.0
  %3787 = vmatmul.mubr.f32.gmra.mrb[0].mxu0 %v3697
  %v3788 = vpop.f32.mrb[0].mxu0
  %v3789 = vadd.f32 0.0, %v3788
  %v3790 = vpop.f32.mrb[0].mxu0
  %3791 = vmatprep.mubr.f32.mxu0 0.0
  %3792 = vmatmul.mubr.f32.gmra.mrb[0].mxu0 %v3700
  %v3793 = vpop.f32.mrb[0].mxu0
  %v3794 = vadd.f32 0.0, %v3793
  %v3795 = vpop.f32.mrb[0].mxu0
  %3796 = vdwg.mxu0
  %v3797 = vld [vmem:[%s11] sm:$0xff]
  %v3798 = vld [vmem:[%s11 + $0x8] sm:$0xff]
  %v3799 = vld [vmem:[%s11 + $0x10] sm:$0xff]
  %v3800 = vld [vmem:[%s11 + $0x18] sm:$0xff]
  %v3801 = vld [vmem:[%s11 + $0x20] sm:$0xff]
  %v3802 = vld [vmem:[%s11 + $0x28] sm:$0xff]
  %3804 = vset.pattern.permute.xlu0 0
  %3805 = vperm.xlu0 %3804, %v3797
  %v3806 = vpop.permute.xlu0 %3805
  %3809 = vset.pattern.permute.xlu0 0
  %3810 = vperm.xlu0 %3809, %v3798
  %v3811 = vpop.permute.xlu0 %3810
  %3814 = vset.pattern.permute.xlu0 0
  %3815 = vperm.xlu0 %3814, %v3799
  %v3816 = vpop.permute.xlu0 %3815
  %3819 = vset.pattern.permute.xlu0 0
  %3820 = vperm.xlu0 %3819, %v3800
  %v3821 = vpop.permute.xlu0 %3820
  %3824 = vset.pattern.permute.xlu0 0
  %3825 = vperm.xlu0 %3824, %v3801
  %v3826 = vpop.permute.xlu0 %3825
  %3829 = vset.pattern.permute.xlu0 0
  %3830 = vperm.xlu0 %3829, %v3802
  %v3831 = vpop.permute.xlu0 %3830
  %v3833 = vmul.f32 %v3769, %v3806
  %v3834 = vmul.f32 %v3774, %v3811
  %v3835 = vmul.f32 %v3779, %v3816
  %v3836 = vmul.f32 %v3784, %v3821
  %v3837 = vmul.f32 %v3789, %v3826
  %v3838 = vmul.f32 %v3794, %v3831
  %v3839 = vld [vmem:[%s12] sm:$0xff]
  %v3840 = vld [vmem:[%s12 + $0x8] sm:$0xff]
  %v3841 = vld [vmem:[%s12 + $0x10] sm:$0xff]
  %v3842 = vld [vmem:[%s12 + $0x18] sm:$0xff]
  %v3843 = vld [vmem:[%s12 + $0x20] sm:$0xff]
  %v3844 = vld [vmem:[%s12 + $0x28] sm:$0xff]
  %3846 = vset.pattern.permute.xlu0 0
  %3847 = vperm.xlu0 %3846, %v3839
  %v3848 = vpop.permute.xlu0 %3847
  %3851 = vset.pattern.permute.xlu0 0
  %3852 = vperm.xlu0 %3851, %v3840
  %v3853 = vpop.permute.xlu0 %3852
  %3856 = vset.pattern.permute.xlu0 0
  %3857 = vperm.xlu0 %3856, %v3841
  %v3858 = vpop.permute.xlu0 %3857
  %3861 = vset.pattern.permute.xlu0 0
  %3862 = vperm.xlu0 %3861, %v3842
  %v3863 = vpop.permute.xlu0 %3862
  %3866 = vset.pattern.permute.xlu0 0
  %3867 = vperm.xlu0 %3866, %v3843
  %v3868 = vpop.permute.xlu0 %3867
  %3871 = vset.pattern.permute.xlu0 0
  %3872 = vperm.xlu0 %3871, %v3844
  %v3873 = vpop.permute.xlu0 %3872
  %v3875 = vadd.f32 %v3833, %v3848
  %v3876 = vadd.f32 %v3834, %v3853
  %v3877 = vadd.f32 %v3835, %v3858
  %v3878 = vadd.f32 %v3836, %v3863
  %v3879 = vadd.f32 %v3837, %v3868
  %v3880 = vadd.f32 %v3838, %v3873
  %v3881 = vld [vmem:[%s13] sm:$0xff]
  %v3882 = vld [vmem:[%s13 + $0x8] sm:$0x3]
  %v3883 = vld [vmem:[%s14] sm:$0xff]
  %v3884 = vld [vmem:[%s14 + $0x8] sm:$0x3]
  %3886 = vset.pattern.permute.xlu0 0
  %3887 = vperm.xlu0 %3886, %v3883
  %v3888 = vpop.permute.xlu0 %3887
  %3891 = vset.pattern.permute.xlu0 0
  %3892 = vperm.xlu0 %3891, %v3884
  %v3893 = vpop.permute.xlu0 %3892
  %vm3895 = vcmask 392192
  %v3897 = vsel %vm3895, %v3881, 0
  %v3900 = vsel %vm3895, %v3882, 0
  %3902 = vmatprep.subr.mxu0 0.0
  %3903 = vmatpush1.msra.mxu0 %v3875
  %3904 = vmatprep.subr.mxu0 0.0
  %3905 = vmatpush1.msra.mxu0 %v3876
  %3906 = vmatprep.subr.mxu0 0.0
  %3907 = vmatpush1.msra.mxu0 %v3877
  %3908 = vmatprep.subr.mxu0 0.0
  %3909 = vmatpush1.msra.mxu0 %v3878
  %3910 = vmatprep.subr.mxu0 0.0
  %3911 = vmatpush1.msra.mxu0 %v3879
  %3912 = vmatprep.subr.mxu0 0.0
  %3913 = vmatpush1.msra.mxu0 %v3880
  %3914 = vmatprep.subr.mxu0 0.0
  %3915 = vmatpush1.msra.mxu0 0.0
  %3916 = vmatprep.subr.mxu0 0.0
  %3917 = vmatpush1.msra.mxu0 0.0
  %3918 = vmatprep.subr.mxu0 0.0
  %3919 = vmatpush1.msra.mxu0 0.0
  %3920 = vmatprep.subr.mxu0 0.0
  %3921 = vmatpush1.msra.mxu0 0.0
  %3922 = vmatprep.subr.mxu0 0.0
  %3923 = vmatpush1.msra.mxu0 0.0
  %3924 = vmatprep.subr.mxu0 0.0
  %3925 = vmatpush1.msra.mxu0 0.0
  %3926 = vmatprep.subr.mxu0 0.0
  %3927 = vmatpush1.msra.mxu0 0.0
  %3928 = vmatprep.subr.mxu0 0.0
  %3929 = vmatpush1.msra.mxu0 0.0
  %3930 = vmatprep.subr.mxu0 0.0
  %3931 = vmatpush1.msra.mxu0 0.0
  %3932 = vmatprep.subr.mxu0 0.0
  %3933 = vmatpush1.msra.mxu0 0.0
  %3934 = vmatprep.subr.mxu0 0.0
  %3935 = vmatpush1.msra.mxu0 0.0
  %3936 = vmatprep.subr.mxu0 0.0
  %3937 = vmatpush1.msra.mxu0 0.0
  %3938 = vmatprep.subr.mxu0 0.0
  %3939 = vmatpush1.msra.mxu0 0.0
  %3940 = vmatprep.subr.mxu0 0.0
  %3941 = vmatpush1.msra.mxu0 0.0
  %3942 = vmatprep.subr.mxu0 0.0
  %3943 = vmatpush1.msra.mxu0 0.0
  %3944 = vmatprep.subr.mxu0 0.0
  %3945 = vmatpush1.msra.mxu0 0.0
  %3946 = vmatprep.subr.mxu0 0.0
  %3947 = vmatpush1.msra.mxu0 0.0
  %3948 = vmatprep.subr.mxu0 0.0
  %3949 = vmatpush1.msra.mxu0 0.0
  %3950 = vmatprep.subr.mxu0 0.0
  %3951 = vmatpush1.msra.mxu0 0.0
  %3952 = vmatprep.subr.mxu0 0.0
  %3953 = vmatpush1.msra.mxu0 0.0
  %3954 = vmatprep.subr.mxu0 0.0
  %3955 = vmatpush1.msra.mxu0 0.0
  %3956 = vmatprep.subr.mxu0 0.0
  %3957 = vmatpush1.msra.mxu0 0.0
  %3958 = vmatprep.subr.mxu0 0.0
  %3959 = vmatpush1.msra.mxu0 0.0
  %3960 = vmatprep.subr.mxu0 0.0
  %3961 = vmatpush1.msra.mxu0 0.0
  %3962 = vmatprep.subr.mxu0 0.0
  %3963 = vmatpush1.msra.mxu0 0.0
  %3964 = vmatprep.subr.mxu0 0.0
  %3965 = vmatpush1.msra.mxu0 0.0
  %3966 = vmatprep.mubr.f32.mxu0 0.0
  %3967 = vmatmul.mubr.f32.gmra.mrb[0].mxu0 %v3897
  %v3968 = vpop.f32.mrb[0].mxu0
  %v3969 = vadd.f32 %v3888, %v3968
  %v3970 = vpop.f32.mrb[0].mxu0
  %3971 = vmatprep.mubr.f32.mxu0 0.0
  %3972 = vmatmul.mubr.f32.gmra.mrb[0].mxu0 %v3900
  %v3973 = vpop.f32.mrb[0].mxu0
  %v3974 = vadd.f32 %v3893, %v3973
  %v3975 = vpop.f32.mrb[0].mxu0
  %3976 = vdwg.mxu0
  %3977 = vst.msk [vmem:[%s18] sm:$0xff] %vm1739, %v3969
  %vm3978 = vcmask 9216
  %3979 = vst.msk [vmem:[%s18 + $0x8] sm:$0x3] %vm3978, %v3974
  // Predicated region
  $region62: #{efficientnet_b4_attention_forward.5} parent=0 // pred_check
    _
  $region63: #{efficientnet_b4_attention_forward.5} parent=0 // pred_check_branch
    %3981 = sbr.rel (0) target = $region65
  $region64: #{efficientnet_b4_attention_forward.5} parent=0 // pred_region
    _
  $region65: #{efficientnet_b4_attention_forward.5} parent=0 // pred_fallthru
    _
  // Predicated region
  $region66: #{efficientnet_b4_attention_forward.5} parent=0 // pred_check
    _
  $region67: #{efficientnet_b4_attention_forward.5} parent=0 // pred_check_branch
    %3983 = sbr.rel (0) target = $region69
  $region68: #{efficientnet_b4_attention_forward.5} parent=0 // pred_region
    _
  $region69: #{efficientnet_b4_attention_forward.5} parent=0 // pred_fallthru
    _
  // Predicated region
  $region70: #{efficientnet_b4_attention_forward.5} parent=0 // pred_check
    _
  $region71: #{efficientnet_b4_attention_forward.5} parent=0 // pred_check_branch
    %3985 = sbr.rel (0) target = $region73
  $region72: #{efficientnet_b4_attention_forward.5} parent=0 // pred_region
    _
  $region73: #{efficientnet_b4_attention_forward.5} parent=0 // pred_fallthru
    _
  // Predicated region
  $region74: #{efficientnet_b4_attention_forward.5} parent=0 // pred_check
    _
  $region75: #{efficientnet_b4_attention_forward.5} parent=0 // pred_check_branch
    %3987 = sbr.rel (0) target = $region77
  $region76: #{efficientnet_b4_attention_forward.5} parent=0 // pred_region
    _
  $region77: #{efficientnet_b4_attention_forward.5} parent=0 // pred_fallthru
    _
  // Predicated region
  $region78: #{efficientnet_b4_attention_forward.5} parent=0 // pred_check
    _
  $region79: #{efficientnet_b4_attention_forward.5} parent=0 // pred_check_branch
    %3989 = sbr.rel (0) target = $region81
  $region80: #{efficientnet_b4_attention_forward.5} parent=0 // pred_region
    _
  $region81: #{efficientnet_b4_attention_forward.5} parent=0 // pred_fallthru
    _
  // Predicated region
  $region82: #{efficientnet_b4_attention_forward.5} parent=0 // pred_check
    _
  $region83: #{efficientnet_b4_attention_forward.5} parent=0 // pred_check_branch
    %3991 = sbr.rel (0) target = $region85
  $region84: #{efficientnet_b4_attention_forward.5} parent=0 // pred_region
    _
  $region85: #{efficientnet_b4_attention_forward.5} parent=0 // pred_fallthru
    _
  // Predicated region
  $region86: #{efficientnet_b4_attention_forward.5} parent=0 // pred_check
    _
  $region87: #{efficientnet_b4_attention_forward.5} parent=0 // pred_check_branch
    %3993 = sbr.rel (0) target = $region89
  $region88: #{efficientnet_b4_attention_forward.5} parent=0 // pred_region
    _
  $region89: #{efficientnet_b4_attention_forward.5} parent=0 // pred_fallthru
    _
  // Predicated region
  $region90: #{efficientnet_b4_attention_forward.5} parent=0 // pred_check
    _
  $region91: #{efficientnet_b4_attention_forward.5} parent=0 // pred_check_branch
    %3995 = sbr.rel (0) target = $region93
  $region92: #{efficientnet_b4_attention_forward.5} parent=0 // pred_region
    _
  $region93: #{efficientnet_b4_attention_forward.5} parent=0 // pred_fallthru
    _

</llo_original>
